<compile_context>
chip_gen: v7x
topology: tpu7x:2x2x1
jax: 0.10.0
libtpu: 0.0.40
codegen_flags: <defaults>
</compile_context>

<pallas_src>
import jax
import jax.numpy as jnp
from jax import lax
from jax.experimental import pallas as pl
from jax.experimental.pallas import tpu as pltpu


def _eca_basic_block_kernel(x_ref, w1_ref, s1_ref, b1_ref,
                            w2_ref, s2_ref, b2_ref, eca_ref,
                            out_ref, pad_ref):
    # x_ref:   (1, H, W, C)   bf16   input block (one batch element)
    # w1/w2:   (9C, C)        bf16   im2col conv weights
    # s*/b*:   (1, C)         f32    folded BatchNorm scale / bias
    # eca_ref: (C, C)         f32    band matrix for the ECA 1D channel conv
    # out_ref: (1, H, W, C)   f32
    # pad_ref: (H+2, W+2, C)  bf16   reused padded-activation scratch
    _, H, W, C = out_ref.shape

    # --- zero only the halo border of the scratch (correct under "parallel") ---
    zero_row = jnp.zeros((1, W + 2, C), pad_ref.dtype)
    zero_col = jnp.zeros((H + 2, 1, C), pad_ref.dtype)
    pad_ref[0:1, :, :] = zero_row
    pad_ref[H + 1:H + 2, :, :] = zero_row
    pad_ref[:, 0:1, :] = zero_col
    pad_ref[:, W + 1:W + 2, :] = zero_col

    def conv3x3(w_ref):
        # 3x3 conv as a single im2col matmul: (H*W, 9C) x (9C, C) -> f32.
        padded = pad_ref[...]                                   # (H+2, W+2, C) bf16
        cols = []
        for dy in range(3):
            for dx in range(3):
                cols.append(padded[dy:dy + H, dx:dx + W, :].reshape(H * W, C))
        patch = jnp.concatenate(cols, axis=-1)                  # (H*W, 9C) bf16
        return jnp.dot(patch, w_ref[...],
                       preferred_element_type=jnp.float32)      # (H*W, C) f32

    x = x_ref[0]                                                # (H, W, C) bf16

    # ---- conv1 -> bn1 -> relu ----
    pad_ref[1:H + 1, 1:W + 1, :] = x
    out1 = conv3x3(w1_ref)
    out1 = jnp.maximum(out1 * s1_ref[...] + b1_ref[...], 0.0)   # (H*W, C) f32

    # ---- conv2 -> bn2 ----
    pad_ref[1:H + 1, 1:W + 1, :] = out1.reshape(H, W, C).astype(pad_ref.dtype)
    out2 = conv3x3(w2_ref)
    out2 = out2 * s2_ref[...] + b2_ref[...]                     # (H*W, C) f32

    # ---- ECA: global average pool -> 1D channel conv (band matmul) -> sigmoid ----
    y = jnp.sum(out2, axis=0, keepdims=True) * (1.0 / float(H * W))   # (1, C)
    yc = jnp.dot(y, eca_ref[...], preferred_element_type=jnp.float32)  # (1, C)
    gate = 1.0 / (1.0 + jnp.exp(-yc))

    # ---- channel scale + residual (aligned, unpadded input) + relu ----
    res = x.reshape(H * W, C).astype(jnp.float32)
    out = jnp.maximum(out2 * gate + res, 0.0)
    out_ref[...] = out.reshape(1, H, W, C)


def eca_basic_block_pallas(x_nchw, w1_oihw, bn1, w2_oihw, bn2, eca_w):
    """x_nchw: (B, C, H, W) float32.  Returns (B, C, H, W) float32."""
    B, C, H, W = x_nchw.shape
    eps = 1e-5

    # NCHW -> NHWC; activations in bf16 (MXU-native), accumulation stays f32.
    x = jnp.transpose(x_nchw, (0, 2, 3, 1)).astype(jnp.bfloat16)

    # Conv weights OIHW -> HWIO -> (9C, C) im2col matrices (rows: dy, dx, cin).
    def im2col_weight(w_oihw):
        w = jnp.transpose(w_oihw, (2, 3, 1, 0)).astype(jnp.float32)   # (3,3,Cin,Cout)
        return w.reshape(9 * C, C).astype(jnp.bfloat16)

    w1 = im2col_weight(w1_oihw)
    w2 = im2col_weight(w2_oihw)

    # Fold eval-mode BatchNorm into per-channel scale/bias (kept f32).
    def fold_bn(gamma, beta, mean, var):
        scale = gamma / jnp.sqrt(var + eps)
        bias = beta - mean * scale
        return (scale.reshape(1, C).astype(jnp.float32),
                bias.reshape(1, C).astype(jnp.float32))

    s1, b1 = fold_bn(*bn1)
    s2, b2 = fold_bn(*bn2)

    # ECA 1D conv (k=3, pad=1, no bias) over channels as a (C, C) band matrix:
    #   out[c] = w0*y[c-1] + w1*y[c] + w2*y[c+1]
    # TODO(synk): for very large C (>=256) a roll+FMA formulation would avoid the
    # dense band matrix; kept as a matmul here for simplicity/robustness.
    M = jnp.zeros((C, C), jnp.float32)
    idx = jnp.arange(C)
    M = M.at[idx, idx].set(eca_w[1])
    M = M.at[idx[:-1], idx[1:]].set(eca_w[0])   # M[c-1, c] = w0
    M = M.at[idx[1:], idx[:-1]].set(eca_w[2])   # M[c+1, c] = w2

    grid_spec = pltpu.PrefetchScalarGridSpec(
        num_scalar_prefetch=0,
        grid=(B,),
        in_specs=[
            pl.BlockSpec((1, H, W, C), lambda b: (b, 0, 0, 0)),   # x block
            pl.BlockSpec((9 * C, C), lambda b: (0, 0)),            # w1
            pl.BlockSpec((1, C), lambda b: (0, 0)),                # s1
            pl.BlockSpec((1, C), lambda b: (0, 0)),                # b1
            pl.BlockSpec((9 * C, C), lambda b: (0, 0)),            # w2
            pl.BlockSpec((1, C), lambda b: (0, 0)),                # s2
            pl.BlockSpec((1, C), lambda b: (0, 0)),                # b2
            pl.BlockSpec((C, C), lambda b: (0, 0)),                # ECA band matrix
        ],
        out_specs=pl.BlockSpec((1, H, W, C), lambda b: (b, 0, 0, 0)),
        scratch_shapes=[pltpu.VMEM((H + 2, W + 2, C), jnp.bfloat16)],
    )

    out_nhwc = pl.pallas_call(
        _eca_basic_block_kernel,
        out_shape=jax.ShapeDtypeStruct((B, H, W, C), jnp.float32),
        grid_spec=grid_spec,
        compiler_params=pltpu.CompilerParams(
            dimension_semantics=("parallel",),
            vmem_limit_bytes=48 * 1024 * 1024),
    )(x, w1, s1, b1, w2, s2, b2, M)

    return jnp.transpose(out_nhwc, (0, 3, 1, 2))


# ---------------- pure-JAX reference (for correctness check) ----------------
def _ref_forward(x, w1, bn1, w2, bn2, eca_w):
    eps = 1e-5

    def conv(inp, w):
        return lax.conv_general_dilated(
            inp, w, window_strides=(1, 1), padding=((1, 1), (1, 1)),
            dimension_numbers=("NCHW", "OIHW", "NCHW"))

    def bn(inp, gamma, beta, mean, var):
        sc = (gamma / jnp.sqrt(var + eps))[None, :, None, None]
        bs = (beta - mean * gamma / jnp.sqrt(var + eps))[None, :, None, None]
        return inp * sc + bs

    out = jnp.maximum(bn(conv(x, w1), *bn1), 0.0)
    out = bn(conv(out, w2), *bn2)
    y = jnp.mean(out, axis=(2, 3))                       # (B, C)
    yp = jnp.pad(y, ((0, 0), (1, 1)))
    yc = eca_w[0] * yp[:, :-2] + eca_w[1] * yp[:, 1:-1] + eca_w[2] * yp[:, 2:]
    gate = jax.nn.sigmoid(yc)
    out = out * gate[:, :, None, None]
    return jnp.maximum(out + x, 0.0)


if __name__ == "__main__":
    B, C, H, W = 2, 4, 16, 16   # inplanes == planes, stride=1, downsample=None
    key = jax.random.PRNGKey(0)
    ks = jax.random.split(key, 12)

    x = jax.random.normal(ks[0], (B, C, H, W), jnp.float32)

    w1 = 0.1 * jax.random.normal(ks[1], (C, C, 3, 3), jnp.float32)   # OIHW
    w2 = 0.1 * jax.random.normal(ks[2], (C, C, 3, 3), jnp.float32)   # OIHW

    bn1 = (1.0 + 0.1 * jax.random.normal(ks[3], (C,), jnp.float32),    # gamma
           0.1 * jax.random.normal(ks[4], (C,), jnp.float32),          # beta
           0.05 * jax.random.normal(ks[5], (C,), jnp.float32),         # running_mean
           0.5 + jnp.abs(jax.random.normal(ks[6], (C,), jnp.float32)))  # running_var
    bn2 = (1.0 + 0.1 * jax.random.normal(ks[7], (C,), jnp.float32),
           0.1 * jax.random.normal(ks[8], (C,), jnp.float32),
           0.05 * jax.random.normal(ks[9], (C,), jnp.float32),
           0.5 + jnp.abs(jax.random.normal(ks[10], (C,), jnp.float32)))

    eca_w = 0.5 * jax.random.normal(ks[11], (3,), jnp.float32)        # conv1d(1,1,k=3)

    out = eca_basic_block_pallas(x, w1, bn1, w2, bn2, eca_w)
    out = jax.block_until_ready(out)

    ref = _ref_forward(x, w1, bn1, w2, bn2, eca_w)
    assert out.shape == (B, C, H, W)
    # bf16 activations/weights in the kernel (f32 accumulation) -> loosened tol.
    assert jnp.allclose(out, ref, atol=2e-2, rtol=2e-2), \
        f"max abs diff {jnp.max(jnp.abs(out - ref))}"

    print("KERNEL_OK")
</pallas_src>

<mosaic_0001>
module attributes {stable_mosaic.version = 11 : i64} {
  func.func @_eca_basic_block_kernel(%arg0: i32, %arg1: memref<1x16x16x4xbf16, #tpu.memory_space<vmem>>, %arg2: memref<36x4xbf16, #tpu.memory_space<vmem>>, %arg3: memref<1x4xf32, #tpu.memory_space<vmem>>, %arg4: memref<1x4xf32, #tpu.memory_space<vmem>>, %arg5: memref<36x4xbf16, #tpu.memory_space<vmem>>, %arg6: memref<1x4xf32, #tpu.memory_space<vmem>>, %arg7: memref<1x4xf32, #tpu.memory_space<vmem>>, %arg8: memref<4x4xf32, #tpu.memory_space<vmem>>, %arg9: memref<1x16x16x4xf32, #tpu.memory_space<vmem>>, %arg10: memref<18x18x4xbf16, #tpu.memory_space<vmem>>) attributes {dimension_semantics = [#tpu.dimension_semantics<parallel>], iteration_bounds = array<i64: 2>, scalar_prefetch = 0 : i64, scratch_operands = 1 : i64, tpu.core_type = #tpu.core_type<tc>, window_params = [{transform_indices = @transform_0, window_bounds = array<i64: 1, 16, 16, 4>}, {pipeline_mode = #tpu.pipeline_mode<synchronous>, transform_indices = @transform_1, window_bounds = array<i64: 36, 4>}, {pipeline_mode = #tpu.pipeline_mode<synchronous>, transform_indices = @transform_2, window_bounds = array<i64: 1, 4>}, {pipeline_mode = #tpu.pipeline_mode<synchronous>, transform_indices = @transform_3, window_bounds = array<i64: 1, 4>}, {pipeline_mode = #tpu.pipeline_mode<synchronous>, transform_indices = @transform_4, window_bounds = array<i64: 36, 4>}, {pipeline_mode = #tpu.pipeline_mode<synchronous>, transform_indices = @transform_5, window_bounds = array<i64: 1, 4>}, {pipeline_mode = #tpu.pipeline_mode<synchronous>, transform_indices = @transform_6, window_bounds = array<i64: 1, 4>}, {pipeline_mode = #tpu.pipeline_mode<synchronous>, transform_indices = @transform_7, window_bounds = array<i64: 4, 4>}, {transform_indices = @transform_8, window_bounds = array<i64: 1, 16, 16, 4>}]} {
    %cst = arith.constant 0.000000e+00 : bf16
    %0 = vector.broadcast %cst : bf16 to vector<1x18x4xbf16>
    %cst_0 = arith.constant 0.000000e+00 : bf16
    %1 = vector.broadcast %cst_0 : bf16 to vector<18x1x4xbf16>
    %c0 = arith.constant 0 : index
    %c0_1 = arith.constant 0 : index
    %c0_2 = arith.constant 0 : index
    %2 = vector.load %arg10[%c0, %c0_1, %c0_2] : memref<18x18x4xbf16, #tpu.memory_space<vmem>>, vector<1x18x4xbf16>
    tpu.vector_store %arg10[%c0, %c0_1, %c0_2], %0 {strides = array<i32>} : memref<18x18x4xbf16, #tpu.memory_space<vmem>>, vector<1x18x4xbf16>,
    %c17 = arith.constant 17 : index
    %c0_3 = arith.constant 0 : index
    %c0_4 = arith.constant 0 : index
    %3 = vector.load %arg10[%c17, %c0_3, %c0_4] : memref<18x18x4xbf16, #tpu.memory_space<vmem>>, vector<1x18x4xbf16>
    tpu.vector_store %arg10[%c17, %c0_3, %c0_4], %0 {strides = array<i32>} : memref<18x18x4xbf16, #tpu.memory_space<vmem>>, vector<1x18x4xbf16>,
    %c0_5 = arith.constant 0 : index
    %c0_6 = arith.constant 0 : index
    %c0_7 = arith.constant 0 : index
    %4 = vector.load %arg10[%c0_5, %c0_6, %c0_7] : memref<18x18x4xbf16, #tpu.memory_space<vmem>>, vector<18x1x4xbf16>
    tpu.vector_store %arg10[%c0_5, %c0_6, %c0_7], %1 {strides = array<i32>} : memref<18x18x4xbf16, #tpu.memory_space<vmem>>, vector<18x1x4xbf16>,
    %c0_8 = arith.constant 0 : index
    %c17_9 = arith.constant 17 : index
    %c0_10 = arith.constant 0 : index
    %5 = vector.load %arg10[%c0_8, %c17_9, %c0_10] : memref<18x18x4xbf16, #tpu.memory_space<vmem>>, vector<18x1x4xbf16>
    tpu.vector_store %arg10[%c0_8, %c17_9, %c0_10], %1 {strides = array<i32>} : memref<18x18x4xbf16, #tpu.memory_space<vmem>>, vector<18x1x4xbf16>,
    %c0_11 = arith.constant 0 : index
    %c0_12 = arith.constant 0 : index
    %c0_13 = arith.constant 0 : index
    %c0_14 = arith.constant 0 : index
    %6 = vector.load %arg1[%c0_11, %c0_12, %c0_13, %c0_14] : memref<1x16x16x4xbf16, #tpu.memory_space<vmem>>, vector<1x16x16x4xbf16>
    %7 = vector.shape_cast %6 : vector<1x16x16x4xbf16> to vector<16x16x4xbf16>
    %c1 = arith.constant 1 : index
    %c1_15 = arith.constant 1 : index
    %c0_16 = arith.constant 0 : index
    %8 = vector.load %arg10[%c1, %c1_15, %c0_16] : memref<18x18x4xbf16, #tpu.memory_space<vmem>>, vector<16x16x4xbf16>
    tpu.vector_store %arg10[%c1, %c1_15, %c0_16], %7 {strides = array<i32>} : memref<18x18x4xbf16, #tpu.memory_space<vmem>>, vector<16x16x4xbf16>,
    %c0_17 = arith.constant 0 : index
    %c0_18 = arith.constant 0 : index
    %c0_19 = arith.constant 0 : index
    %9 = vector.load %arg10[%c0_17, %c0_18, %c0_19] : memref<18x18x4xbf16, #tpu.memory_space<vmem>>, vector<18x18x4xbf16>
    %10 = vector.extract_strided_slice %9 {offsets = [0, 0, 0], sizes = [16, 16, 4], strides = [1, 1, 1]} : vector<18x18x4xbf16> to vector<16x16x4xbf16>
    %11 = vector.shape_cast %10 : vector<16x16x4xbf16> to vector<256x4xbf16>
    %12 = vector.extract_strided_slice %9 {offsets = [0, 1, 0], sizes = [16, 16, 4], strides = [1, 1, 1]} : vector<18x18x4xbf16> to vector<16x16x4xbf16>
    %13 = vector.shape_cast %12 : vector<16x16x4xbf16> to vector<256x4xbf16>
    %14 = vector.extract_strided_slice %9 {offsets = [0, 2, 0], sizes = [16, 16, 4], strides = [1, 1, 1]} : vector<18x18x4xbf16> to vector<16x16x4xbf16>
    %15 = vector.shape_cast %14 : vector<16x16x4xbf16> to vector<256x4xbf16>
    %16 = vector.extract_strided_slice %9 {offsets = [1, 0, 0], sizes = [16, 16, 4], strides = [1, 1, 1]} : vector<18x18x4xbf16> to vector<16x16x4xbf16>
    %17 = vector.shape_cast %16 : vector<16x16x4xbf16> to vector<256x4xbf16>
    %18 = vector.extract_strided_slice %9 {offsets = [1, 1, 0], sizes = [16, 16, 4], strides = [1, 1, 1]} : vector<18x18x4xbf16> to vector<16x16x4xbf16>
    %19 = vector.shape_cast %18 : vector<16x16x4xbf16> to vector<256x4xbf16>
    %20 = vector.extract_strided_slice %9 {offsets = [1, 2, 0], sizes = [16, 16, 4], strides = [1, 1, 1]} : vector<18x18x4xbf16> to vector<16x16x4xbf16>
    %21 = vector.shape_cast %20 : vector<16x16x4xbf16> to vector<256x4xbf16>
    %22 = vector.extract_strided_slice %9 {offsets = [2, 0, 0], sizes = [16, 16, 4], strides = [1, 1, 1]} : vector<18x18x4xbf16> to vector<16x16x4xbf16>
    %23 = vector.shape_cast %22 : vector<16x16x4xbf16> to vector<256x4xbf16>
    %24 = vector.extract_strided_slice %9 {offsets = [2, 1, 0], sizes = [16, 16, 4], strides = [1, 1, 1]} : vector<18x18x4xbf16> to vector<16x16x4xbf16>
    %25 = vector.shape_cast %24 : vector<16x16x4xbf16> to vector<256x4xbf16>
    %26 = vector.extract_strided_slice %9 {offsets = [2, 2, 0], sizes = [16, 16, 4], strides = [1, 1, 1]} : vector<18x18x4xbf16> to vector<16x16x4xbf16>
    %27 = vector.shape_cast %26 : vector<16x16x4xbf16> to vector<256x4xbf16>
    %28 = tpu.concatenate %11, %13, %15, %17, %19, %21, %23, %25, %27 in 1 : vector<256x4xbf16>, vector<256x4xbf16>, vector<256x4xbf16>, vector<256x4xbf16>, vector<256x4xbf16>, vector<256x4xbf16>, vector<256x4xbf16>, vector<256x4xbf16>, vector<256x4xbf16> -> vector<256x36xbf16>
    %c0_20 = arith.constant 0 : index
    %c0_21 = arith.constant 0 : index
    %29 = vector.load %arg2[%c0_20, %c0_21] : memref<36x4xbf16, #tpu.memory_space<vmem>>, vector<36x4xbf16>
    %cst_22 = arith.constant dense<0.000000e+00> : vector<256x4xf32>
    %30 = tpu.matmul %28, %29, %cst_22 {dimension_numbers = #tpu.dot_dimension_numbers<[1], [0], [0], [1], [0, 0, 1, 1], [], []>} : vector<256x36xbf16>, vector<36x4xbf16>, vector<256x4xf32> -> vector<256x4xf32>
    %c0_23 = arith.constant 0 : index
    %c0_24 = arith.constant 0 : index
    %31 = vector.load %arg3[%c0_23, %c0_24] : memref<1x4xf32, #tpu.memory_space<vmem>>, vector<1x4xf32>
    %32 = vector.broadcast %31 : vector<1x4xf32> to vector<256x4xf32>
    %33 = arith.mulf %30, %32 : vector<256x4xf32>
    %c0_25 = arith.constant 0 : index
    %c0_26 = arith.constant 0 : index
    %34 = vector.load %arg4[%c0_25, %c0_26] : memref<1x4xf32, #tpu.memory_space<vmem>>, vector<1x4xf32>
    %35 = vector.broadcast %34 : vector<1x4xf32> to vector<256x4xf32>
    %36 = arith.addf %33, %35 : vector<256x4xf32>
    %cst_27 = arith.constant 0.000000e+00 : f32
    %37 = vector.broadcast %cst_27 : f32 to vector<256x4xf32>
    %38 = arith.maximumf %36, %37 : vector<256x4xf32>
    %39 = vector.shape_cast %38 : vector<256x4xf32> to vector<16x16x4xf32>
    %40 = arith.truncf %39 : vector<16x16x4xf32> to vector<16x16x4xbf16>
    %c1_28 = arith.constant 1 : index
    %c1_29 = arith.constant 1 : index
    %c0_30 = arith.constant 0 : index
    %41 = vector.load %arg10[%c1_28, %c1_29, %c0_30] : memref<18x18x4xbf16, #tpu.memory_space<vmem>>, vector<16x16x4xbf16>
    tpu.vector_store %arg10[%c1_28, %c1_29, %c0_30], %40 {strides = array<i32>} : memref<18x18x4xbf16, #tpu.memory_space<vmem>>, vector<16x16x4xbf16>,
    %c0_31 = arith.constant 0 : index
    %c0_32 = arith.constant 0 : index
    %c0_33 = arith.constant 0 : index
    %42 = vector.load %arg10[%c0_31, %c0_32, %c0_33] : memref<18x18x4xbf16, #tpu.memory_space<vmem>>, vector<18x18x4xbf16>
    %43 = vector.extract_strided_slice %42 {offsets = [0, 0, 0], sizes = [16, 16, 4], strides = [1, 1, 1]} : vector<18x18x4xbf16> to vector<16x16x4xbf16>
    %44 = vector.shape_cast %43 : vector<16x16x4xbf16> to vector<256x4xbf16>
    %45 = vector.extract_strided_slice %42 {offsets = [0, 1, 0], sizes = [16, 16, 4], strides = [1, 1, 1]} : vector<18x18x4xbf16> to vector<16x16x4xbf16>
    %46 = vector.shape_cast %45 : vector<16x16x4xbf16> to vector<256x4xbf16>
    %47 = vector.extract_strided_slice %42 {offsets = [0, 2, 0], sizes = [16, 16, 4], strides = [1, 1, 1]} : vector<18x18x4xbf16> to vector<16x16x4xbf16>
    %48 = vector.shape_cast %47 : vector<16x16x4xbf16> to vector<256x4xbf16>
    %49 = vector.extract_strided_slice %42 {offsets = [1, 0, 0], sizes = [16, 16, 4], strides = [1, 1, 1]} : vector<18x18x4xbf16> to vector<16x16x4xbf16>
    %50 = vector.shape_cast %49 : vector<16x16x4xbf16> to vector<256x4xbf16>
    %51 = vector.extract_strided_slice %42 {offsets = [1, 1, 0], sizes = [16, 16, 4], strides = [1, 1, 1]} : vector<18x18x4xbf16> to vector<16x16x4xbf16>
    %52 = vector.shape_cast %51 : vector<16x16x4xbf16> to vector<256x4xbf16>
    %53 = vector.extract_strided_slice %42 {offsets = [1, 2, 0], sizes = [16, 16, 4], strides = [1, 1, 1]} : vector<18x18x4xbf16> to vector<16x16x4xbf16>
    %54 = vector.shape_cast %53 : vector<16x16x4xbf16> to vector<256x4xbf16>
    %55 = vector.extract_strided_slice %42 {offsets = [2, 0, 0], sizes = [16, 16, 4], strides = [1, 1, 1]} : vector<18x18x4xbf16> to vector<16x16x4xbf16>
    %56 = vector.shape_cast %55 : vector<16x16x4xbf16> to vector<256x4xbf16>
    %57 = vector.extract_strided_slice %42 {offsets = [2, 1, 0], sizes = [16, 16, 4], strides = [1, 1, 1]} : vector<18x18x4xbf16> to vector<16x16x4xbf16>
    %58 = vector.shape_cast %57 : vector<16x16x4xbf16> to vector<256x4xbf16>
    %59 = vector.extract_strided_slice %42 {offsets = [2, 2, 0], sizes = [16, 16, 4], strides = [1, 1, 1]} : vector<18x18x4xbf16> to vector<16x16x4xbf16>
    %60 = vector.shape_cast %59 : vector<16x16x4xbf16> to vector<256x4xbf16>
    %61 = tpu.concatenate %44, %46, %48, %50, %52, %54, %56, %58, %60 in 1 : vector<256x4xbf16>, vector<256x4xbf16>, vector<256x4xbf16>, vector<256x4xbf16>, vector<256x4xbf16>, vector<256x4xbf16>, vector<256x4xbf16>, vector<256x4xbf16>, vector<256x4xbf16> -> vector<256x36xbf16>
    %c0_34 = arith.constant 0 : index
    %c0_35 = arith.constant 0 : index
    %62 = vector.load %arg5[%c0_34, %c0_35] : memref<36x4xbf16, #tpu.memory_space<vmem>>, vector<36x4xbf16>
    %cst_36 = arith.constant dense<0.000000e+00> : vector<256x4xf32>
    %63 = tpu.matmul %61, %62, %cst_36 {dimension_numbers = #tpu.dot_dimension_numbers<[1], [0], [0], [1], [0, 0, 1, 1], [], []>} : vector<256x36xbf16>, vector<36x4xbf16>, vector<256x4xf32> -> vector<256x4xf32>
    %c0_37 = arith.constant 0 : index
    %c0_38 = arith.constant 0 : index
    %64 = vector.load %arg6[%c0_37, %c0_38] : memref<1x4xf32, #tpu.memory_space<vmem>>, vector<1x4xf32>
    %65 = vector.broadcast %64 : vector<1x4xf32> to vector<256x4xf32>
    %66 = arith.mulf %63, %65 : vector<256x4xf32>
    %c0_39 = arith.constant 0 : index
    %c0_40 = arith.constant 0 : index
    %67 = vector.load %arg7[%c0_39, %c0_40] : memref<1x4xf32, #tpu.memory_space<vmem>>, vector<1x4xf32>
    %68 = vector.broadcast %67 : vector<1x4xf32> to vector<256x4xf32>
    %69 = arith.addf %66, %68 : vector<256x4xf32>
    %cst_41 = arith.constant dense<0.000000e+00> : vector<4xf32>
    %70 = vector.multi_reduction <add>, %69, %cst_41 [0] : vector<256x4xf32> to vector<4xf32>
    %71 = vector.shape_cast %70 : vector<4xf32> to vector<1x4xf32>
    %cst_42 = arith.constant 3.906250e-03 : f32
    %72 = vector.broadcast %cst_42 : f32 to vector<1x4xf32>
    %73 = arith.mulf %71, %72 : vector<1x4xf32>
    %c0_43 = arith.constant 0 : index
    %c0_44 = arith.constant 0 : index
    %74 = vector.load %arg8[%c0_43, %c0_44] : memref<4x4xf32, #tpu.memory_space<vmem>>, vector<4x4xf32>
    %cst_45 = arith.constant dense<0.000000e+00> : vector<1x4xf32>
    %75 = tpu.matmul %73, %74, %cst_45 {dimension_numbers = #tpu.dot_dimension_numbers<[1], [0], [0], [1], [0, 0, 1, 1], [], []>} : vector<1x4xf32>, vector<4x4xf32>, vector<1x4xf32> -> vector<1x4xf32>
    %cst_46 = arith.constant 0.000000e+00 : f32
    %76 = vector.broadcast %cst_46 : f32 to vector<1x4xf32>
    %77 = arith.subf %76, %75 : vector<1x4xf32>
    %78 = math.exp %77 : vector<1x4xf32>
    %cst_47 = arith.constant 1.000000e+00 : f32
    %79 = vector.broadcast %cst_47 : f32 to vector<1x4xf32>
    %80 = arith.addf %79, %78 : vector<1x4xf32>
    %cst_48 = arith.constant 1.000000e+00 : f32
    %81 = vector.broadcast %cst_48 : f32 to vector<1x4xf32>
    %82 = arith.divf %81, %80 : vector<1x4xf32>
    %83 = vector.shape_cast %7 : vector<16x16x4xbf16> to vector<256x4xbf16>
    %84 = arith.extf %83 : vector<256x4xbf16> to vector<256x4xf32>
    %85 = vector.broadcast %82 : vector<1x4xf32> to vector<256x4xf32>
    %86 = arith.mulf %69, %85 : vector<256x4xf32>
    %87 = arith.addf %86, %84 : vector<256x4xf32>
    %cst_49 = arith.constant 0.000000e+00 : f32
    %88 = vector.broadcast %cst_49 : f32 to vector<256x4xf32>
    %89 = arith.maximumf %87, %88 : vector<256x4xf32>
    %90 = vector.shape_cast %89 : vector<256x4xf32> to vector<1x16x16x4xf32>
    %c0_50 = arith.constant 0 : index
    %c0_51 = arith.constant 0 : index
    %c0_52 = arith.constant 0 : index
    %c0_53 = arith.constant 0 : index
    %91 = vector.load %arg9[%c0_50, %c0_51, %c0_52, %c0_53] : memref<1x16x16x4xf32, #tpu.memory_space<vmem>>, vector<1x16x16x4xf32>
    tpu.vector_store %arg9[%c0_50, %c0_51, %c0_52, %c0_53], %90 {strides = array<i32>} : memref<1x16x16x4xf32, #tpu.memory_space<vmem>>, vector<1x16x16x4xf32>,
    return
  }
  func.func @transform_0(%arg0: i32) -> (i32, i32, i32, i32) {
    %c0_i32 = arith.constant 0 : i32
    %c0_i32_0 = arith.constant 0 : i32
    %c0_i32_1 = arith.constant 0 : i32
    %c0_i32_2 = arith.constant 0 : i32
    return %arg0, %c0_i32, %c0_i32_0, %c0_i32_1 : i32, i32, i32, i32
  }
  func.func @transform_1(%arg0: i32) -> (i32, i32) {
    %c0_i32 = arith.constant 0 : i32
    %c0_i32_0 = arith.constant 0 : i32
    %c0_i32_1 = arith.constant 0 : i32
    return %c0_i32, %c0_i32_0 : i32, i32
  }
  func.func @transform_2(%arg0: i32) -> (i32, i32) {
    %c0_i32 = arith.constant 0 : i32
    %c0_i32_0 = arith.constant 0 : i32
    %c0_i32_1 = arith.constant 0 : i32
    return %c0_i32, %c0_i32_0 : i32, i32
  }
  func.func @transform_3(%arg0: i32) -> (i32, i32) {
    %c0_i32 = arith.constant 0 : i32
    %c0_i32_0 = arith.constant 0 : i32
    %c0_i32_1 = arith.constant 0 : i32
    return %c0_i32, %c0_i32_0 : i32, i32
  }
  func.func @transform_4(%arg0: i32) -> (i32, i32) {
    %c0_i32 = arith.constant 0 : i32
    %c0_i32_0 = arith.constant 0 : i32
    %c0_i32_1 = arith.constant 0 : i32
    return %c0_i32, %c0_i32_0 : i32, i32
  }
  func.func @transform_5(%arg0: i32) -> (i32, i32) {
    %c0_i32 = arith.constant 0 : i32
    %c0_i32_0 = arith.constant 0 : i32
    %c0_i32_1 = arith.constant 0 : i32
    return %c0_i32, %c0_i32_0 : i32, i32
  }
  func.func @transform_6(%arg0: i32) -> (i32, i32) {
    %c0_i32 = arith.constant 0 : i32
    %c0_i32_0 = arith.constant 0 : i32
    %c0_i32_1 = arith.constant 0 : i32
    return %c0_i32, %c0_i32_0 : i32, i32
  }
  func.func @transform_7(%arg0: i32) -> (i32, i32) {
    %c0_i32 = arith.constant 0 : i32
    %c0_i32_0 = arith.constant 0 : i32
    %c0_i32_1 = arith.constant 0 : i32
    return %c0_i32, %c0_i32_0 : i32, i32
  }
  func.func @transform_8(%arg0: i32) -> (i32, i32, i32, i32) {
    %c0_i32 = arith.constant 0 : i32
    %c0_i32_0 = arith.constant 0 : i32
    %c0_i32_1 = arith.constant 0 : i32
    %c0_i32_2 = arith.constant 0 : i32
    return %arg0, %c0_i32, %c0_i32_0, %c0_i32_1 : i32, i32, i32, i32
  }
}

</mosaic_0001>

<llo_original>
// kernel: tpu_custom_call.1
$region0: #{tpu_custom_call.1}
  #allocation0 [shape = 'u32[]', space=smem, size = 0x4, offset = 0x4, fixed_abs, tag = 'smem constant byte address 0x4 - core index']
  #allocation1 [shape = 'u32[144,128]{1,0:T(1,128)}', space=vmem, size = 0x12000, scoped, tag = 'internal scratch']
  #allocation2 [shape = 'bf16[18,18,4]{2,1,0:T(8,128)(2,1)}', space=vmem, size = 0x1b000, scoped, tag = 'scratch operand']
  %s0 = inlined_call_operand.vmem [shape: bf16[2,16,16,4], index: 0, kind: input, shape index: {}]
  %s1 = inlined_call_operand.vmem [shape: bf16[36,4], index: 1, kind: input, shape index: {}]
  %s2 = inlined_call_operand.vmem [shape: f32[1,4], index: 2, kind: input, shape index: {}]
  %s3 = inlined_call_operand.vmem [shape: f32[1,4], index: 3, kind: input, shape index: {}]
  %s4 = inlined_call_operand.vmem [shape: bf16[36,4], index: 4, kind: input, shape index: {}]
  %s5 = inlined_call_operand.vmem [shape: f32[1,4], index: 5, kind: input, shape index: {}]
  %s6 = inlined_call_operand.vmem [shape: f32[1,4], index: 6, kind: input, shape index: {}]
  %s7 = inlined_call_operand.vmem [shape: f32[4,4], index: 7, kind: input, shape index: {}]
  %s8 = inlined_call_operand.vmem [shape: f32[2,16,16,4], index: 8, kind: output, shape index: {}]
  %s9 = sld [smem:[#allocation0]]
  $region65: #{tpu_custom_call.1} parent=0
    _
  %s11 = ssub.s32 1, %s9
  %s12 = scalar_select 0, %s11, %s9
  loop: start=0, step=1, limit=4
  $region2: #{tpu_custom_call.1} parent=0 // loop_pre_header
    _
  $region3: #{tpu_custom_call.1} parent=0 // loop_header
    %s14 = sphi 0, %s18
    %p15 = scmp.ge.s32.totalorder %s14, 4
    %s24 = sphi 0, %s26
    %s27 = sphi 0, %s24
    %s28 = sphi 0, %s27
    %s44 = sphi 0, %s28
    %s48 = sphi 0, %s48
    %s50 = sphi 0, %s48
    %s51 = sphi 0, %s50
    %s65 = sphi 0, %s51
    %s69 = sphi 0, %s69
    %s71 = sphi 0, %s69
    %s72 = sphi 0, %s71
    %s86 = sphi 0, %s72
    %s90 = sphi 0, %s90
    %s92 = sphi 0, %s90
    %s93 = sphi 0, %s92
    %s107 = sphi 0, %s93
    %s111 = sphi 0, %s111
    %s113 = sphi 0, %s111
    %s114 = sphi 0, %s113
    %s128 = sphi 0, %s114
    %s132 = sphi 0, %s132
    %s134 = sphi 0, %s132
    %s135 = sphi 0, %s134
    %s149 = sphi 0, %s135
    %s153 = sphi 0, %s153
    %s155 = sphi 0, %s153
    %s156 = sphi 0, %s155
    %s170 = sphi 0, %s156
    %s174 = sphi 0, %s174
    %s176 = sphi 0, %s174
    %s177 = sphi 0, %s176
    %s191 = sphi 0, %s177
    %s197 = sphi 0, %s199
    %s200 = sphi 0, %s197
    %s201 = sphi 0, %s200
    %s217 = sphi 0, %s201
  $region4: #{tpu_custom_call.1} parent=0 // loop_header_branch
    %17 = sbr.rel (%p15) target = $region8
  $region5: #{tpu_custom_call.1} parent=0 // loop_body
    %s19 = ssub.s32 %s14, 1
    %s20 = ssub.s32 %s14, 2
    %s21 = sadd.s32 %s14, 1
    %s22 = ssub.s32 %s14, %s21
    %p23 = scmp.eq.s32.totalorder %s22, 0
    %s25 = sadd.s32 %s24, 1
    %s26 = scalar_select %p23, %s24, %s25
    %p29 = pneg %p23
    %p30 = scmp.eq.s32.totalorder %s14, 1
    %p31 = por %p29, %p30
    %p32 = scmp.ne.s32.totalorder %s24, %s27
    %p33 = scmp.eq.s32.totalorder %s14, 0
    %p34 = por %p32, %p33
    %p35 = scmp.ne.s32.totalorder %s24, %s27
    %p36 = scmp.eq.s32.totalorder %s19, 1
    %p37 = por %p35, %p36
    %p38 = scmp.ne.s32.totalorder %s27, %s28
    %p39 = scmp.eq.s32.totalorder %s19, 0
    %p40 = por %p38, %p39
    %p41 = scmp.ne.s32.totalorder %s27, %s28
    %p42 = scmp.eq.s32.totalorder %s20, 1
    %p43 = por %p41, %p42
    %p45 = scmp.ne.s32.totalorder %s28, %s44
    %p46 = scmp.eq.s32.totalorder %s20, 0
    %p47 = por %p45, %p46
    %s49 = sadd.s32 %s48, 1
    %p52 = scmp.eq.s32.totalorder %s14, 1
    %p53 = scmp.ne.s32.totalorder %s48, %s50
    %p54 = scmp.eq.s32.totalorder %s14, 0
    %p55 = por %p53, %p54
    %p56 = scmp.ne.s32.totalorder %s48, %s50
    %p57 = scmp.eq.s32.totalorder %s19, 1
    %p58 = por %p56, %p57
    %p59 = scmp.ne.s32.totalorder %s50, %s51
    %p60 = scmp.eq.s32.totalorder %s19, 0
    %p61 = por %p59, %p60
    %p62 = scmp.ne.s32.totalorder %s50, %s51
    %p63 = scmp.eq.s32.totalorder %s20, 1
    %p64 = por %p62, %p63
    %p66 = scmp.ne.s32.totalorder %s51, %s65
    %p67 = scmp.eq.s32.totalorder %s20, 0
    %p68 = por %p66, %p67
    %s70 = sadd.s32 %s69, 1
    %p73 = scmp.eq.s32.totalorder %s14, 1
    %p74 = scmp.ne.s32.totalorder %s69, %s71
    %p75 = scmp.eq.s32.totalorder %s14, 0
    %p76 = por %p74, %p75
    %p77 = scmp.ne.s32.totalorder %s69, %s71
    %p78 = scmp.eq.s32.totalorder %s19, 1
    %p79 = por %p77, %p78
    %p80 = scmp.ne.s32.totalorder %s71, %s72
    %p81 = scmp.eq.s32.totalorder %s19, 0
    %p82 = por %p80, %p81
    %p83 = scmp.ne.s32.totalorder %s71, %s72
    %p84 = scmp.eq.s32.totalorder %s20, 1
    %p85 = por %p83, %p84
    %p87 = scmp.ne.s32.totalorder %s72, %s86
    %p88 = scmp.eq.s32.totalorder %s20, 0
    %p89 = por %p87, %p88
    %s91 = sadd.s32 %s90, 1
    %p94 = scmp.eq.s32.totalorder %s14, 1
    %p95 = scmp.ne.s32.totalorder %s90, %s92
    %p96 = scmp.eq.s32.totalorder %s14, 0
    %p97 = por %p95, %p96
    %p98 = scmp.ne.s32.totalorder %s90, %s92
    %p99 = scmp.eq.s32.totalorder %s19, 1
    %p100 = por %p98, %p99
    %p101 = scmp.ne.s32.totalorder %s92, %s93
    %p102 = scmp.eq.s32.totalorder %s19, 0
    %p103 = por %p101, %p102
    %p104 = scmp.ne.s32.totalorder %s92, %s93
    %p105 = scmp.eq.s32.totalorder %s20, 1
    %p106 = por %p104, %p105
    %p108 = scmp.ne.s32.totalorder %s93, %s107
    %p109 = scmp.eq.s32.totalorder %s20, 0
    %p110 = por %p108, %p109
    %s112 = sadd.s32 %s111, 1
    %p115 = scmp.eq.s32.totalorder %s14, 1
    %p116 = scmp.ne.s32.totalorder %s111, %s113
    %p117 = scmp.eq.s32.totalorder %s14, 0
    %p118 = por %p116, %p117
    %p119 = scmp.ne.s32.totalorder %s111, %s113
    %p120 = scmp.eq.s32.totalorder %s19, 1
    %p121 = por %p119, %p120
    %p122 = scmp.ne.s32.totalorder %s113, %s114
    %p123 = scmp.eq.s32.totalorder %s19, 0
    %p124 = por %p122, %p123
    %p125 = scmp.ne.s32.totalorder %s113, %s114
    %p126 = scmp.eq.s32.totalorder %s20, 1
    %p127 = por %p125, %p126
    %p129 = scmp.ne.s32.totalorder %s114, %s128
    %p130 = scmp.eq.s32.totalorder %s20, 0
    %p131 = por %p129, %p130
    %s133 = sadd.s32 %s132, 1
    %p136 = scmp.eq.s32.totalorder %s14, 1
    %p137 = scmp.ne.s32.totalorder %s132, %s134
    %p138 = scmp.eq.s32.totalorder %s14, 0
    %p139 = por %p137, %p138
    %p140 = scmp.ne.s32.totalorder %s132, %s134
    %p141 = scmp.eq.s32.totalorder %s19, 1
    %p142 = por %p140, %p141
    %p143 = scmp.ne.s32.totalorder %s134, %s135
    %p144 = scmp.eq.s32.totalorder %s19, 0
    %p145 = por %p143, %p144
    %p146 = scmp.ne.s32.totalorder %s134, %s135
    %p147 = scmp.eq.s32.totalorder %s20, 1
    %p148 = por %p146, %p147
    %p150 = scmp.ne.s32.totalorder %s135, %s149
    %p151 = scmp.eq.s32.totalorder %s20, 0
    %p152 = por %p150, %p151
    %s154 = sadd.s32 %s153, 1
    %p157 = scmp.eq.s32.totalorder %s14, 1
    %p158 = scmp.ne.s32.totalorder %s153, %s155
    %p159 = scmp.eq.s32.totalorder %s14, 0
    %p160 = por %p158, %p159
    %p161 = scmp.ne.s32.totalorder %s153, %s155
    %p162 = scmp.eq.s32.totalorder %s19, 1
    %p163 = por %p161, %p162
    %p164 = scmp.ne.s32.totalorder %s155, %s156
    %p165 = scmp.eq.s32.totalorder %s19, 0
    %p166 = por %p164, %p165
    %p167 = scmp.ne.s32.totalorder %s155, %s156
    %p168 = scmp.eq.s32.totalorder %s20, 1
    %p169 = por %p167, %p168
    %p171 = scmp.ne.s32.totalorder %s156, %s170
    %p172 = scmp.eq.s32.totalorder %s20, 0
    %p173 = por %p171, %p172
    %s175 = sadd.s32 %s174, 1
    %p178 = scmp.eq.s32.totalorder %s14, 1
    %p179 = scmp.ne.s32.totalorder %s174, %s176
    %p180 = scmp.eq.s32.totalorder %s14, 0
    %p181 = por %p179, %p180
    %p182 = scmp.ne.s32.totalorder %s174, %s176
    %p183 = scmp.eq.s32.totalorder %s19, 1
    %p184 = por %p182, %p183
    %p185 = scmp.ne.s32.totalorder %s176, %s177
    %p186 = scmp.eq.s32.totalorder %s19, 0
    %p187 = por %p185, %p186
    %p188 = scmp.ne.s32.totalorder %s176, %s177
    %p189 = scmp.eq.s32.totalorder %s20, 1
    %p190 = por %p188, %p189
    %p192 = scmp.ne.s32.totalorder %s177, %s191
    %p193 = scmp.eq.s32.totalorder %s20, 0
    %p194 = por %p192, %p193
    %s195 = ssub.s32 %s14, %s21
    %p196 = scmp.eq.s32.totalorder %s195, 0
    %s198 = sadd.s32 %s197, 1
    %s199 = scalar_select %p196, %s197, %s198
    %p202 = pneg %p196
    %p203 = scmp.eq.s32.totalorder %s14, 1
    %p204 = por %p202, %p203
    %p205 = scmp.ne.s32.totalorder %s197, %s200
    %p206 = scmp.eq.s32.totalorder %s14, 0
    %p207 = por %p205, %p206
    %p208 = scmp.ne.s32.totalorder %s197, %s200
    %p209 = scmp.eq.s32.totalorder %s19, 1
    %p210 = por %p208, %p209
    %p211 = scmp.ne.s32.totalorder %s200, %s201
    %p212 = scmp.eq.s32.totalorder %s19, 0
    %p213 = por %p211, %p212
    %p214 = scmp.ne.s32.totalorder %s200, %s201
    %p215 = scmp.eq.s32.totalorder %s20, 1
    %p216 = por %p214, %p215
    %p218 = scmp.ne.s32.totalorder %s201, %s217
    %p219 = scmp.eq.s32.totalorder %s20, 0
    %p220 = por %p218, %p219
    %p221 = scmp.le.s32.totalorder 1, %s14
    %p222 = scmp.lt.s32.totalorder %s14, 3
    %p223 = pnand %p221, %p222
    %p224 = pneg %p223
    // Predicated region
    $region9: #{tpu_custom_call.1} parent=5 // pred_check
      _
    $region10: #{tpu_custom_call.1} parent=5 // pred_check_branch
      %226 = sbr.rel (%p223) target = $region12
    $region11: #{tpu_custom_call.1} parent=5 // pred_region
      %s227 = ssub.s32 %s14, 1
      // Predicated region
      $region13: #{tpu_custom_call.1} parent=11 // pred_check
        %p228 = pneg %p61
      $region14: #{tpu_custom_call.1} parent=11 // pred_check_branch
        %230 = sbr.rel (%p228) target = $region16
      $region15: #{tpu_custom_call.1} parent=11 // pred_region
        _
      $region16: #{tpu_custom_call.1} parent=11 // pred_fallthru
        _
      // Predicated region
      $region17: #{tpu_custom_call.1} parent=11 // pred_check
        %p231 = pneg %p82
      $region18: #{tpu_custom_call.1} parent=11 // pred_check_branch
        %233 = sbr.rel (%p231) target = $region20
      $region19: #{tpu_custom_call.1} parent=11 // pred_region
        _
      $region20: #{tpu_custom_call.1} parent=11 // pred_fallthru
        _
      // Predicated region
      $region21: #{tpu_custom_call.1} parent=11 // pred_check
        %p234 = pneg %p103
      $region22: #{tpu_custom_call.1} parent=11 // pred_check_branch
        %236 = sbr.rel (%p234) target = $region24
      $region23: #{tpu_custom_call.1} parent=11 // pred_region
        _
      $region24: #{tpu_custom_call.1} parent=11 // pred_fallthru
        _
      // Predicated region
      $region25: #{tpu_custom_call.1} parent=11 // pred_check
        %p237 = pneg %p124
      $region26: #{tpu_custom_call.1} parent=11 // pred_check_branch
        %239 = sbr.rel (%p237) target = $region28
      $region27: #{tpu_custom_call.1} parent=11 // pred_region
        _
      $region28: #{tpu_custom_call.1} parent=11 // pred_fallthru
        _
      // Predicated region
      $region29: #{tpu_custom_call.1} parent=11 // pred_check
        %p240 = pneg %p145
      $region30: #{tpu_custom_call.1} parent=11 // pred_check_branch
        %242 = sbr.rel (%p240) target = $region32
      $region31: #{tpu_custom_call.1} parent=11 // pred_region
        _
      $region32: #{tpu_custom_call.1} parent=11 // pred_fallthru
        _
      // Predicated region
      $region33: #{tpu_custom_call.1} parent=11 // pred_check
        %p243 = pneg %p166
      $region34: #{tpu_custom_call.1} parent=11 // pred_check_branch
        %245 = sbr.rel (%p243) target = $region36
      $region35: #{tpu_custom_call.1} parent=11 // pred_region
        _
      $region36: #{tpu_custom_call.1} parent=11 // pred_fallthru
        _
      // Predicated region
      $region37: #{tpu_custom_call.1} parent=11 // pred_check
        %p246 = pneg %p187
      $region38: #{tpu_custom_call.1} parent=11 // pred_check_branch
        %248 = sbr.rel (%p246) target = $region40
      $region39: #{tpu_custom_call.1} parent=11 // pred_region
        _
      $region40: #{tpu_custom_call.1} parent=11 // pred_fallthru
        _
    $region12: #{tpu_custom_call.1} parent=5 // pred_fallthru
      _
    %p249 = scmp.lt.s32.totalorder %s14, 2
    // Predicated region
    $region41: #{tpu_custom_call.1} parent=5 // pred_check
      %p250 = pneg %p249
    $region42: #{tpu_custom_call.1} parent=5 // pred_check_branch
      %252 = sbr.rel (%p250) target = $region44
    $region43: #{tpu_custom_call.1} parent=5 // pred_region
      // Predicated region
      $region45: #{tpu_custom_call.1} parent=43 // pred_check
        %p253 = pneg %p34
      $region46: #{tpu_custom_call.1} parent=43 // pred_check_branch
        %255 = sbr.rel (%p253) target = $region48
      $region47: #{tpu_custom_call.1} parent=43 // pred_region
        %p256 = scmp.lt.s32.totalorder %s14, 1
        %s257 = scalar_select %p256, %s14, 1
        %s258 = smul.addr %s257, 32
        %s259 = smul.addr %s258, 4
        %s260 = scalar_lea.vmem %s0, %s259
      $region48: #{tpu_custom_call.1} parent=43 // pred_fallthru
        _
    $region44: #{tpu_custom_call.1} parent=5 // pred_fallthru
      _
    %p261 = scmp.le.s32.totalorder 1, %s14
    %p262 = scmp.lt.s32.totalorder %s14, 3
    %p263 = pnand %p261, %p262
    %p264 = pneg %p263
    // Predicated region
    $region49: #{tpu_custom_call.1} parent=5 // pred_check
      _
    $region50: #{tpu_custom_call.1} parent=5 // pred_check_branch
      %266 = sbr.rel (%p263) target = $region52
    $region51: #{tpu_custom_call.1} parent=5 // pred_region
      %s267 = ssub.s32 %s14, 1
      %p268 = scmp.lt.s32.totalorder %s19, 1
      %s269 = scalar_select %p268, %s19, 1
      %s270 = smul.addr %s269, 32
      %s271 = smul.addr %s270, 4
      %s272 = scalar_lea.vmem %s0, %s271
      %p273 = pneg %p40
      %p274 = pneg %p37
      %p275 = pneg %p61
      %p276 = pneg %p58
      %p277 = pneg %p82
      %p278 = pneg %p79
      %p279 = pneg %p103
      %p280 = pneg %p100
      %p281 = pneg %p124
      %p282 = pneg %p121
      %p283 = pneg %p145
      %p284 = pneg %p142
      %p285 = pneg %p166
      %p286 = pneg %p163
      %p287 = pneg %p187
      %p288 = pneg %p184
      %p289 = pneg %p213
      %p290 = pneg %p210
      %p291 = scmp.lt.s32.totalorder %s19, 1
      %s292 = scalar_select %p291, %s19, 1
      %s293 = smul.addr %s292, 32
      %s294 = smul.addr %s293, 8
      %s295 = scalar_lea.vmem %s8, %s294
      %p296 = scmp.lt.s32.totalorder %s19, 1
      %s297 = scalar_select %p296, %s19, 1
      %s298 = smul.addr %s297, 32
      %s299 = smul.addr %s298, 4
      %s300 = scalar_lea.vmem %s0, %s299
      %p301 = scmp.lt.s32.totalorder %s19, 1
      %s302 = scalar_select %p301, %s19, 1
      %s303 = smul.addr %s302, 32
      %s304 = smul.addr %s303, 8
      %s305 = scalar_lea.vmem %s8, %s304
      %vm307 = vcmask 27648
      %308 = vst.msk [vmem:[#allocation2] sm:$0xf] %vm307, 0
      %309 = vst.msk [vmem:[#allocation2 + $0x4] sm:$0xf] %vm307, 0
      %vm310 = vcmask 24576
      %311 = vst.msk [vmem:[#allocation2 + $0x8] sm:$0x1] %vm310, 0
      %s312 = scalar_lea.vmem [#allocation2], 204
      %313 = vst.msk [vmem:[%s312] sm:$0xf] %vm307, 0
      %314 = vst.msk [vmem:[%s312 + $0x4] sm:$0xf] %vm307, 0
      %315 = vst.msk [vmem:[%s312 + $0x8] sm:$0x1] %vm310, 0
      %vm316 = vcmask 24576
      %vm317 = vsmask.f32 256
      %vm318 = vmand %vm316, %vm317
      %v319 = vld [vmem:[#allocation2] sm:$0x1]
      %v320 = vsel %vm318, 0, %v319
      %321 = vst [vmem:[#allocation2] sm:$0x1] %v320
      %v322 = vld [vmem:[#allocation2 + $0xc] sm:$0x1]
      %v323 = vsel %vm318, 0, %v322
      %324 = vst [vmem:[#allocation2 + $0xc] sm:$0x1] %v323
      %v325 = vld [vmem:[#allocation2 + $0x18] sm:$0x1]
      %v326 = vsel %vm318, 0, %v325
      %327 = vst [vmem:[#allocation2 + $0x18] sm:$0x1] %v326
      %v328 = vld [vmem:[#allocation2 + $0x24] sm:$0x1]
      %v329 = vsel %vm318, 0, %v328
      %330 = vst [vmem:[#allocation2 + $0x24] sm:$0x1] %v329
      %v331 = vld [vmem:[#allocation2 + $0x30] sm:$0x1]
      %v332 = vsel %vm318, 0, %v331
      %333 = vst [vmem:[#allocation2 + $0x30] sm:$0x1] %v332
      %v334 = vld [vmem:[#allocation2 + $0x3c] sm:$0x1]
      %v335 = vsel %vm318, 0, %v334
      %336 = vst [vmem:[#allocation2 + $0x3c] sm:$0x1] %v335
      %v337 = vld [vmem:[#allocation2 + $0x48] sm:$0x1]
      %v338 = vsel %vm318, 0, %v337
      %339 = vst [vmem:[#allocation2 + $0x48] sm:$0x1] %v338
      %v340 = vld [vmem:[#allocation2 + $0x54] sm:$0x1]
      %v341 = vsel %vm318, 0, %v340
      %342 = vst [vmem:[#allocation2 + $0x54] sm:$0x1] %v341
      %v343 = vld [vmem:[#allocation2 + $0x60] sm:$0x1]
      %v344 = vsel %vm318, 0, %v343
      %345 = vst [vmem:[#allocation2 + $0x60] sm:$0x1] %v344
      %v346 = vld [vmem:[#allocation2 + $0x6c] sm:$0x1]
      %v347 = vsel %vm318, 0, %v346
      %348 = vst [vmem:[#allocation2 + $0x6c] sm:$0x1] %v347
      %v349 = vld [vmem:[#allocation2 + $0x78] sm:$0x1]
      %v350 = vsel %vm318, 0, %v349
      %351 = vst [vmem:[#allocation2 + $0x78] sm:$0x1] %v350
      %v352 = vld [vmem:[#allocation2 + $0x84] sm:$0x1]
      %v353 = vsel %vm318, 0, %v352
      %354 = vst [vmem:[#allocation2 + $0x84] sm:$0x1] %v353
      %v355 = vld [vmem:[#allocation2 + $0x90] sm:$0x1]
      %v356 = vsel %vm318, 0, %v355
      %357 = vst [vmem:[#allocation2 + $0x90] sm:$0x1] %v356
      %v358 = vld [vmem:[#allocation2 + $0x9c] sm:$0x1]
      %v359 = vsel %vm318, 0, %v358
      %360 = vst [vmem:[#allocation2 + $0x9c] sm:$0x1] %v359
      %v361 = vld [vmem:[#allocation2 + $0xa8] sm:$0x1]
      %v362 = vsel %vm318, 0, %v361
      %363 = vst [vmem:[#allocation2 + $0xa8] sm:$0x1] %v362
      %v364 = vld [vmem:[#allocation2 + $0xb4] sm:$0x1]
      %v365 = vsel %vm318, 0, %v364
      %366 = vst [vmem:[#allocation2 + $0xb4] sm:$0x1] %v365
      %v367 = vld [vmem:[#allocation2 + $0xc0] sm:$0x1]
      %v368 = vsel %vm318, 0, %v367
      %369 = vst [vmem:[#allocation2 + $0xc0] sm:$0x1] %v368
      %v370 = vld [vmem:[#allocation2 + $0xcc] sm:$0x1]
      %v371 = vsel %vm318, 0, %v370
      %372 = vst [vmem:[#allocation2 + $0xcc] sm:$0x1] %v371
      %vm373 = vsmask.f32 7938
      %vm374 = vmand %vm316, %vm373
      %v375 = vld [vmem:[#allocation2 + $0x8] sm:$0x1]
      %v376 = vsel %vm374, 0, %v375
      %377 = vst [vmem:[#allocation2 + $0x8] sm:$0x1] %v376
      %v378 = vld [vmem:[#allocation2 + $0x14] sm:$0x1]
      %v379 = vsel %vm374, 0, %v378
      %380 = vst [vmem:[#allocation2 + $0x14] sm:$0x1] %v379
      %v381 = vld [vmem:[#allocation2 + $0x20] sm:$0x1]
      %v382 = vsel %vm374, 0, %v381
      %383 = vst [vmem:[#allocation2 + $0x20] sm:$0x1] %v382
      %v384 = vld [vmem:[#allocation2 + $0x2c] sm:$0x1]
      %v385 = vsel %vm374, 0, %v384
      %386 = vst [vmem:[#allocation2 + $0x2c] sm:$0x1] %v385
      %v387 = vld [vmem:[#allocation2 + $0x38] sm:$0x1]
      %v388 = vsel %vm374, 0, %v387
      %389 = vst [vmem:[#allocation2 + $0x38] sm:$0x1] %v388
      %v390 = vld [vmem:[#allocation2 + $0x44] sm:$0x1]
      %v391 = vsel %vm374, 0, %v390
      %392 = vst [vmem:[#allocation2 + $0x44] sm:$0x1] %v391
      %v393 = vld [vmem:[#allocation2 + $0x50] sm:$0x1]
      %v394 = vsel %vm374, 0, %v393
      %395 = vst [vmem:[#allocation2 + $0x50] sm:$0x1] %v394
      %v396 = vld [vmem:[#allocation2 + $0x5c] sm:$0x1]
      %v397 = vsel %vm374, 0, %v396
      %398 = vst [vmem:[#allocation2 + $0x5c] sm:$0x1] %v397
      %v399 = vld [vmem:[#allocation2 + $0x68] sm:$0x1]
      %v400 = vsel %vm374, 0, %v399
      %401 = vst [vmem:[#allocation2 + $0x68] sm:$0x1] %v400
      %v402 = vld [vmem:[#allocation2 + $0x74] sm:$0x1]
      %v403 = vsel %vm374, 0, %v402
      %404 = vst [vmem:[#allocation2 + $0x74] sm:$0x1] %v403
      %v405 = vld [vmem:[#allocation2 + $0x80] sm:$0x1]
      %v406 = vsel %vm374, 0, %v405
      %407 = vst [vmem:[#allocation2 + $0x80] sm:$0x1] %v406
      %v408 = vld [vmem:[#allocation2 + $0x8c] sm:$0x1]
      %v409 = vsel %vm374, 0, %v408
      %410 = vst [vmem:[#allocation2 + $0x8c] sm:$0x1] %v409
      %v411 = vld [vmem:[#allocation2 + $0x98] sm:$0x1]
      %v412 = vsel %vm374, 0, %v411
      %413 = vst [vmem:[#allocation2 + $0x98] sm:$0x1] %v412
      %v414 = vld [vmem:[#allocation2 + $0xa4] sm:$0x1]
      %v415 = vsel %vm374, 0, %v414
      %416 = vst [vmem:[#allocation2 + $0xa4] sm:$0x1] %v415
      %v417 = vld [vmem:[#allocation2 + $0xb0] sm:$0x1]
      %v418 = vsel %vm374, 0, %v417
      %419 = vst [vmem:[#allocation2 + $0xb0] sm:$0x1] %v418
      %v420 = vld [vmem:[#allocation2 + $0xbc] sm:$0x1]
      %v421 = vsel %vm374, 0, %v420
      %422 = vst [vmem:[#allocation2 + $0xbc] sm:$0x1] %v421
      %v423 = vld [vmem:[#allocation2 + $0xc8] sm:$0x1]
      %v424 = vsel %vm374, 0, %v423
      %425 = vst [vmem:[#allocation2 + $0xc8] sm:$0x1] %v424
      %v426 = vld [vmem:[#allocation2 + $0xd4] sm:$0x1]
      %v427 = vsel %vm374, 0, %v426
      %428 = vst [vmem:[#allocation2 + $0xd4] sm:$0x1] %v427
      %v429 = vld [vmem:[%s300] sm:$0xf]
      %v430 = vld [vmem:[%s300 + $0x4] sm:$0xf]
      %v431 = vld [vmem:[%s300 + $0x8] sm:$0xf]
      %v432 = vld [vmem:[%s300 + $0xc] sm:$0xf]
      %v433 = vld [vmem:[%s300 + $0x10] sm:$0xf]
      %v434 = vld [vmem:[%s300 + $0x14] sm:$0xf]
      %v435 = vld [vmem:[%s300 + $0x18] sm:$0xf]
      %v436 = vld [vmem:[%s300 + $0x1c] sm:$0xf]
      %v437 = vld [vmem:[%s300 + $0x20] sm:$0xf]
      %v438 = vld [vmem:[%s300 + $0x24] sm:$0xf]
      %v439 = vld [vmem:[%s300 + $0x28] sm:$0xf]
      %v440 = vld [vmem:[%s300 + $0x2c] sm:$0xf]
      %v441 = vld [vmem:[%s300 + $0x30] sm:$0xf]
      %v442 = vld [vmem:[%s300 + $0x34] sm:$0xf]
      %v443 = vld [vmem:[%s300 + $0x38] sm:$0xf]
      %v444 = vld [vmem:[%s300 + $0x3c] sm:$0xf]
      %v445 = vld [vmem:[%s300 + $0x40] sm:$0xf]
      %v446 = vld [vmem:[%s300 + $0x44] sm:$0xf]
      %v447 = vld [vmem:[%s300 + $0x48] sm:$0xf]
      %v448 = vld [vmem:[%s300 + $0x4c] sm:$0xf]
      %v449 = vld [vmem:[%s300 + $0x50] sm:$0xf]
      %v450 = vld [vmem:[%s300 + $0x54] sm:$0xf]
      %v451 = vld [vmem:[%s300 + $0x58] sm:$0xf]
      %v452 = vld [vmem:[%s300 + $0x5c] sm:$0xf]
      %v453 = vld [vmem:[%s300 + $0x60] sm:$0xf]
      %v454 = vld [vmem:[%s300 + $0x64] sm:$0xf]
      %v455 = vld [vmem:[%s300 + $0x68] sm:$0xf]
      %v456 = vld [vmem:[%s300 + $0x6c] sm:$0xf]
      %v457 = vld [vmem:[%s300 + $0x70] sm:$0xf]
      %v458 = vld [vmem:[%s300 + $0x74] sm:$0xf]
      %v459 = vld [vmem:[%s300 + $0x78] sm:$0xf]
      %v460 = vld [vmem:[%s300 + $0x7c] sm:$0xf]
      %vm461 = vsmask.f32 4368
      %vm462 = vmor %vm317, %vm461
      %v464 = vshrl.u32 %v429, 16
      %v466 = vrot.slane %v464, 7
      %v467 = vshll.u32 %v429, 16
      %v469 = vor.u32 %v466, %v467
      %v470 = vrot.slane %v466, 4
      %v472 = vshrl.u32 %v430, 16
      %v474 = vrot.slane %v472, 7
      %v475 = vshll.u32 %v430, 16
      %v477 = vor.u32 %v474, %v475
      %v478 = vsel %vm462, %v470, %v477
      %v479 = vrot.slane %v474, 4
      %v481 = vshrl.u32 %v431, 16
      %v483 = vrot.slane %v481, 7
      %v484 = vshll.u32 %v431, 16
      %v486 = vor.u32 %v483, %v484
      %v487 = vrot.slane %v483, 4
      %v489 = vshrl.u32 %v432, 16
      %v491 = vrot.slane %v489, 7
      %v492 = vshll.u32 %v432, 16
      %v494 = vor.u32 %v491, %v492
      %v495 = vsel %vm462, %v487, %v494
      %v496 = vrot.slane %v491, 4
      %v498 = vshrl.u32 %v433, 16
      %v500 = vrot.slane %v498, 7
      %v501 = vshll.u32 %v433, 16
      %v503 = vor.u32 %v500, %v501
      %v504 = vrot.slane %v500, 4
      %v506 = vshrl.u32 %v434, 16
      %v508 = vrot.slane %v506, 7
      %v509 = vshll.u32 %v434, 16
      %v511 = vor.u32 %v508, %v509
      %v512 = vsel %vm462, %v504, %v511
      %v513 = vrot.slane %v508, 4
      %v515 = vshrl.u32 %v435, 16
      %v517 = vrot.slane %v515, 7
      %v518 = vshll.u32 %v435, 16
      %v520 = vor.u32 %v517, %v518
      %v521 = vrot.slane %v517, 4
      %v523 = vshrl.u32 %v436, 16
      %v525 = vrot.slane %v523, 7
      %v526 = vshll.u32 %v436, 16
      %v528 = vor.u32 %v525, %v526
      %v529 = vsel %vm462, %v521, %v528
      %v530 = vrot.slane %v525, 4
      %v532 = vshrl.u32 %v437, 16
      %v534 = vrot.slane %v532, 7
      %v535 = vshll.u32 %v437, 16
      %v537 = vor.u32 %v534, %v535
      %v538 = vrot.slane %v534, 4
      %v540 = vshrl.u32 %v438, 16
      %v542 = vrot.slane %v540, 7
      %v543 = vshll.u32 %v438, 16
      %v545 = vor.u32 %v542, %v543
      %v546 = vsel %vm462, %v538, %v545
      %v547 = vrot.slane %v542, 4
      %v549 = vshrl.u32 %v439, 16
      %v551 = vrot.slane %v549, 7
      %v552 = vshll.u32 %v439, 16
      %v554 = vor.u32 %v551, %v552
      %v555 = vrot.slane %v551, 4
      %v557 = vshrl.u32 %v440, 16
      %v559 = vrot.slane %v557, 7
      %v560 = vshll.u32 %v440, 16
      %v562 = vor.u32 %v559, %v560
      %v563 = vsel %vm462, %v555, %v562
      %v564 = vrot.slane %v559, 4
      %v566 = vshrl.u32 %v441, 16
      %v568 = vrot.slane %v566, 7
      %v569 = vshll.u32 %v441, 16
      %v571 = vor.u32 %v568, %v569
      %v572 = vrot.slane %v568, 4
      %v574 = vshrl.u32 %v442, 16
      %v576 = vrot.slane %v574, 7
      %v577 = vshll.u32 %v442, 16
      %v579 = vor.u32 %v576, %v577
      %v580 = vsel %vm462, %v572, %v579
      %v581 = vrot.slane %v576, 4
      %v583 = vshrl.u32 %v443, 16
      %v585 = vrot.slane %v583, 7
      %v586 = vshll.u32 %v443, 16
      %v588 = vor.u32 %v585, %v586
      %v589 = vrot.slane %v585, 4
      %v591 = vshrl.u32 %v444, 16
      %v593 = vrot.slane %v591, 7
      %v594 = vshll.u32 %v444, 16
      %v596 = vor.u32 %v593, %v594
      %v597 = vsel %vm462, %v589, %v596
      %v598 = vrot.slane %v593, 4
      %v600 = vshrl.u32 %v445, 16
      %v602 = vrot.slane %v600, 7
      %v603 = vshll.u32 %v445, 16
      %v605 = vor.u32 %v602, %v603
      %v606 = vrot.slane %v602, 4
      %v608 = vshrl.u32 %v446, 16
      %v610 = vrot.slane %v608, 7
      %v611 = vshll.u32 %v446, 16
      %v613 = vor.u32 %v610, %v611
      %v614 = vsel %vm462, %v606, %v613
      %v615 = vrot.slane %v610, 4
      %v617 = vshrl.u32 %v447, 16
      %v619 = vrot.slane %v617, 7
      %v620 = vshll.u32 %v447, 16
      %v622 = vor.u32 %v619, %v620
      %v623 = vrot.slane %v619, 4
      %v625 = vshrl.u32 %v448, 16
      %v627 = vrot.slane %v625, 7
      %v628 = vshll.u32 %v448, 16
      %v630 = vor.u32 %v627, %v628
      %v631 = vsel %vm462, %v623, %v630
      %v632 = vrot.slane %v627, 4
      %v634 = vshrl.u32 %v449, 16
      %v636 = vrot.slane %v634, 7
      %v637 = vshll.u32 %v449, 16
      %v639 = vor.u32 %v636, %v637
      %v640 = vrot.slane %v636, 4
      %v642 = vshrl.u32 %v450, 16
      %v644 = vrot.slane %v642, 7
      %v645 = vshll.u32 %v450, 16
      %v647 = vor.u32 %v644, %v645
      %v648 = vsel %vm462, %v640, %v647
      %v649 = vrot.slane %v644, 4
      %v651 = vshrl.u32 %v451, 16
      %v653 = vrot.slane %v651, 7
      %v654 = vshll.u32 %v451, 16
      %v656 = vor.u32 %v653, %v654
      %v657 = vrot.slane %v653, 4
      %v659 = vshrl.u32 %v452, 16
      %v661 = vrot.slane %v659, 7
      %v662 = vshll.u32 %v452, 16
      %v664 = vor.u32 %v661, %v662
      %v665 = vsel %vm462, %v657, %v664
      %v666 = vrot.slane %v661, 4
      %v668 = vshrl.u32 %v453, 16
      %v670 = vrot.slane %v668, 7
      %v671 = vshll.u32 %v453, 16
      %v673 = vor.u32 %v670, %v671
      %v674 = vrot.slane %v670, 4
      %v676 = vshrl.u32 %v454, 16
      %v678 = vrot.slane %v676, 7
      %v679 = vshll.u32 %v454, 16
      %v681 = vor.u32 %v678, %v679
      %v682 = vsel %vm462, %v674, %v681
      %v683 = vrot.slane %v678, 4
      %v685 = vshrl.u32 %v455, 16
      %v687 = vrot.slane %v685, 7
      %v688 = vshll.u32 %v455, 16
      %v690 = vor.u32 %v687, %v688
      %v691 = vrot.slane %v687, 4
      %v693 = vshrl.u32 %v456, 16
      %v695 = vrot.slane %v693, 7
      %v696 = vshll.u32 %v456, 16
      %v698 = vor.u32 %v695, %v696
      %v699 = vsel %vm462, %v691, %v698
      %v700 = vrot.slane %v695, 4
      %v702 = vshrl.u32 %v457, 16
      %v704 = vrot.slane %v702, 7
      %v705 = vshll.u32 %v457, 16
      %v707 = vor.u32 %v704, %v705
      %v708 = vrot.slane %v704, 4
      %v710 = vshrl.u32 %v458, 16
      %v712 = vrot.slane %v710, 7
      %v713 = vshll.u32 %v458, 16
      %v715 = vor.u32 %v712, %v713
      %v716 = vsel %vm462, %v708, %v715
      %v717 = vrot.slane %v712, 4
      %v719 = vshrl.u32 %v459, 16
      %v721 = vrot.slane %v719, 7
      %v722 = vshll.u32 %v459, 16
      %v724 = vor.u32 %v721, %v722
      %v725 = vrot.slane %v721, 4
      %v727 = vshrl.u32 %v460, 16
      %v729 = vrot.slane %v727, 7
      %v730 = vshll.u32 %v460, 16
      %v732 = vor.u32 %v729, %v730
      %v733 = vsel %vm462, %v725, %v732
      %v734 = vrot.slane %v729, 4
      %s783 = scalar_lea.vmem [#allocation2], 12
      %vm784 = vcmask 27648
      %vm785 = vmand %vm784, %vm373
      %v786 = vld [vmem:[%s783] sm:$0xf]
      %v787 = vsel %vm785, %v469, %v786
      %788 = vst [vmem:[%s783] sm:$0xf] %v787
      %789 = vst.msk [vmem:[%s783 + $0x4] sm:$0xf] %vm307, %v478
      %v790 = vld [vmem:[%s783 + $0x8] sm:$0x1]
      %v791 = vsel %vm318, %v479, %v790
      %792 = vst [vmem:[%s783 + $0x8] sm:$0x1] %v791
      %v793 = vld [vmem:[%s783 + $0xc] sm:$0xf]
      %v794 = vsel %vm785, %v486, %v793
      %795 = vst [vmem:[%s783 + $0xc] sm:$0xf] %v794
      %796 = vst.msk [vmem:[%s783 + $0x10] sm:$0xf] %vm307, %v495
      %v797 = vld [vmem:[%s783 + $0x14] sm:$0x1]
      %v798 = vsel %vm318, %v496, %v797
      %799 = vst [vmem:[%s783 + $0x14] sm:$0x1] %v798
      %v800 = vld [vmem:[%s783 + $0x18] sm:$0xf]
      %v801 = vsel %vm785, %v503, %v800
      %802 = vst [vmem:[%s783 + $0x18] sm:$0xf] %v801
      %803 = vst.msk [vmem:[%s783 + $0x1c] sm:$0xf] %vm307, %v512
      %v804 = vld [vmem:[%s783 + $0x20] sm:$0x1]
      %v805 = vsel %vm318, %v513, %v804
      %806 = vst [vmem:[%s783 + $0x20] sm:$0x1] %v805
      %v807 = vld [vmem:[%s783 + $0x24] sm:$0xf]
      %v808 = vsel %vm785, %v520, %v807
      %809 = vst [vmem:[%s783 + $0x24] sm:$0xf] %v808
      %810 = vst.msk [vmem:[%s783 + $0x28] sm:$0xf] %vm307, %v529
      %v811 = vld [vmem:[%s783 + $0x2c] sm:$0x1]
      %v812 = vsel %vm318, %v530, %v811
      %813 = vst [vmem:[%s783 + $0x2c] sm:$0x1] %v812
      %v814 = vld [vmem:[%s783 + $0x30] sm:$0xf]
      %v815 = vsel %vm785, %v537, %v814
      %816 = vst [vmem:[%s783 + $0x30] sm:$0xf] %v815
      %817 = vst.msk [vmem:[%s783 + $0x34] sm:$0xf] %vm307, %v546
      %v818 = vld [vmem:[%s783 + $0x38] sm:$0x1]
      %v819 = vsel %vm318, %v547, %v818
      %820 = vst [vmem:[%s783 + $0x38] sm:$0x1] %v819
      %v821 = vld [vmem:[%s783 + $0x3c] sm:$0xf]
      %v822 = vsel %vm785, %v554, %v821
      %823 = vst [vmem:[%s783 + $0x3c] sm:$0xf] %v822
      %824 = vst.msk [vmem:[%s783 + $0x40] sm:$0xf] %vm307, %v563
      %v825 = vld [vmem:[%s783 + $0x44] sm:$0x1]
      %v826 = vsel %vm318, %v564, %v825
      %827 = vst [vmem:[%s783 + $0x44] sm:$0x1] %v826
      %v828 = vld [vmem:[%s783 + $0x48] sm:$0xf]
      %v829 = vsel %vm785, %v571, %v828
      %830 = vst [vmem:[%s783 + $0x48] sm:$0xf] %v829
      %831 = vst.msk [vmem:[%s783 + $0x4c] sm:$0xf] %vm307, %v580
      %v832 = vld [vmem:[%s783 + $0x50] sm:$0x1]
      %v833 = vsel %vm318, %v581, %v832
      %834 = vst [vmem:[%s783 + $0x50] sm:$0x1] %v833
      %v835 = vld [vmem:[%s783 + $0x54] sm:$0xf]
      %v836 = vsel %vm785, %v588, %v835
      %837 = vst [vmem:[%s783 + $0x54] sm:$0xf] %v836
      %838 = vst.msk [vmem:[%s783 + $0x58] sm:$0xf] %vm307, %v597
      %v839 = vld [vmem:[%s783 + $0x5c] sm:$0x1]
      %v840 = vsel %vm318, %v598, %v839
      %841 = vst [vmem:[%s783 + $0x5c] sm:$0x1] %v840
      %v842 = vld [vmem:[%s783 + $0x60] sm:$0xf]
      %v843 = vsel %vm785, %v605, %v842
      %844 = vst [vmem:[%s783 + $0x60] sm:$0xf] %v843
      %845 = vst.msk [vmem:[%s783 + $0x64] sm:$0xf] %vm307, %v614
      %v846 = vld [vmem:[%s783 + $0x68] sm:$0x1]
      %v847 = vsel %vm318, %v615, %v846
      %848 = vst [vmem:[%s783 + $0x68] sm:$0x1] %v847
      %v849 = vld [vmem:[%s783 + $0x6c] sm:$0xf]
      %v850 = vsel %vm785, %v622, %v849
      %851 = vst [vmem:[%s783 + $0x6c] sm:$0xf] %v850
      %852 = vst.msk [vmem:[%s783 + $0x70] sm:$0xf] %vm307, %v631
      %v853 = vld [vmem:[%s783 + $0x74] sm:$0x1]
      %v854 = vsel %vm318, %v632, %v853
      %855 = vst [vmem:[%s783 + $0x74] sm:$0x1] %v854
      %v856 = vld [vmem:[%s783 + $0x78] sm:$0xf]
      %v857 = vsel %vm785, %v639, %v856
      %858 = vst [vmem:[%s783 + $0x78] sm:$0xf] %v857
      %859 = vst.msk [vmem:[%s783 + $0x7c] sm:$0xf] %vm307, %v648
      %v860 = vld [vmem:[%s783 + $0x80] sm:$0x1]
      %v861 = vsel %vm318, %v649, %v860
      %862 = vst [vmem:[%s783 + $0x80] sm:$0x1] %v861
      %v863 = vld [vmem:[%s783 + $0x84] sm:$0xf]
      %v864 = vsel %vm785, %v656, %v863
      %865 = vst [vmem:[%s783 + $0x84] sm:$0xf] %v864
      %866 = vst.msk [vmem:[%s783 + $0x88] sm:$0xf] %vm307, %v665
      %v867 = vld [vmem:[%s783 + $0x8c] sm:$0x1]
      %v868 = vsel %vm318, %v666, %v867
      %869 = vst [vmem:[%s783 + $0x8c] sm:$0x1] %v868
      %v870 = vld [vmem:[%s783 + $0x90] sm:$0xf]
      %v871 = vsel %vm785, %v673, %v870
      %872 = vst [vmem:[%s783 + $0x90] sm:$0xf] %v871
      %873 = vst.msk [vmem:[%s783 + $0x94] sm:$0xf] %vm307, %v682
      %v874 = vld [vmem:[%s783 + $0x98] sm:$0x1]
      %v875 = vsel %vm318, %v683, %v874
      %876 = vst [vmem:[%s783 + $0x98] sm:$0x1] %v875
      %v877 = vld [vmem:[%s783 + $0x9c] sm:$0xf]
      %v878 = vsel %vm785, %v690, %v877
      %879 = vst [vmem:[%s783 + $0x9c] sm:$0xf] %v878
      %880 = vst.msk [vmem:[%s783 + $0xa0] sm:$0xf] %vm307, %v699
      %v881 = vld [vmem:[%s783 + $0xa4] sm:$0x1]
      %v882 = vsel %vm318, %v700, %v881
      %883 = vst [vmem:[%s783 + $0xa4] sm:$0x1] %v882
      %v884 = vld [vmem:[%s783 + $0xa8] sm:$0xf]
      %v885 = vsel %vm785, %v707, %v884
      %886 = vst [vmem:[%s783 + $0xa8] sm:$0xf] %v885
      %887 = vst.msk [vmem:[%s783 + $0xac] sm:$0xf] %vm307, %v716
      %v888 = vld [vmem:[%s783 + $0xb0] sm:$0x1]
      %v889 = vsel %vm318, %v717, %v888
      %890 = vst [vmem:[%s783 + $0xb0] sm:$0x1] %v889
      %v891 = vld [vmem:[%s783 + $0xb4] sm:$0xf]
      %v892 = vsel %vm785, %v724, %v891
      %893 = vst [vmem:[%s783 + $0xb4] sm:$0xf] %v892
      %894 = vst.msk [vmem:[%s783 + $0xb8] sm:$0xf] %vm307, %v733
      %v895 = vld [vmem:[%s783 + $0xbc] sm:$0x1]
      %v896 = vsel %vm318, %v734, %v895
      %897 = vst [vmem:[%s783 + $0xbc] sm:$0x1] %v896
      %v898 = vld [vmem:[#allocation2] sm:$0xf]
      %v899 = vld [vmem:[#allocation2 + $0x4] sm:$0xf]
      %v900 = vld [vmem:[#allocation2 + $0x8] sm:$0x1]
      %v901 = vld [vmem:[#allocation2 + $0xc] sm:$0xf]
      %v902 = vld [vmem:[#allocation2 + $0x10] sm:$0xf]
      %v903 = vld [vmem:[#allocation2 + $0x14] sm:$0x1]
      %v904 = vld [vmem:[#allocation2 + $0x18] sm:$0xf]
      %v905 = vld [vmem:[#allocation2 + $0x1c] sm:$0xf]
      %v906 = vld [vmem:[#allocation2 + $0x20] sm:$0x1]
      %v907 = vld [vmem:[#allocation2 + $0x24] sm:$0xf]
      %v908 = vld [vmem:[#allocation2 + $0x28] sm:$0xf]
      %v909 = vld [vmem:[#allocation2 + $0x2c] sm:$0x1]
      %v910 = vld [vmem:[#allocation2 + $0x30] sm:$0xf]
      %v911 = vld [vmem:[#allocation2 + $0x34] sm:$0xf]
      %v912 = vld [vmem:[#allocation2 + $0x38] sm:$0x1]
      %v913 = vld [vmem:[#allocation2 + $0x3c] sm:$0xf]
      %v914 = vld [vmem:[#allocation2 + $0x40] sm:$0xf]
      %v915 = vld [vmem:[#allocation2 + $0x44] sm:$0x1]
      %v916 = vld [vmem:[#allocation2 + $0x48] sm:$0xf]
      %v917 = vld [vmem:[#allocation2 + $0x4c] sm:$0xf]
      %v918 = vld [vmem:[#allocation2 + $0x50] sm:$0x1]
      %v919 = vld [vmem:[#allocation2 + $0x54] sm:$0xf]
      %v920 = vld [vmem:[#allocation2 + $0x58] sm:$0xf]
      %v921 = vld [vmem:[#allocation2 + $0x5c] sm:$0x1]
      %v922 = vld [vmem:[#allocation2 + $0x60] sm:$0xf]
      %v923 = vld [vmem:[#allocation2 + $0x64] sm:$0xf]
      %v924 = vld [vmem:[#allocation2 + $0x68] sm:$0x1]
      %v925 = vld [vmem:[#allocation2 + $0x6c] sm:$0xf]
      %v926 = vld [vmem:[#allocation2 + $0x70] sm:$0xf]
      %v927 = vld [vmem:[#allocation2 + $0x74] sm:$0x1]
      %v928 = vld [vmem:[#allocation2 + $0x78] sm:$0xf]
      %v929 = vld [vmem:[#allocation2 + $0x7c] sm:$0xf]
      %v930 = vld [vmem:[#allocation2 + $0x80] sm:$0x1]
      %v931 = vld [vmem:[#allocation2 + $0x84] sm:$0xf]
      %v932 = vld [vmem:[#allocation2 + $0x88] sm:$0xf]
      %v933 = vld [vmem:[#allocation2 + $0x8c] sm:$0x1]
      %v934 = vld [vmem:[#allocation2 + $0x90] sm:$0xf]
      %v935 = vld [vmem:[#allocation2 + $0x94] sm:$0xf]
      %v936 = vld [vmem:[#allocation2 + $0x98] sm:$0x1]
      %v937 = vld [vmem:[#allocation2 + $0x9c] sm:$0xf]
      %v938 = vld [vmem:[#allocation2 + $0xa0] sm:$0xf]
      %v939 = vld [vmem:[#allocation2 + $0xa4] sm:$0x1]
      %v940 = vld [vmem:[#allocation2 + $0xa8] sm:$0xf]
      %v941 = vld [vmem:[#allocation2 + $0xac] sm:$0xf]
      %v942 = vld [vmem:[#allocation2 + $0xb0] sm:$0x1]
      %v943 = vld [vmem:[#allocation2 + $0xb4] sm:$0xf]
      %v944 = vld [vmem:[#allocation2 + $0xb8] sm:$0xf]
      %v945 = vld [vmem:[#allocation2 + $0xbc] sm:$0x1]
      %v946 = vld [vmem:[#allocation2 + $0xc0] sm:$0xf]
      %v947 = vld [vmem:[#allocation2 + $0xc4] sm:$0xf]
      %v948 = vld [vmem:[#allocation2 + $0xc8] sm:$0x1]
      %v949 = vld [vmem:[#allocation2 + $0xcc] sm:$0xf]
      %v950 = vld [vmem:[#allocation2 + $0xd0] sm:$0xf]
      %v951 = vld [vmem:[#allocation2 + $0xd4] sm:$0x1]
      %vm952 = vsmask.f32 3328
      %vm953 = vsmask.f32 7440
      %vm954 = vmor %vm952, %vm953
      %v956 = vshrl.u32 %v898, 16
      %v958 = vrot.slane %v956, 4
      %v959 = vshll.u32 %v898, 16
      %v961 = vrot.slane %v959, 5
      %v962 = vor.u32 %v958, %v961
      %v963 = vrot.slane %v962, 4
      %v965 = vshll.u32 %v899, 16
      %v967 = vrot.slane %v965, 5
      %v968 = vsel %vm954, %v963, %v967
      %v969 = vshrl.u32 %v899, 16
      %v971 = vrot.slane %v969, 4
      %v972 = vor.u32 %v971, %v967
      %v973 = vrot.slane %v972, 4
      %v975 = vshll.u32 %v900, 16
      %v977 = vrot.slane %v975, 5
      %v978 = vsel %vm954, %v973, %v977
      %v980 = vshrl.u32 %v901, 16
      %v982 = vrot.slane %v980, 4
      %v983 = vshll.u32 %v901, 16
      %v985 = vrot.slane %v983, 5
      %v986 = vor.u32 %v982, %v985
      %v987 = vrot.slane %v986, 4
      %v989 = vshll.u32 %v902, 16
      %v991 = vrot.slane %v989, 5
      %v992 = vsel %vm954, %v987, %v991
      %v993 = vshrl.u32 %v902, 16
      %v995 = vrot.slane %v993, 4
      %v996 = vor.u32 %v995, %v991
      %v997 = vrot.slane %v996, 4
      %v999 = vshll.u32 %v903, 16
      %v1001 = vrot.slane %v999, 5
      %v1002 = vsel %vm954, %v997, %v1001
      %v1004 = vshrl.u32 %v904, 16
      %v1006 = vrot.slane %v1004, 4
      %v1007 = vshll.u32 %v904, 16
      %v1009 = vrot.slane %v1007, 5
      %v1010 = vor.u32 %v1006, %v1009
      %v1011 = vrot.slane %v1010, 4
      %v1013 = vshll.u32 %v905, 16
      %v1015 = vrot.slane %v1013, 5
      %v1016 = vsel %vm954, %v1011, %v1015
      %v1017 = vshrl.u32 %v905, 16
      %v1019 = vrot.slane %v1017, 4
      %v1020 = vor.u32 %v1019, %v1015
      %v1021 = vrot.slane %v1020, 4
      %v1023 = vshll.u32 %v906, 16
      %v1025 = vrot.slane %v1023, 5
      %v1026 = vsel %vm954, %v1021, %v1025
      %v1028 = vshrl.u32 %v907, 16
      %v1030 = vrot.slane %v1028, 4
      %v1031 = vshll.u32 %v907, 16
      %v1033 = vrot.slane %v1031, 5
      %v1034 = vor.u32 %v1030, %v1033
      %v1035 = vrot.slane %v1034, 4
      %v1037 = vshll.u32 %v908, 16
      %v1039 = vrot.slane %v1037, 5
      %v1040 = vsel %vm954, %v1035, %v1039
      %v1041 = vshrl.u32 %v908, 16
      %v1043 = vrot.slane %v1041, 4
      %v1044 = vor.u32 %v1043, %v1039
      %v1045 = vrot.slane %v1044, 4
      %v1047 = vshll.u32 %v909, 16
      %v1049 = vrot.slane %v1047, 5
      %v1050 = vsel %vm954, %v1045, %v1049
      %v1052 = vshrl.u32 %v910, 16
      %v1054 = vrot.slane %v1052, 4
      %v1055 = vshll.u32 %v910, 16
      %v1057 = vrot.slane %v1055, 5
      %v1058 = vor.u32 %v1054, %v1057
      %v1059 = vrot.slane %v1058, 4
      %v1061 = vshll.u32 %v911, 16
      %v1063 = vrot.slane %v1061, 5
      %v1064 = vsel %vm954, %v1059, %v1063
      %v1065 = vshrl.u32 %v911, 16
      %v1067 = vrot.slane %v1065, 4
      %v1068 = vor.u32 %v1067, %v1063
      %v1069 = vrot.slane %v1068, 4
      %v1071 = vshll.u32 %v912, 16
      %v1073 = vrot.slane %v1071, 5
      %v1074 = vsel %vm954, %v1069, %v1073
      %v1076 = vshrl.u32 %v913, 16
      %v1078 = vrot.slane %v1076, 4
      %v1079 = vshll.u32 %v913, 16
      %v1081 = vrot.slane %v1079, 5
      %v1082 = vor.u32 %v1078, %v1081
      %v1083 = vrot.slane %v1082, 4
      %v1085 = vshll.u32 %v914, 16
      %v1087 = vrot.slane %v1085, 5
      %v1088 = vsel %vm954, %v1083, %v1087
      %v1089 = vshrl.u32 %v914, 16
      %v1091 = vrot.slane %v1089, 4
      %v1092 = vor.u32 %v1091, %v1087
      %v1093 = vrot.slane %v1092, 4
      %v1095 = vshll.u32 %v915, 16
      %v1097 = vrot.slane %v1095, 5
      %v1098 = vsel %vm954, %v1093, %v1097
      %v1100 = vshrl.u32 %v916, 16
      %v1102 = vrot.slane %v1100, 4
      %v1103 = vshll.u32 %v916, 16
      %v1105 = vrot.slane %v1103, 5
      %v1106 = vor.u32 %v1102, %v1105
      %v1107 = vrot.slane %v1106, 4
      %v1109 = vshll.u32 %v917, 16
      %v1111 = vrot.slane %v1109, 5
      %v1112 = vsel %vm954, %v1107, %v1111
      %v1113 = vshrl.u32 %v917, 16
      %v1115 = vrot.slane %v1113, 4
      %v1116 = vor.u32 %v1115, %v1111
      %v1117 = vrot.slane %v1116, 4
      %v1119 = vshll.u32 %v918, 16
      %v1121 = vrot.slane %v1119, 5
      %v1122 = vsel %vm954, %v1117, %v1121
      %v1124 = vshrl.u32 %v919, 16
      %v1126 = vrot.slane %v1124, 4
      %v1127 = vshll.u32 %v919, 16
      %v1129 = vrot.slane %v1127, 5
      %v1130 = vor.u32 %v1126, %v1129
      %v1131 = vrot.slane %v1130, 4
      %v1133 = vshll.u32 %v920, 16
      %v1135 = vrot.slane %v1133, 5
      %v1136 = vsel %vm954, %v1131, %v1135
      %v1137 = vshrl.u32 %v920, 16
      %v1139 = vrot.slane %v1137, 4
      %v1140 = vor.u32 %v1139, %v1135
      %v1141 = vrot.slane %v1140, 4
      %v1143 = vshll.u32 %v921, 16
      %v1145 = vrot.slane %v1143, 5
      %v1146 = vsel %vm954, %v1141, %v1145
      %v1148 = vshrl.u32 %v922, 16
      %v1150 = vrot.slane %v1148, 4
      %v1151 = vshll.u32 %v922, 16
      %v1153 = vrot.slane %v1151, 5
      %v1154 = vor.u32 %v1150, %v1153
      %v1155 = vrot.slane %v1154, 4
      %v1157 = vshll.u32 %v923, 16
      %v1159 = vrot.slane %v1157, 5
      %v1160 = vsel %vm954, %v1155, %v1159
      %v1161 = vshrl.u32 %v923, 16
      %v1163 = vrot.slane %v1161, 4
      %v1164 = vor.u32 %v1163, %v1159
      %v1165 = vrot.slane %v1164, 4
      %v1167 = vshll.u32 %v924, 16
      %v1169 = vrot.slane %v1167, 5
      %v1170 = vsel %vm954, %v1165, %v1169
      %v1172 = vshrl.u32 %v925, 16
      %v1174 = vrot.slane %v1172, 4
      %v1175 = vshll.u32 %v925, 16
      %v1177 = vrot.slane %v1175, 5
      %v1178 = vor.u32 %v1174, %v1177
      %v1179 = vrot.slane %v1178, 4
      %v1181 = vshll.u32 %v926, 16
      %v1183 = vrot.slane %v1181, 5
      %v1184 = vsel %vm954, %v1179, %v1183
      %v1185 = vshrl.u32 %v926, 16
      %v1187 = vrot.slane %v1185, 4
      %v1188 = vor.u32 %v1187, %v1183
      %v1189 = vrot.slane %v1188, 4
      %v1191 = vshll.u32 %v927, 16
      %v1193 = vrot.slane %v1191, 5
      %v1194 = vsel %vm954, %v1189, %v1193
      %v1196 = vshrl.u32 %v928, 16
      %v1198 = vrot.slane %v1196, 4
      %v1199 = vshll.u32 %v928, 16
      %v1201 = vrot.slane %v1199, 5
      %v1202 = vor.u32 %v1198, %v1201
      %v1203 = vrot.slane %v1202, 4
      %v1205 = vshll.u32 %v929, 16
      %v1207 = vrot.slane %v1205, 5
      %v1208 = vsel %vm954, %v1203, %v1207
      %v1209 = vshrl.u32 %v929, 16
      %v1211 = vrot.slane %v1209, 4
      %v1212 = vor.u32 %v1211, %v1207
      %v1213 = vrot.slane %v1212, 4
      %v1215 = vshll.u32 %v930, 16
      %v1217 = vrot.slane %v1215, 5
      %v1218 = vsel %vm954, %v1213, %v1217
      %v1220 = vshrl.u32 %v931, 16
      %v1222 = vrot.slane %v1220, 4
      %v1223 = vshll.u32 %v931, 16
      %v1225 = vrot.slane %v1223, 5
      %v1226 = vor.u32 %v1222, %v1225
      %v1227 = vrot.slane %v1226, 4
      %v1229 = vshll.u32 %v932, 16
      %v1231 = vrot.slane %v1229, 5
      %v1232 = vsel %vm954, %v1227, %v1231
      %v1233 = vshrl.u32 %v932, 16
      %v1235 = vrot.slane %v1233, 4
      %v1236 = vor.u32 %v1235, %v1231
      %v1237 = vrot.slane %v1236, 4
      %v1239 = vshll.u32 %v933, 16
      %v1241 = vrot.slane %v1239, 5
      %v1242 = vsel %vm954, %v1237, %v1241
      %v1244 = vshrl.u32 %v934, 16
      %v1246 = vrot.slane %v1244, 4
      %v1247 = vshll.u32 %v934, 16
      %v1249 = vrot.slane %v1247, 5
      %v1250 = vor.u32 %v1246, %v1249
      %v1251 = vrot.slane %v1250, 4
      %v1253 = vshll.u32 %v935, 16
      %v1255 = vrot.slane %v1253, 5
      %v1256 = vsel %vm954, %v1251, %v1255
      %v1257 = vshrl.u32 %v935, 16
      %v1259 = vrot.slane %v1257, 4
      %v1260 = vor.u32 %v1259, %v1255
      %v1261 = vrot.slane %v1260, 4
      %v1263 = vshll.u32 %v936, 16
      %v1265 = vrot.slane %v1263, 5
      %v1266 = vsel %vm954, %v1261, %v1265
      %v1268 = vshrl.u32 %v937, 16
      %v1270 = vrot.slane %v1268, 4
      %v1271 = vshll.u32 %v937, 16
      %v1273 = vrot.slane %v1271, 5
      %v1274 = vor.u32 %v1270, %v1273
      %v1275 = vrot.slane %v1274, 4
      %v1277 = vshll.u32 %v938, 16
      %v1279 = vrot.slane %v1277, 5
      %v1280 = vsel %vm954, %v1275, %v1279
      %v1281 = vshrl.u32 %v938, 16
      %v1283 = vrot.slane %v1281, 4
      %v1284 = vor.u32 %v1283, %v1279
      %v1285 = vrot.slane %v1284, 4
      %v1287 = vshll.u32 %v939, 16
      %v1289 = vrot.slane %v1287, 5
      %v1290 = vsel %vm954, %v1285, %v1289
      %v1292 = vshrl.u32 %v940, 16
      %v1294 = vrot.slane %v1292, 4
      %v1295 = vshll.u32 %v940, 16
      %v1297 = vrot.slane %v1295, 5
      %v1298 = vor.u32 %v1294, %v1297
      %v1299 = vrot.slane %v1298, 4
      %v1301 = vshll.u32 %v941, 16
      %v1303 = vrot.slane %v1301, 5
      %v1304 = vsel %vm954, %v1299, %v1303
      %v1305 = vshrl.u32 %v941, 16
      %v1307 = vrot.slane %v1305, 4
      %v1308 = vor.u32 %v1307, %v1303
      %v1309 = vrot.slane %v1308, 4
      %v1311 = vshll.u32 %v942, 16
      %v1313 = vrot.slane %v1311, 5
      %v1314 = vsel %vm954, %v1309, %v1313
      %v1316 = vshrl.u32 %v943, 16
      %v1318 = vrot.slane %v1316, 4
      %v1319 = vshll.u32 %v943, 16
      %v1321 = vrot.slane %v1319, 5
      %v1322 = vor.u32 %v1318, %v1321
      %v1323 = vrot.slane %v1322, 4
      %v1325 = vshll.u32 %v944, 16
      %v1327 = vrot.slane %v1325, 5
      %v1328 = vsel %vm954, %v1323, %v1327
      %v1329 = vshrl.u32 %v944, 16
      %v1331 = vrot.slane %v1329, 4
      %v1332 = vor.u32 %v1331, %v1327
      %v1333 = vrot.slane %v1332, 4
      %v1335 = vshll.u32 %v945, 16
      %v1337 = vrot.slane %v1335, 5
      %v1338 = vsel %vm954, %v1333, %v1337
      %vm1387 = vcmask 1042432
      %vm1388 = vcmask 1046532
      %vm1389 = vmor %vm1387, %vm1388
      %v1390 = vrot.slane %v898, 5
      %v1391 = vrot.slane %v1390, 4
      %v1392 = vrot.slane %v899, 5
      %v1393 = vsel %vm1389, %v1391, %v1392
      %v1394 = vrot.slane %v1392, 4
      %v1395 = vrot.slane %v900, 5
      %v1396 = vsel %vm1389, %v1394, %v1395
      %v1397 = vrot.slane %v901, 5
      %v1398 = vrot.slane %v1397, 4
      %v1399 = vrot.slane %v902, 5
      %v1400 = vsel %vm1389, %v1398, %v1399
      %v1401 = vrot.slane %v1399, 4
      %v1402 = vrot.slane %v903, 5
      %v1403 = vsel %vm1389, %v1401, %v1402
      %v1404 = vrot.slane %v904, 5
      %v1405 = vrot.slane %v1404, 4
      %v1406 = vrot.slane %v905, 5
      %v1407 = vsel %vm1389, %v1405, %v1406
      %v1408 = vrot.slane %v1406, 4
      %v1409 = vrot.slane %v906, 5
      %v1410 = vsel %vm1389, %v1408, %v1409
      %v1411 = vrot.slane %v907, 5
      %v1412 = vrot.slane %v1411, 4
      %v1413 = vrot.slane %v908, 5
      %v1414 = vsel %vm1389, %v1412, %v1413
      %v1415 = vrot.slane %v1413, 4
      %v1416 = vrot.slane %v909, 5
      %v1417 = vsel %vm1389, %v1415, %v1416
      %v1418 = vrot.slane %v910, 5
      %v1419 = vrot.slane %v1418, 4
      %v1420 = vrot.slane %v911, 5
      %v1421 = vsel %vm1389, %v1419, %v1420
      %v1422 = vrot.slane %v1420, 4
      %v1423 = vrot.slane %v912, 5
      %v1424 = vsel %vm1389, %v1422, %v1423
      %v1425 = vrot.slane %v913, 5
      %v1426 = vrot.slane %v1425, 4
      %v1427 = vrot.slane %v914, 5
      %v1428 = vsel %vm1389, %v1426, %v1427
      %v1429 = vrot.slane %v1427, 4
      %v1430 = vrot.slane %v915, 5
      %v1431 = vsel %vm1389, %v1429, %v1430
      %v1432 = vrot.slane %v916, 5
      %v1433 = vrot.slane %v1432, 4
      %v1434 = vrot.slane %v917, 5
      %v1435 = vsel %vm1389, %v1433, %v1434
      %v1436 = vrot.slane %v1434, 4
      %v1437 = vrot.slane %v918, 5
      %v1438 = vsel %vm1389, %v1436, %v1437
      %v1439 = vrot.slane %v919, 5
      %v1440 = vrot.slane %v1439, 4
      %v1441 = vrot.slane %v920, 5
      %v1442 = vsel %vm1389, %v1440, %v1441
      %v1443 = vrot.slane %v1441, 4
      %v1444 = vrot.slane %v921, 5
      %v1445 = vsel %vm1389, %v1443, %v1444
      %v1446 = vrot.slane %v922, 5
      %v1447 = vrot.slane %v1446, 4
      %v1448 = vrot.slane %v923, 5
      %v1449 = vsel %vm1389, %v1447, %v1448
      %v1450 = vrot.slane %v1448, 4
      %v1451 = vrot.slane %v924, 5
      %v1452 = vsel %vm1389, %v1450, %v1451
      %v1453 = vrot.slane %v925, 5
      %v1454 = vrot.slane %v1453, 4
      %v1455 = vrot.slane %v926, 5
      %v1456 = vsel %vm1389, %v1454, %v1455
      %v1457 = vrot.slane %v1455, 4
      %v1458 = vrot.slane %v927, 5
      %v1459 = vsel %vm1389, %v1457, %v1458
      %v1460 = vrot.slane %v928, 5
      %v1461 = vrot.slane %v1460, 4
      %v1462 = vrot.slane %v929, 5
      %v1463 = vsel %vm1389, %v1461, %v1462
      %v1464 = vrot.slane %v1462, 4
      %v1465 = vrot.slane %v930, 5
      %v1466 = vsel %vm1389, %v1464, %v1465
      %v1467 = vrot.slane %v931, 5
      %v1468 = vrot.slane %v1467, 4
      %v1469 = vrot.slane %v932, 5
      %v1470 = vsel %vm1389, %v1468, %v1469
      %v1471 = vrot.slane %v1469, 4
      %v1472 = vrot.slane %v933, 5
      %v1473 = vsel %vm1389, %v1471, %v1472
      %v1474 = vrot.slane %v934, 5
      %v1475 = vrot.slane %v1474, 4
      %v1476 = vrot.slane %v935, 5
      %v1477 = vsel %vm1389, %v1475, %v1476
      %v1478 = vrot.slane %v1476, 4
      %v1479 = vrot.slane %v936, 5
      %v1480 = vsel %vm1389, %v1478, %v1479
      %v1481 = vrot.slane %v937, 5
      %v1482 = vrot.slane %v1481, 4
      %v1483 = vrot.slane %v938, 5
      %v1484 = vsel %vm1389, %v1482, %v1483
      %v1485 = vrot.slane %v1483, 4
      %v1486 = vrot.slane %v939, 5
      %v1487 = vsel %vm1389, %v1485, %v1486
      %v1488 = vrot.slane %v940, 5
      %v1489 = vrot.slane %v1488, 4
      %v1490 = vrot.slane %v941, 5
      %v1491 = vsel %vm1389, %v1489, %v1490
      %v1492 = vrot.slane %v1490, 4
      %v1493 = vrot.slane %v942, 5
      %v1494 = vsel %vm1389, %v1492, %v1493
      %v1495 = vrot.slane %v943, 5
      %v1496 = vrot.slane %v1495, 4
      %v1497 = vrot.slane %v944, 5
      %v1498 = vsel %vm1389, %v1496, %v1497
      %v1499 = vrot.slane %v1497, 4
      %v1500 = vrot.slane %v945, 5
      %v1501 = vsel %vm1389, %v1499, %v1500
      %v1503 = vshrl.u32 %v946, 16
      %v1505 = vrot.slane %v1503, 4
      %v1506 = vshll.u32 %v946, 16
      %v1508 = vrot.slane %v1506, 5
      %v1509 = vor.u32 %v1505, %v1508
      %v1510 = vrot.slane %v1509, 4
      %v1512 = vshll.u32 %v947, 16
      %v1514 = vrot.slane %v1512, 5
      %v1515 = vsel %vm954, %v1510, %v1514
      %v1516 = vshrl.u32 %v947, 16
      %v1518 = vrot.slane %v1516, 4
      %v1519 = vor.u32 %v1518, %v1514
      %v1520 = vrot.slane %v1519, 4
      %v1522 = vshll.u32 %v948, 16
      %v1524 = vrot.slane %v1522, 5
      %v1525 = vsel %vm954, %v1520, %v1524
      %v1529 = vrot.slane %v946, 5
      %v1530 = vrot.slane %v1529, 4
      %v1531 = vrot.slane %v947, 5
      %v1532 = vsel %vm1389, %v1530, %v1531
      %v1533 = vrot.slane %v1531, 4
      %v1534 = vrot.slane %v948, 5
      %v1535 = vsel %vm1389, %v1533, %v1534
      %v1537 = vshrl.u32 %v949, 16
      %v1539 = vrot.slane %v1537, 4
      %v1540 = vshll.u32 %v949, 16
      %v1542 = vrot.slane %v1540, 5
      %v1543 = vor.u32 %v1539, %v1542
      %v1544 = vrot.slane %v1543, 4
      %v1546 = vshll.u32 %v950, 16
      %v1548 = vrot.slane %v1546, 5
      %v1549 = vsel %vm954, %v1544, %v1548
      %v1550 = vshrl.u32 %v950, 16
      %v1552 = vrot.slane %v1550, 4
      %v1553 = vor.u32 %v1552, %v1548
      %v1554 = vrot.slane %v1553, 4
      %v1556 = vshll.u32 %v951, 16
      %v1558 = vrot.slane %v1556, 5
      %v1559 = vsel %vm954, %v1554, %v1558
      %v1563 = vrot.slane %v949, 5
      %v1564 = vrot.slane %v1563, 4
      %v1565 = vrot.slane %v950, 5
      %v1566 = vsel %vm1389, %v1564, %v1565
      %v1567 = vrot.slane %v1565, 4
      %v1568 = vrot.slane %v951, 5
      %v1569 = vsel %vm1389, %v1567, %v1568
      %v1570 = vunpack.c.l.b16 %v898
      %v1571 = vunpack.c.l.b16 %v899
      %v1572 = vunpack.c.l.b16 %v901
      %v1573 = vunpack.c.l.b16 %v902
      %v1574 = vunpack.c.l.b16 %v904
      %v1575 = vunpack.c.l.b16 %v905
      %v1576 = vunpack.c.l.b16 %v907
      %v1577 = vunpack.c.l.b16 %v908
      %v1578 = vunpack.c.l.b16 %v910
      %v1579 = vunpack.c.l.b16 %v911
      %v1580 = vunpack.c.l.b16 %v913
      %v1581 = vunpack.c.l.b16 %v914
      %v1582 = vunpack.c.l.b16 %v916
      %v1583 = vunpack.c.l.b16 %v917
      %v1584 = vunpack.c.l.b16 %v919
      %v1585 = vunpack.c.l.b16 %v920
      %v1586 = vunpack.c.l.b16 %v922
      %v1587 = vunpack.c.l.b16 %v923
      %v1588 = vunpack.c.l.b16 %v925
      %v1589 = vunpack.c.l.b16 %v926
      %v1590 = vunpack.c.l.b16 %v928
      %v1591 = vunpack.c.l.b16 %v929
      %v1592 = vunpack.c.l.b16 %v931
      %v1593 = vunpack.c.l.b16 %v932
      %v1594 = vunpack.c.l.b16 %v934
      %v1595 = vunpack.c.l.b16 %v935
      %v1596 = vunpack.c.l.b16 %v937
      %v1597 = vunpack.c.l.b16 %v938
      %v1598 = vunpack.c.l.b16 %v940
      %v1599 = vunpack.c.l.b16 %v941
      %v1600 = vunpack.c.l.b16 %v943
      %v1601 = vunpack.c.l.b16 %v944
      %v1602 = vpack.c.b16 %v1571, %v1570
      %v1603 = vpack.c.b16 %v1573, %v1572
      %v1604 = vpack.c.b16 %v1575, %v1574
      %v1605 = vpack.c.b16 %v1577, %v1576
      %v1606 = vpack.c.b16 %v1579, %v1578
      %v1607 = vpack.c.b16 %v1581, %v1580
      %v1608 = vpack.c.b16 %v1583, %v1582
      %v1609 = vpack.c.b16 %v1585, %v1584
      %v1610 = vpack.c.b16 %v1587, %v1586
      %v1611 = vpack.c.b16 %v1589, %v1588
      %v1612 = vpack.c.b16 %v1591, %v1590
      %v1613 = vpack.c.b16 %v1593, %v1592
      %v1614 = vpack.c.b16 %v1595, %v1594
      %v1615 = vpack.c.b16 %v1597, %v1596
      %v1616 = vpack.c.b16 %v1599, %v1598
      %v1617 = vpack.c.b16 %v1601, %v1600
      %v1618 = vunpack.c.l.b16 %v968
      %v1619 = vunpack.c.l.b16 %v978
      %v1620 = vunpack.c.l.b16 %v992
      %v1621 = vunpack.c.l.b16 %v1002
      %v1622 = vunpack.c.l.b16 %v1016
      %v1623 = vunpack.c.l.b16 %v1026
      %v1624 = vunpack.c.l.b16 %v1040
      %v1625 = vunpack.c.l.b16 %v1050
      %v1626 = vunpack.c.l.b16 %v1064
      %v1627 = vunpack.c.l.b16 %v1074
      %v1628 = vunpack.c.l.b16 %v1088
      %v1629 = vunpack.c.l.b16 %v1098
      %v1630 = vunpack.c.l.b16 %v1112
      %v1631 = vunpack.c.l.b16 %v1122
      %v1632 = vunpack.c.l.b16 %v1136
      %v1633 = vunpack.c.l.b16 %v1146
      %v1634 = vunpack.c.l.b16 %v1160
      %v1635 = vunpack.c.l.b16 %v1170
      %v1636 = vunpack.c.l.b16 %v1184
      %v1637 = vunpack.c.l.b16 %v1194
      %v1638 = vunpack.c.l.b16 %v1208
      %v1639 = vunpack.c.l.b16 %v1218
      %v1640 = vunpack.c.l.b16 %v1232
      %v1641 = vunpack.c.l.b16 %v1242
      %v1642 = vunpack.c.l.b16 %v1256
      %v1643 = vunpack.c.l.b16 %v1266
      %v1644 = vunpack.c.l.b16 %v1280
      %v1645 = vunpack.c.l.b16 %v1290
      %v1646 = vunpack.c.l.b16 %v1304
      %v1647 = vunpack.c.l.b16 %v1314
      %v1648 = vunpack.c.l.b16 %v1328
      %v1649 = vunpack.c.l.b16 %v1338
      %v1650 = vpack.c.b16 %v1619, %v1618
      %v1651 = vpack.c.b16 %v1621, %v1620
      %v1652 = vpack.c.b16 %v1623, %v1622
      %v1653 = vpack.c.b16 %v1625, %v1624
      %v1654 = vpack.c.b16 %v1627, %v1626
      %v1655 = vpack.c.b16 %v1629, %v1628
      %v1656 = vpack.c.b16 %v1631, %v1630
      %v1657 = vpack.c.b16 %v1633, %v1632
      %v1658 = vpack.c.b16 %v1635, %v1634
      %v1659 = vpack.c.b16 %v1637, %v1636
      %v1660 = vpack.c.b16 %v1639, %v1638
      %v1661 = vpack.c.b16 %v1641, %v1640
      %v1662 = vpack.c.b16 %v1643, %v1642
      %v1663 = vpack.c.b16 %v1645, %v1644
      %v1664 = vpack.c.b16 %v1647, %v1646
      %v1665 = vpack.c.b16 %v1649, %v1648
      %1666 = vrot.lane.b32.xlu0 %v1650, 4
      %v1667 = vpop.permute.xlu0 %1666
      %1668 = vrot.lane.b32.xlu0 %v1651, 4
      %v1669 = vpop.permute.xlu0 %1668
      %1670 = vrot.lane.b32.xlu0 %v1652, 4
      %v1671 = vpop.permute.xlu0 %1670
      %1672 = vrot.lane.b32.xlu0 %v1653, 4
      %v1673 = vpop.permute.xlu0 %1672
      %1674 = vrot.lane.b32.xlu0 %v1654, 4
      %v1675 = vpop.permute.xlu0 %1674
      %1676 = vrot.lane.b32.xlu0 %v1655, 4
      %v1677 = vpop.permute.xlu0 %1676
      %1678 = vrot.lane.b32.xlu0 %v1656, 4
      %v1679 = vpop.permute.xlu0 %1678
      %1680 = vrot.lane.b32.xlu0 %v1657, 4
      %v1681 = vpop.permute.xlu0 %1680
      %1682 = vrot.lane.b32.xlu0 %v1658, 4
      %v1683 = vpop.permute.xlu0 %1682
      %1684 = vrot.lane.b32.xlu0 %v1659, 4
      %v1685 = vpop.permute.xlu0 %1684
      %1686 = vrot.lane.b32.xlu0 %v1660, 4
      %v1687 = vpop.permute.xlu0 %1686
      %1688 = vrot.lane.b32.xlu0 %v1661, 4
      %v1689 = vpop.permute.xlu0 %1688
      %1690 = vrot.lane.b32.xlu0 %v1662, 4
      %v1691 = vpop.permute.xlu0 %1690
      %1692 = vrot.lane.b32.xlu0 %v1663, 4
      %v1693 = vpop.permute.xlu0 %1692
      %1694 = vrot.lane.b32.xlu0 %v1664, 4
      %v1695 = vpop.permute.xlu0 %1694
      %1696 = vrot.lane.b32.xlu0 %v1665, 4
      %v1697 = vpop.permute.xlu0 %1696
      %v1698 = vunpack.c.l.b16 %v1393
      %v1699 = vunpack.c.l.b16 %v1396
      %v1700 = vunpack.c.l.b16 %v1400
      %v1701 = vunpack.c.l.b16 %v1403
      %v1702 = vunpack.c.l.b16 %v1407
      %v1703 = vunpack.c.l.b16 %v1410
      %v1704 = vunpack.c.l.b16 %v1414
      %v1705 = vunpack.c.l.b16 %v1417
      %v1706 = vunpack.c.l.b16 %v1421
      %v1707 = vunpack.c.l.b16 %v1424
      %v1708 = vunpack.c.l.b16 %v1428
      %v1709 = vunpack.c.l.b16 %v1431
      %v1710 = vunpack.c.l.b16 %v1435
      %v1711 = vunpack.c.l.b16 %v1438
      %v1712 = vunpack.c.l.b16 %v1442
      %v1713 = vunpack.c.l.b16 %v1445
      %v1714 = vunpack.c.l.b16 %v1449
      %v1715 = vunpack.c.l.b16 %v1452
      %v1716 = vunpack.c.l.b16 %v1456
      %v1717 = vunpack.c.l.b16 %v1459
      %v1718 = vunpack.c.l.b16 %v1463
      %v1719 = vunpack.c.l.b16 %v1466
      %v1720 = vunpack.c.l.b16 %v1470
      %v1721 = vunpack.c.l.b16 %v1473
      %v1722 = vunpack.c.l.b16 %v1477
      %v1723 = vunpack.c.l.b16 %v1480
      %v1724 = vunpack.c.l.b16 %v1484
      %v1725 = vunpack.c.l.b16 %v1487
      %v1726 = vunpack.c.l.b16 %v1491
      %v1727 = vunpack.c.l.b16 %v1494
      %v1728 = vunpack.c.l.b16 %v1498
      %v1729 = vunpack.c.l.b16 %v1501
      %v1730 = vpack.c.b16 %v1699, %v1698
      %v1731 = vpack.c.b16 %v1701, %v1700
      %v1732 = vpack.c.b16 %v1703, %v1702
      %v1733 = vpack.c.b16 %v1705, %v1704
      %v1734 = vpack.c.b16 %v1707, %v1706
      %v1735 = vpack.c.b16 %v1709, %v1708
      %v1736 = vpack.c.b16 %v1711, %v1710
      %v1737 = vpack.c.b16 %v1713, %v1712
      %v1738 = vpack.c.b16 %v1715, %v1714
      %v1739 = vpack.c.b16 %v1717, %v1716
      %v1740 = vpack.c.b16 %v1719, %v1718
      %v1741 = vpack.c.b16 %v1721, %v1720
      %v1742 = vpack.c.b16 %v1723, %v1722
      %v1743 = vpack.c.b16 %v1725, %v1724
      %v1744 = vpack.c.b16 %v1727, %v1726
      %v1745 = vpack.c.b16 %v1729, %v1728
      %1746 = vrot.lane.b32.xlu0 %v1730, 8
      %v1747 = vpop.permute.xlu0 %1746
      %1748 = vrot.lane.b32.xlu0 %v1731, 8
      %v1749 = vpop.permute.xlu0 %1748
      %1750 = vrot.lane.b32.xlu0 %v1732, 8
      %v1751 = vpop.permute.xlu0 %1750
      %1752 = vrot.lane.b32.xlu0 %v1733, 8
      %v1753 = vpop.permute.xlu0 %1752
      %1754 = vrot.lane.b32.xlu0 %v1734, 8
      %v1755 = vpop.permute.xlu0 %1754
      %1756 = vrot.lane.b32.xlu0 %v1735, 8
      %v1757 = vpop.permute.xlu0 %1756
      %1758 = vrot.lane.b32.xlu0 %v1736, 8
      %v1759 = vpop.permute.xlu0 %1758
      %1760 = vrot.lane.b32.xlu0 %v1737, 8
      %v1761 = vpop.permute.xlu0 %1760
      %1762 = vrot.lane.b32.xlu0 %v1738, 8
      %v1763 = vpop.permute.xlu0 %1762
      %1764 = vrot.lane.b32.xlu0 %v1739, 8
      %v1765 = vpop.permute.xlu0 %1764
      %1766 = vrot.lane.b32.xlu0 %v1740, 8
      %v1767 = vpop.permute.xlu0 %1766
      %1768 = vrot.lane.b32.xlu0 %v1741, 8
      %v1769 = vpop.permute.xlu0 %1768
      %1770 = vrot.lane.b32.xlu0 %v1742, 8
      %v1771 = vpop.permute.xlu0 %1770
      %1772 = vrot.lane.b32.xlu0 %v1743, 8
      %v1773 = vpop.permute.xlu0 %1772
      %1774 = vrot.lane.b32.xlu0 %v1744, 8
      %v1775 = vpop.permute.xlu0 %1774
      %1776 = vrot.lane.b32.xlu0 %v1745, 8
      %v1777 = vpop.permute.xlu0 %1776
      %v1778 = vunpack.c.l.b16 %v946
      %v1779 = vunpack.c.l.b16 %v947
      %v1780 = vpack.c.b16 %v1779, %v1778
      %1781 = vrot.lane.b32.xlu0 %v1603, 12
      %v1782 = vpop.permute.xlu0 %1781
      %1783 = vrot.lane.b32.xlu0 %v1604, 12
      %v1784 = vpop.permute.xlu0 %1783
      %1785 = vrot.lane.b32.xlu0 %v1605, 12
      %v1786 = vpop.permute.xlu0 %1785
      %1787 = vrot.lane.b32.xlu0 %v1606, 12
      %v1788 = vpop.permute.xlu0 %1787
      %1789 = vrot.lane.b32.xlu0 %v1607, 12
      %v1790 = vpop.permute.xlu0 %1789
      %1791 = vrot.lane.b32.xlu0 %v1608, 12
      %v1792 = vpop.permute.xlu0 %1791
      %1793 = vrot.lane.b32.xlu0 %v1609, 12
      %v1794 = vpop.permute.xlu0 %1793
      %1795 = vrot.lane.b32.xlu0 %v1610, 12
      %v1796 = vpop.permute.xlu0 %1795
      %1797 = vrot.lane.b32.xlu0 %v1611, 12
      %v1798 = vpop.permute.xlu0 %1797
      %1799 = vrot.lane.b32.xlu0 %v1612, 12
      %v1800 = vpop.permute.xlu0 %1799
      %1801 = vrot.lane.b32.xlu0 %v1613, 12
      %v1802 = vpop.permute.xlu0 %1801
      %1803 = vrot.lane.b32.xlu0 %v1614, 12
      %v1804 = vpop.permute.xlu0 %1803
      %1805 = vrot.lane.b32.xlu0 %v1615, 12
      %v1806 = vpop.permute.xlu0 %1805
      %1807 = vrot.lane.b32.xlu0 %v1616, 12
      %v1808 = vpop.permute.xlu0 %1807
      %1809 = vrot.lane.b32.xlu0 %v1617, 12
      %v1810 = vpop.permute.xlu0 %1809
      %1811 = vrot.lane.b32.xlu0 %v1780, 12
      %v1812 = vpop.permute.xlu0 %1811
      %v1813 = vunpack.c.l.b16 %v1515
      %v1814 = vunpack.c.l.b16 %v1525
      %v1815 = vpack.c.b16 %v1814, %v1813
      %1816 = vrot.lane.b32.xlu0 %v1651, 16
      %v1817 = vpop.permute.xlu0 %1816
      %1818 = vrot.lane.b32.xlu0 %v1652, 16
      %v1819 = vpop.permute.xlu0 %1818
      %1820 = vrot.lane.b32.xlu0 %v1653, 16
      %v1821 = vpop.permute.xlu0 %1820
      %1822 = vrot.lane.b32.xlu0 %v1654, 16
      %v1823 = vpop.permute.xlu0 %1822
      %1824 = vrot.lane.b32.xlu0 %v1655, 16
      %v1825 = vpop.permute.xlu0 %1824
      %1826 = vrot.lane.b32.xlu0 %v1656, 16
      %v1827 = vpop.permute.xlu0 %1826
      %1828 = vrot.lane.b32.xlu0 %v1657, 16
      %v1829 = vpop.permute.xlu0 %1828
      %1830 = vrot.lane.b32.xlu0 %v1658, 16
      %v1831 = vpop.permute.xlu0 %1830
      %1832 = vrot.lane.b32.xlu0 %v1659, 16
      %v1833 = vpop.permute.xlu0 %1832
      %1834 = vrot.lane.b32.xlu0 %v1660, 16
      %v1835 = vpop.permute.xlu0 %1834
      %1836 = vrot.lane.b32.xlu0 %v1661, 16
      %v1837 = vpop.permute.xlu0 %1836
      %1838 = vrot.lane.b32.xlu0 %v1662, 16
      %v1839 = vpop.permute.xlu0 %1838
      %1840 = vrot.lane.b32.xlu0 %v1663, 16
      %v1841 = vpop.permute.xlu0 %1840
      %1842 = vrot.lane.b32.xlu0 %v1664, 16
      %v1843 = vpop.permute.xlu0 %1842
      %1844 = vrot.lane.b32.xlu0 %v1665, 16
      %v1845 = vpop.permute.xlu0 %1844
      %1846 = vrot.lane.b32.xlu0 %v1815, 16
      %v1847 = vpop.permute.xlu0 %1846
      %v1848 = vunpack.c.l.b16 %v1532
      %v1849 = vunpack.c.l.b16 %v1535
      %v1850 = vpack.c.b16 %v1849, %v1848
      %1851 = vrot.lane.b32.xlu0 %v1731, 20
      %v1852 = vpop.permute.xlu0 %1851
      %1853 = vrot.lane.b32.xlu0 %v1732, 20
      %v1854 = vpop.permute.xlu0 %1853
      %1855 = vrot.lane.b32.xlu0 %v1733, 20
      %v1856 = vpop.permute.xlu0 %1855
      %1857 = vrot.lane.b32.xlu0 %v1734, 20
      %v1858 = vpop.permute.xlu0 %1857
      %1859 = vrot.lane.b32.xlu0 %v1735, 20
      %v1860 = vpop.permute.xlu0 %1859
      %1861 = vrot.lane.b32.xlu0 %v1736, 20
      %v1862 = vpop.permute.xlu0 %1861
      %1863 = vrot.lane.b32.xlu0 %v1737, 20
      %v1864 = vpop.permute.xlu0 %1863
      %1865 = vrot.lane.b32.xlu0 %v1738, 20
      %v1866 = vpop.permute.xlu0 %1865
      %1867 = vrot.lane.b32.xlu0 %v1739, 20
      %v1868 = vpop.permute.xlu0 %1867
      %1869 = vrot.lane.b32.xlu0 %v1740, 20
      %v1870 = vpop.permute.xlu0 %1869
      %1871 = vrot.lane.b32.xlu0 %v1741, 20
      %v1872 = vpop.permute.xlu0 %1871
      %1873 = vrot.lane.b32.xlu0 %v1742, 20
      %v1874 = vpop.permute.xlu0 %1873
      %1875 = vrot.lane.b32.xlu0 %v1743, 20
      %v1876 = vpop.permute.xlu0 %1875
      %1877 = vrot.lane.b32.xlu0 %v1744, 20
      %v1878 = vpop.permute.xlu0 %1877
      %1879 = vrot.lane.b32.xlu0 %v1745, 20
      %v1880 = vpop.permute.xlu0 %1879
      %1881 = vrot.lane.b32.xlu0 %v1850, 20
      %v1882 = vpop.permute.xlu0 %1881
      %v1883 = vunpack.c.l.b16 %v949
      %v1884 = vunpack.c.l.b16 %v950
      %v1885 = vpack.c.b16 %v1884, %v1883
      %1886 = vrot.lane.b32.xlu0 %v1604, 24
      %v1887 = vpop.permute.xlu0 %1886
      %1888 = vrot.lane.b32.xlu0 %v1605, 24
      %v1889 = vpop.permute.xlu0 %1888
      %1890 = vrot.lane.b32.xlu0 %v1606, 24
      %v1891 = vpop.permute.xlu0 %1890
      %1892 = vrot.lane.b32.xlu0 %v1607, 24
      %v1893 = vpop.permute.xlu0 %1892
      %1894 = vrot.lane.b32.xlu0 %v1608, 24
      %v1895 = vpop.permute.xlu0 %1894
      %1896 = vrot.lane.b32.xlu0 %v1609, 24
      %v1897 = vpop.permute.xlu0 %1896
      %1898 = vrot.lane.b32.xlu0 %v1610, 24
      %v1899 = vpop.permute.xlu0 %1898
      %1900 = vrot.lane.b32.xlu0 %v1611, 24
      %v1901 = vpop.permute.xlu0 %1900
      %1902 = vrot.lane.b32.xlu0 %v1612, 24
      %v1903 = vpop.permute.xlu0 %1902
      %1904 = vrot.lane.b32.xlu0 %v1613, 24
      %v1905 = vpop.permute.xlu0 %1904
      %1906 = vrot.lane.b32.xlu0 %v1614, 24
      %v1907 = vpop.permute.xlu0 %1906
      %1908 = vrot.lane.b32.xlu0 %v1615, 24
      %v1909 = vpop.permute.xlu0 %1908
      %1910 = vrot.lane.b32.xlu0 %v1616, 24
      %v1911 = vpop.permute.xlu0 %1910
      %1912 = vrot.lane.b32.xlu0 %v1617, 24
      %v1913 = vpop.permute.xlu0 %1912
      %1914 = vrot.lane.b32.xlu0 %v1780, 24
      %v1915 = vpop.permute.xlu0 %1914
      %1916 = vrot.lane.b32.xlu0 %v1885, 24
      %v1917 = vpop.permute.xlu0 %1916
      %v1918 = vunpack.c.l.b16 %v1549
      %v1919 = vunpack.c.l.b16 %v1559
      %v1920 = vpack.c.b16 %v1919, %v1918
      %1921 = vrot.lane.b32.xlu0 %v1652, 28
      %v1922 = vpop.permute.xlu0 %1921
      %1923 = vrot.lane.b32.xlu0 %v1653, 28
      %v1924 = vpop.permute.xlu0 %1923
      %1925 = vrot.lane.b32.xlu0 %v1654, 28
      %v1926 = vpop.permute.xlu0 %1925
      %1927 = vrot.lane.b32.xlu0 %v1655, 28
      %v1928 = vpop.permute.xlu0 %1927
      %1929 = vrot.lane.b32.xlu0 %v1656, 28
      %v1930 = vpop.permute.xlu0 %1929
      %1931 = vrot.lane.b32.xlu0 %v1657, 28
      %v1932 = vpop.permute.xlu0 %1931
      %1933 = vrot.lane.b32.xlu0 %v1658, 28
      %v1934 = vpop.permute.xlu0 %1933
      %1935 = vrot.lane.b32.xlu0 %v1659, 28
      %v1936 = vpop.permute.xlu0 %1935
      %1937 = vrot.lane.b32.xlu0 %v1660, 28
      %v1938 = vpop.permute.xlu0 %1937
      %1939 = vrot.lane.b32.xlu0 %v1661, 28
      %v1940 = vpop.permute.xlu0 %1939
      %1941 = vrot.lane.b32.xlu0 %v1662, 28
      %v1942 = vpop.permute.xlu0 %1941
      %1943 = vrot.lane.b32.xlu0 %v1663, 28
      %v1944 = vpop.permute.xlu0 %1943
      %1945 = vrot.lane.b32.xlu0 %v1664, 28
      %v1946 = vpop.permute.xlu0 %1945
      %1947 = vrot.lane.b32.xlu0 %v1665, 28
      %v1948 = vpop.permute.xlu0 %1947
      %1949 = vrot.lane.b32.xlu0 %v1815, 28
      %v1950 = vpop.permute.xlu0 %1949
      %1951 = vrot.lane.b32.xlu0 %v1920, 28
      %v1952 = vpop.permute.xlu0 %1951
      %v1953 = vunpack.c.l.b16 %v1566
      %v1954 = vunpack.c.l.b16 %v1569
      %v1955 = vpack.c.b16 %v1954, %v1953
      %1956 = vrot.lane.b32.xlu0 %v1732, 32
      %v1957 = vpop.permute.xlu0 %1956
      %1958 = vrot.lane.b32.xlu0 %v1733, 32
      %v1959 = vpop.permute.xlu0 %1958
      %1960 = vrot.lane.b32.xlu0 %v1734, 32
      %v1961 = vpop.permute.xlu0 %1960
      %1962 = vrot.lane.b32.xlu0 %v1735, 32
      %v1963 = vpop.permute.xlu0 %1962
      %1964 = vrot.lane.b32.xlu0 %v1736, 32
      %v1965 = vpop.permute.xlu0 %1964
      %1966 = vrot.lane.b32.xlu0 %v1737, 32
      %v1967 = vpop.permute.xlu0 %1966
      %1968 = vrot.lane.b32.xlu0 %v1738, 32
      %v1969 = vpop.permute.xlu0 %1968
      %1970 = vrot.lane.b32.xlu0 %v1739, 32
      %v1971 = vpop.permute.xlu0 %1970
      %1972 = vrot.lane.b32.xlu0 %v1740, 32
      %v1973 = vpop.permute.xlu0 %1972
      %1974 = vrot.lane.b32.xlu0 %v1741, 32
      %v1975 = vpop.permute.xlu0 %1974
      %1976 = vrot.lane.b32.xlu0 %v1742, 32
      %v1977 = vpop.permute.xlu0 %1976
      %1978 = vrot.lane.b32.xlu0 %v1743, 32
      %v1979 = vpop.permute.xlu0 %1978
      %1980 = vrot.lane.b32.xlu0 %v1744, 32
      %v1981 = vpop.permute.xlu0 %1980
      %1982 = vrot.lane.b32.xlu0 %v1745, 32
      %v1983 = vpop.permute.xlu0 %1982
      %1984 = vrot.lane.b32.xlu0 %v1850, 32
      %v1985 = vpop.permute.xlu0 %1984
      %1986 = vrot.lane.b32.xlu0 %v1955, 32
      %v1987 = vpop.permute.xlu0 %1986
      %vm1988 = vcmask 31744
      %v1991 = vsel %vm1988, %v1602, %v1667
      %v1994 = vsel %vm1988, %v1603, %v1669
      %v1997 = vsel %vm1988, %v1604, %v1671
      %v2000 = vsel %vm1988, %v1605, %v1673
      %v2003 = vsel %vm1988, %v1606, %v1675
      %v2006 = vsel %vm1988, %v1607, %v1677
      %v2009 = vsel %vm1988, %v1608, %v1679
      %v2012 = vsel %vm1988, %v1609, %v1681
      %v2015 = vsel %vm1988, %v1610, %v1683
      %v2018 = vsel %vm1988, %v1611, %v1685
      %v2021 = vsel %vm1988, %v1612, %v1687
      %v2024 = vsel %vm1988, %v1613, %v1689
      %v2027 = vsel %vm1988, %v1614, %v1691
      %v2030 = vsel %vm1988, %v1615, %v1693
      %v2033 = vsel %vm1988, %v1616, %v1695
      %v2036 = vsel %vm1988, %v1617, %v1697
      %vm2037 = vcmask 64512
      %v2039 = vsel %vm2037, %v1991, %v1747
      %v2041 = vsel %vm2037, %v1994, %v1749
      %v2043 = vsel %vm2037, %v1997, %v1751
      %v2045 = vsel %vm2037, %v2000, %v1753
      %v2047 = vsel %vm2037, %v2003, %v1755
      %v2049 = vsel %vm2037, %v2006, %v1757
      %v2051 = vsel %vm2037, %v2009, %v1759
      %v2053 = vsel %vm2037, %v2012, %v1761
      %v2055 = vsel %vm2037, %v2015, %v1763
      %v2057 = vsel %vm2037, %v2018, %v1765
      %v2059 = vsel %vm2037, %v2021, %v1767
      %v2061 = vsel %vm2037, %v2024, %v1769
      %v2063 = vsel %vm2037, %v2027, %v1771
      %v2065 = vsel %vm2037, %v2030, %v1773
      %v2067 = vsel %vm2037, %v2033, %v1775
      %v2069 = vsel %vm2037, %v2036, %v1777
      %vm2070 = vcmask 97280
      %v2072 = vsel %vm2070, %v2039, %v1782
      %v2074 = vsel %vm2070, %v2041, %v1784
      %v2076 = vsel %vm2070, %v2043, %v1786
      %v2078 = vsel %vm2070, %v2045, %v1788
      %v2080 = vsel %vm2070, %v2047, %v1790
      %v2082 = vsel %vm2070, %v2049, %v1792
      %v2084 = vsel %vm2070, %v2051, %v1794
      %v2086 = vsel %vm2070, %v2053, %v1796
      %v2088 = vsel %vm2070, %v2055, %v1798
      %v2090 = vsel %vm2070, %v2057, %v1800
      %v2092 = vsel %vm2070, %v2059, %v1802
      %v2094 = vsel %vm2070, %v2061, %v1804
      %v2096 = vsel %vm2070, %v2063, %v1806
      %v2098 = vsel %vm2070, %v2065, %v1808
      %v2100 = vsel %vm2070, %v2067, %v1810
      %v2102 = vsel %vm2070, %v2069, %v1812
      %vm2103 = vcmask 130048
      %v2105 = vsel %vm2103, %v2072, %v1817
      %v2107 = vsel %vm2103, %v2074, %v1819
      %v2109 = vsel %vm2103, %v2076, %v1821
      %v2111 = vsel %vm2103, %v2078, %v1823
      %v2113 = vsel %vm2103, %v2080, %v1825
      %v2115 = vsel %vm2103, %v2082, %v1827
      %v2117 = vsel %vm2103, %v2084, %v1829
      %v2119 = vsel %vm2103, %v2086, %v1831
      %v2121 = vsel %vm2103, %v2088, %v1833
      %v2123 = vsel %vm2103, %v2090, %v1835
      %v2125 = vsel %vm2103, %v2092, %v1837
      %v2127 = vsel %vm2103, %v2094, %v1839
      %v2129 = vsel %vm2103, %v2096, %v1841
      %v2131 = vsel %vm2103, %v2098, %v1843
      %v2133 = vsel %vm2103, %v2100, %v1845
      %v2135 = vsel %vm2103, %v2102, %v1847
      %vm2136 = vcmask 162816
      %v2138 = vsel %vm2136, %v2105, %v1852
      %v2140 = vsel %vm2136, %v2107, %v1854
      %v2142 = vsel %vm2136, %v2109, %v1856
      %v2144 = vsel %vm2136, %v2111, %v1858
      %v2146 = vsel %vm2136, %v2113, %v1860
      %v2148 = vsel %vm2136, %v2115, %v1862
      %v2150 = vsel %vm2136, %v2117, %v1864
      %v2152 = vsel %vm2136, %v2119, %v1866
      %v2154 = vsel %vm2136, %v2121, %v1868
      %v2156 = vsel %vm2136, %v2123, %v1870
      %v2158 = vsel %vm2136, %v2125, %v1872
      %v2160 = vsel %vm2136, %v2127, %v1874
      %v2162 = vsel %vm2136, %v2129, %v1876
      %v2164 = vsel %vm2136, %v2131, %v1878
      %v2166 = vsel %vm2136, %v2133, %v1880
      %v2168 = vsel %vm2136, %v2135, %v1882
      %vm2169 = vcmask 195584
      %v2171 = vsel %vm2169, %v2138, %v1887
      %v2173 = vsel %vm2169, %v2140, %v1889
      %v2175 = vsel %vm2169, %v2142, %v1891
      %v2177 = vsel %vm2169, %v2144, %v1893
      %v2179 = vsel %vm2169, %v2146, %v1895
      %v2181 = vsel %vm2169, %v2148, %v1897
      %v2183 = vsel %vm2169, %v2150, %v1899
      %v2185 = vsel %vm2169, %v2152, %v1901
      %v2187 = vsel %vm2169, %v2154, %v1903
      %v2189 = vsel %vm2169, %v2156, %v1905
      %v2191 = vsel %vm2169, %v2158, %v1907
      %v2193 = vsel %vm2169, %v2160, %v1909
      %v2195 = vsel %vm2169, %v2162, %v1911
      %v2197 = vsel %vm2169, %v2164, %v1913
      %v2199 = vsel %vm2169, %v2166, %v1915
      %v2201 = vsel %vm2169, %v2168, %v1917
      %vm2202 = vcmask 228352
      %v2204 = vsel %vm2202, %v2171, %v1922
      %v2206 = vsel %vm2202, %v2173, %v1924
      %v2208 = vsel %vm2202, %v2175, %v1926
      %v2210 = vsel %vm2202, %v2177, %v1928
      %v2212 = vsel %vm2202, %v2179, %v1930
      %v2214 = vsel %vm2202, %v2181, %v1932
      %v2216 = vsel %vm2202, %v2183, %v1934
      %v2218 = vsel %vm2202, %v2185, %v1936
      %v2220 = vsel %vm2202, %v2187, %v1938
      %v2222 = vsel %vm2202, %v2189, %v1940
      %v2224 = vsel %vm2202, %v2191, %v1942
      %v2226 = vsel %vm2202, %v2193, %v1944
      %v2228 = vsel %vm2202, %v2195, %v1946
      %v2230 = vsel %vm2202, %v2197, %v1948
      %v2232 = vsel %vm2202, %v2199, %v1950
      %v2234 = vsel %vm2202, %v2201, %v1952
      %vm2235 = vcmask 261120
      %v2237 = vsel %vm2235, %v2204, %v1957
      %v2239 = vsel %vm2235, %v2206, %v1959
      %v2241 = vsel %vm2235, %v2208, %v1961
      %v2243 = vsel %vm2235, %v2210, %v1963
      %v2245 = vsel %vm2235, %v2212, %v1965
      %v2247 = vsel %vm2235, %v2214, %v1967
      %v2249 = vsel %vm2235, %v2216, %v1969
      %v2251 = vsel %vm2235, %v2218, %v1971
      %v2253 = vsel %vm2235, %v2220, %v1973
      %v2255 = vsel %vm2235, %v2222, %v1975
      %v2257 = vsel %vm2235, %v2224, %v1977
      %v2259 = vsel %vm2235, %v2226, %v1979
      %v2261 = vsel %vm2235, %v2228, %v1981
      %v2263 = vsel %vm2235, %v2230, %v1983
      %v2265 = vsel %vm2235, %v2232, %v1985
      %v2267 = vsel %vm2235, %v2234, %v1987
      %v2268 = vld [vmem:[%s1] sm:$0xf]
      %v2269 = vld [vmem:[%s1 + $0x4] sm:$0xf]
      %v2270 = vld [vmem:[%s1 + $0x8] sm:$0xf]
      %v2271 = vld [vmem:[%s1 + $0xc] sm:$0xf]
      %v2272 = vld [vmem:[%s1 + $0x10] sm:$0x3]
      %v2278 = vunpack.c.l.b16 %v2268
      %v2279 = vunpack.c.l.b16 %v2269
      %v2280 = vunpack.c.l.b16 %v2270
      %v2281 = vunpack.c.l.b16 %v2271
      %v2282 = vunpack.c.l.b16 %v2272
      %v2283 = vpack.c.b16 %v2279, %v2278
      %v2284 = vpack.c.b16 %v2281, %v2280
      %v2285 = vpack.c.b16 %v2282, %v2282
      %vm2288 = vcmask 293888
      %v2289 = vsel %vm2288, %v2237, 0
      %v2291 = vsel %vm2288, %v2239, 0
      %v2293 = vsel %vm2288, %v2241, 0
      %v2295 = vsel %vm2288, %v2243, 0
      %v2297 = vsel %vm2288, %v2245, 0
      %v2299 = vsel %vm2288, %v2247, 0
      %v2301 = vsel %vm2288, %v2249, 0
      %v2303 = vsel %vm2288, %v2251, 0
      %v2305 = vsel %vm2288, %v2253, 0
      %v2307 = vsel %vm2288, %v2255, 0
      %v2309 = vsel %vm2288, %v2257, 0
      %v2311 = vsel %vm2288, %v2259, 0
      %v2313 = vsel %vm2288, %v2261, 0
      %v2315 = vsel %vm2288, %v2263, 0
      %v2317 = vsel %vm2288, %v2265, 0
      %v2319 = vsel %vm2288, %v2267, 0
      %vm2321 = vcmask 1041408
      %v2323 = vsel %vm2321, %v2285, 0
      %2325 = vmatprep.subr.bf16.mxu0 0
      %2326 = vmatpush1.bf16.msra.mxu0 %v2283
      %2327 = vmatprep.subr.bf16.mxu0 0
      %2328 = vmatpush1.bf16.msra.mxu0 %v2284
      %2329 = vmatprep.subr.bf16.mxu0 0
      %2330 = vmatpush1.bf16.msra.mxu0 %v2323
      %2331 = vmatprep.subr.bf16.mxu0 0
      %2332 = vmatpush1.bf16.msra.mxu0 0
      %2333 = vmatprep.subr.bf16.mxu0 0
      %2334 = vmatpush1.bf16.msra.mxu0 0
      %2335 = vmatprep.subr.bf16.mxu0 0
      %2336 = vmatpush1.bf16.msra.mxu0 0
      %2337 = vmatprep.subr.bf16.mxu0 0
      %2338 = vmatpush1.bf16.msra.mxu0 0
      %2339 = vmatprep.subr.bf16.mxu0 0
      %2340 = vmatpush1.bf16.msra.mxu0 0
      %2341 = vmatprep.subr.bf16.mxu0 0
      %2342 = vmatpush1.bf16.msra.mxu0 0
      %2343 = vmatprep.subr.bf16.mxu0 0
      %2344 = vmatpush1.bf16.msra.mxu0 0
      %2345 = vmatprep.subr.bf16.mxu0 0
      %2346 = vmatpush1.bf16.msra.mxu0 0
      %2347 = vmatprep.subr.bf16.mxu0 0
      %2348 = vmatpush1.bf16.msra.mxu0 0
      %2349 = vmatprep.subr.bf16.mxu0 0
      %2350 = vmatpush1.bf16.msra.mxu0 0
      %2351 = vmatprep.subr.bf16.mxu0 0
      %2352 = vmatpush1.bf16.msra.mxu0 0
      %2353 = vmatprep.subr.bf16.mxu0 0
      %2354 = vmatpush1.bf16.msra.mxu0 0
      %2355 = vmatprep.subr.bf16.mxu0 0
      %2356 = vmatpush1.bf16.msra.mxu0 0
      %2357 = vmatprep.mubr.bf16.mxu0 0
      %2358 = vmatmul.mubr.bf16.gmra.mrb[0].mxu0 %v2289
      %v2359 = vpop.f32.mrb[0].mxu0
      %v2360 = vadd.f32 0.0, %v2359
      %v2361 = vpop.f32.mrb[0].mxu0
      %v2362 = vpop.f32.mrb[0].mxu0
      %v2363 = vadd.f32 0.0, %v2362
      %v2364 = vpop.f32.mrb[0].mxu0
      %2365 = vmatprep.mubr.bf16.mxu0 0
      %2366 = vmatmul.mubr.bf16.gmra.mrb[0].mxu0 %v2291
      %v2367 = vpop.f32.mrb[0].mxu0
      %v2368 = vadd.f32 0.0, %v2367
      %v2369 = vpop.f32.mrb[0].mxu0
      %v2370 = vpop.f32.mrb[0].mxu0
      %v2371 = vadd.f32 0.0, %v2370
      %v2372 = vpop.f32.mrb[0].mxu0
      %2373 = vmatprep.mubr.bf16.mxu0 0
      %2374 = vmatmul.mubr.bf16.gmra.mrb[0].mxu0 %v2293
      %v2375 = vpop.f32.mrb[0].mxu0
      %v2376 = vadd.f32 0.0, %v2375
      %v2377 = vpop.f32.mrb[0].mxu0
      %v2378 = vpop.f32.mrb[0].mxu0
      %v2379 = vadd.f32 0.0, %v2378
      %v2380 = vpop.f32.mrb[0].mxu0
      %2381 = vmatprep.mubr.bf16.mxu0 0
      %2382 = vmatmul.mubr.bf16.gmra.mrb[0].mxu0 %v2295
      %v2383 = vpop.f32.mrb[0].mxu0
      %v2384 = vadd.f32 0.0, %v2383
      %v2385 = vpop.f32.mrb[0].mxu0
      %v2386 = vpop.f32.mrb[0].mxu0
      %v2387 = vadd.f32 0.0, %v2386
      %v2388 = vpop.f32.mrb[0].mxu0
      %2389 = vmatprep.mubr.bf16.mxu0 0
      %2390 = vmatmul.mubr.bf16.gmra.mrb[0].mxu0 %v2297
      %v2391 = vpop.f32.mrb[0].mxu0
      %v2392 = vadd.f32 0.0, %v2391
      %v2393 = vpop.f32.mrb[0].mxu0
      %v2394 = vpop.f32.mrb[0].mxu0
      %v2395 = vadd.f32 0.0, %v2394
      %v2396 = vpop.f32.mrb[0].mxu0
      %2397 = vmatprep.mubr.bf16.mxu0 0
      %2398 = vmatmul.mubr.bf16.gmra.mrb[0].mxu0 %v2299
      %v2399 = vpop.f32.mrb[0].mxu0
      %v2400 = vadd.f32 0.0, %v2399
      %v2401 = vpop.f32.mrb[0].mxu0
      %v2402 = vpop.f32.mrb[0].mxu0
      %v2403 = vadd.f32 0.0, %v2402
      %v2404 = vpop.f32.mrb[0].mxu0
      %2405 = vmatprep.mubr.bf16.mxu0 0
      %2406 = vmatmul.mubr.bf16.gmra.mrb[0].mxu0 %v2301
      %v2407 = vpop.f32.mrb[0].mxu0
      %v2408 = vadd.f32 0.0, %v2407
      %v2409 = vpop.f32.mrb[0].mxu0
      %v2410 = vpop.f32.mrb[0].mxu0
      %v2411 = vadd.f32 0.0, %v2410
      %v2412 = vpop.f32.mrb[0].mxu0
      %2413 = vmatprep.mubr.bf16.mxu0 0
      %2414 = vmatmul.mubr.bf16.gmra.mrb[0].mxu0 %v2303
      %v2415 = vpop.f32.mrb[0].mxu0
      %v2416 = vadd.f32 0.0, %v2415
      %v2417 = vpop.f32.mrb[0].mxu0
      %v2418 = vpop.f32.mrb[0].mxu0
      %v2419 = vadd.f32 0.0, %v2418
      %v2420 = vpop.f32.mrb[0].mxu0
      %2421 = vmatprep.mubr.bf16.mxu0 0
      %2422 = vmatmul.mubr.bf16.gmra.mrb[0].mxu0 %v2305
      %v2423 = vpop.f32.mrb[0].mxu0
      %v2424 = vadd.f32 0.0, %v2423
      %v2425 = vpop.f32.mrb[0].mxu0
      %v2426 = vpop.f32.mrb[0].mxu0
      %v2427 = vadd.f32 0.0, %v2426
      %v2428 = vpop.f32.mrb[0].mxu0
      %2429 = vmatprep.mubr.bf16.mxu0 0
      %2430 = vmatmul.mubr.bf16.gmra.mrb[0].mxu0 %v2307
      %v2431 = vpop.f32.mrb[0].mxu0
      %v2432 = vadd.f32 0.0, %v2431
      %v2433 = vpop.f32.mrb[0].mxu0
      %v2434 = vpop.f32.mrb[0].mxu0
      %v2435 = vadd.f32 0.0, %v2434
      %v2436 = vpop.f32.mrb[0].mxu0
      %2437 = vmatprep.mubr.bf16.mxu0 0
      %2438 = vmatmul.mubr.bf16.gmra.mrb[0].mxu0 %v2309
      %v2439 = vpop.f32.mrb[0].mxu0
      %v2440 = vadd.f32 0.0, %v2439
      %v2441 = vpop.f32.mrb[0].mxu0
      %v2442 = vpop.f32.mrb[0].mxu0
      %v2443 = vadd.f32 0.0, %v2442
      %v2444 = vpop.f32.mrb[0].mxu0
      %2445 = vmatprep.mubr.bf16.mxu0 0
      %2446 = vmatmul.mubr.bf16.gmra.mrb[0].mxu0 %v2311
      %v2447 = vpop.f32.mrb[0].mxu0
      %v2448 = vadd.f32 0.0, %v2447
      %v2449 = vpop.f32.mrb[0].mxu0
      %v2450 = vpop.f32.mrb[0].mxu0
      %v2451 = vadd.f32 0.0, %v2450
      %v2452 = vpop.f32.mrb[0].mxu0
      %2453 = vmatprep.mubr.bf16.mxu0 0
      %2454 = vmatmul.mubr.bf16.gmra.mrb[0].mxu0 %v2313
      %v2455 = vpop.f32.mrb[0].mxu0
      %v2456 = vadd.f32 0.0, %v2455
      %v2457 = vpop.f32.mrb[0].mxu0
      %v2458 = vpop.f32.mrb[0].mxu0
      %v2459 = vadd.f32 0.0, %v2458
      %v2460 = vpop.f32.mrb[0].mxu0
      %2461 = vmatprep.mubr.bf16.mxu0 0
      %2462 = vmatmul.mubr.bf16.gmra.mrb[0].mxu0 %v2315
      %v2463 = vpop.f32.mrb[0].mxu0
      %v2464 = vadd.f32 0.0, %v2463
      %v2465 = vpop.f32.mrb[0].mxu0
      %v2466 = vpop.f32.mrb[0].mxu0
      %v2467 = vadd.f32 0.0, %v2466
      %v2468 = vpop.f32.mrb[0].mxu0
      %2469 = vmatprep.mubr.bf16.mxu0 0
      %2470 = vmatmul.mubr.bf16.gmra.mrb[0].mxu0 %v2317
      %v2471 = vpop.f32.mrb[0].mxu0
      %v2472 = vadd.f32 0.0, %v2471
      %v2473 = vpop.f32.mrb[0].mxu0
      %v2474 = vpop.f32.mrb[0].mxu0
      %v2475 = vadd.f32 0.0, %v2474
      %v2476 = vpop.f32.mrb[0].mxu0
      %2477 = vmatprep.mubr.bf16.mxu0 0
      %2478 = vmatmul.mubr.bf16.gmra.mrb[0].mxu0 %v2319
      %v2479 = vpop.f32.mrb[0].mxu0
      %v2480 = vadd.f32 0.0, %v2479
      %v2481 = vpop.f32.mrb[0].mxu0
      %v2482 = vpop.f32.mrb[0].mxu0
      %v2483 = vadd.f32 0.0, %v2482
      %v2484 = vpop.f32.mrb[0].mxu0
      %2485 = vdwg.mxu0
      %v2486 = vld [vmem:[%s2] sm:$0x1]
      %v2488 = vlaneseq
      %v2489 = vshrl.u32 %v2488, 7
      %v2490 = vsub.s32 0, %v2489
      %v2491 = vrot.slane %v2486, %v2490
      %v2493 = vmul.f32 %v2360, %v2491
      %v2494 = vmul.f32 %v2363, %v2491
      %v2495 = vmul.f32 %v2368, %v2491
      %v2496 = vmul.f32 %v2371, %v2491
      %v2497 = vmul.f32 %v2376, %v2491
      %v2498 = vmul.f32 %v2379, %v2491
      %v2499 = vmul.f32 %v2384, %v2491
      %v2500 = vmul.f32 %v2387, %v2491
      %v2501 = vmul.f32 %v2392, %v2491
      %v2502 = vmul.f32 %v2395, %v2491
      %v2503 = vmul.f32 %v2400, %v2491
      %v2504 = vmul.f32 %v2403, %v2491
      %v2505 = vmul.f32 %v2408, %v2491
      %v2506 = vmul.f32 %v2411, %v2491
      %v2507 = vmul.f32 %v2416, %v2491
      %v2508 = vmul.f32 %v2419, %v2491
      %v2509 = vmul.f32 %v2424, %v2491
      %v2510 = vmul.f32 %v2427, %v2491
      %v2511 = vmul.f32 %v2432, %v2491
      %v2512 = vmul.f32 %v2435, %v2491
      %v2513 = vmul.f32 %v2440, %v2491
      %v2514 = vmul.f32 %v2443, %v2491
      %v2515 = vmul.f32 %v2448, %v2491
      %v2516 = vmul.f32 %v2451, %v2491
      %v2517 = vmul.f32 %v2456, %v2491
      %v2518 = vmul.f32 %v2459, %v2491
      %v2519 = vmul.f32 %v2464, %v2491
      %v2520 = vmul.f32 %v2467, %v2491
      %v2521 = vmul.f32 %v2472, %v2491
      %v2522 = vmul.f32 %v2475, %v2491
      %v2523 = vmul.f32 %v2480, %v2491
      %v2524 = vmul.f32 %v2483, %v2491
      %v2525 = vld [vmem:[%s3] sm:$0x1]
      %v2527 = vlaneseq
      %v2528 = vshrl.u32 %v2527, 7
      %v2529 = vsub.s32 0, %v2528
      %v2530 = vrot.slane %v2525, %v2529
      %v2532 = vadd.f32 %v2493, %v2530
      %v2533 = vadd.f32 %v2494, %v2530
      %v2534 = vadd.f32 %v2495, %v2530
      %v2535 = vadd.f32 %v2496, %v2530
      %v2536 = vadd.f32 %v2497, %v2530
      %v2537 = vadd.f32 %v2498, %v2530
      %v2538 = vadd.f32 %v2499, %v2530
      %v2539 = vadd.f32 %v2500, %v2530
      %v2540 = vadd.f32 %v2501, %v2530
      %v2541 = vadd.f32 %v2502, %v2530
      %v2542 = vadd.f32 %v2503, %v2530
      %v2543 = vadd.f32 %v2504, %v2530
      %v2544 = vadd.f32 %v2505, %v2530
      %v2545 = vadd.f32 %v2506, %v2530
      %v2546 = vadd.f32 %v2507, %v2530
      %v2547 = vadd.f32 %v2508, %v2530
      %v2548 = vadd.f32 %v2509, %v2530
      %v2549 = vadd.f32 %v2510, %v2530
      %v2550 = vadd.f32 %v2511, %v2530
      %v2551 = vadd.f32 %v2512, %v2530
      %v2552 = vadd.f32 %v2513, %v2530
      %v2553 = vadd.f32 %v2514, %v2530
      %v2554 = vadd.f32 %v2515, %v2530
      %v2555 = vadd.f32 %v2516, %v2530
      %v2556 = vadd.f32 %v2517, %v2530
      %v2557 = vadd.f32 %v2518, %v2530
      %v2558 = vadd.f32 %v2519, %v2530
      %v2559 = vadd.f32 %v2520, %v2530
      %v2560 = vadd.f32 %v2521, %v2530
      %v2561 = vadd.f32 %v2522, %v2530
      %v2562 = vadd.f32 %v2523, %v2530
      %v2563 = vadd.f32 %v2524, %v2530
      %v2564 = vmax.f32 %v2532, 0.0
      %v2565 = vmax.f32 %v2533, 0.0
      %v2566 = vmax.f32 %v2534, 0.0
      %v2567 = vmax.f32 %v2535, 0.0
      %v2568 = vmax.f32 %v2536, 0.0
      %v2569 = vmax.f32 %v2537, 0.0
      %v2570 = vmax.f32 %v2538, 0.0
      %v2571 = vmax.f32 %v2539, 0.0
      %v2572 = vmax.f32 %v2540, 0.0
      %v2573 = vmax.f32 %v2541, 0.0
      %v2574 = vmax.f32 %v2542, 0.0
      %v2575 = vmax.f32 %v2543, 0.0
      %v2576 = vmax.f32 %v2544, 0.0
      %v2577 = vmax.f32 %v2545, 0.0
      %v2578 = vmax.f32 %v2546, 0.0
      %v2579 = vmax.f32 %v2547, 0.0
      %v2580 = vmax.f32 %v2548, 0.0
      %v2581 = vmax.f32 %v2549, 0.0
      %v2582 = vmax.f32 %v2550, 0.0
      %v2583 = vmax.f32 %v2551, 0.0
      %v2584 = vmax.f32 %v2552, 0.0
      %v2585 = vmax.f32 %v2553, 0.0
      %v2586 = vmax.f32 %v2554, 0.0
      %v2587 = vmax.f32 %v2555, 0.0
      %v2588 = vmax.f32 %v2556, 0.0
      %v2589 = vmax.f32 %v2557, 0.0
      %v2590 = vmax.f32 %v2558, 0.0
      %v2591 = vmax.f32 %v2559, 0.0
      %v2592 = vmax.f32 %v2560, 0.0
      %v2593 = vmax.f32 %v2561, 0.0
      %v2594 = vmax.f32 %v2562, 0.0
      %v2595 = vmax.f32 %v2563, 0.0
      %v2596 = vpack.c.bf16 %v2565, %v2564
      %v2597 = vpack.c.bf16 %v2567, %v2566
      %v2598 = vpack.c.bf16 %v2569, %v2568
      %v2599 = vpack.c.bf16 %v2571, %v2570
      %v2600 = vpack.c.bf16 %v2573, %v2572
      %v2601 = vpack.c.bf16 %v2575, %v2574
      %v2602 = vpack.c.bf16 %v2577, %v2576
      %v2603 = vpack.c.bf16 %v2579, %v2578
      %v2604 = vpack.c.bf16 %v2581, %v2580
      %v2605 = vpack.c.bf16 %v2583, %v2582
      %v2606 = vpack.c.bf16 %v2585, %v2584
      %v2607 = vpack.c.bf16 %v2587, %v2586
      %v2608 = vpack.c.bf16 %v2589, %v2588
      %v2609 = vpack.c.bf16 %v2591, %v2590
      %v2610 = vpack.c.bf16 %v2593, %v2592
      %v2611 = vpack.c.bf16 %v2595, %v2594
      %v2628 = vunpack.c.l.b16 %v2596
      %v2629 = vunpack.c.h.b16 %v2596
      %v2630 = vunpack.c.l.b16 %v2597
      %v2631 = vunpack.c.h.b16 %v2597
      %v2632 = vunpack.c.l.b16 %v2598
      %v2633 = vunpack.c.h.b16 %v2598
      %v2634 = vunpack.c.l.b16 %v2599
      %v2635 = vunpack.c.h.b16 %v2599
      %v2636 = vunpack.c.l.b16 %v2600
      %v2637 = vunpack.c.h.b16 %v2600
      %v2638 = vunpack.c.l.b16 %v2601
      %v2639 = vunpack.c.h.b16 %v2601
      %v2640 = vunpack.c.l.b16 %v2602
      %v2641 = vunpack.c.h.b16 %v2602
      %v2642 = vunpack.c.l.b16 %v2603
      %v2643 = vunpack.c.h.b16 %v2603
      %v2644 = vunpack.c.l.b16 %v2604
      %v2645 = vunpack.c.h.b16 %v2604
      %v2646 = vunpack.c.l.b16 %v2605
      %v2647 = vunpack.c.h.b16 %v2605
      %v2648 = vunpack.c.l.b16 %v2606
      %v2649 = vunpack.c.h.b16 %v2606
      %v2650 = vunpack.c.l.b16 %v2607
      %v2651 = vunpack.c.h.b16 %v2607
      %v2652 = vunpack.c.l.b16 %v2608
      %v2653 = vunpack.c.h.b16 %v2608
      %v2654 = vunpack.c.l.b16 %v2609
      %v2655 = vunpack.c.h.b16 %v2609
      %v2656 = vunpack.c.l.b16 %v2610
      %v2657 = vunpack.c.h.b16 %v2610
      %v2658 = vunpack.c.l.b16 %v2611
      %v2659 = vunpack.c.h.b16 %v2611
      %v2660 = vpack.c.b16 %v2628, %v2628
      %v2661 = vpack.c.b16 %v2629, %v2629
      %v2662 = vpack.c.b16 %v2630, %v2630
      %v2663 = vpack.c.b16 %v2631, %v2631
      %v2664 = vpack.c.b16 %v2632, %v2632
      %v2665 = vpack.c.b16 %v2633, %v2633
      %v2666 = vpack.c.b16 %v2634, %v2634
      %v2667 = vpack.c.b16 %v2635, %v2635
      %v2668 = vpack.c.b16 %v2636, %v2636
      %v2669 = vpack.c.b16 %v2637, %v2637
      %v2670 = vpack.c.b16 %v2638, %v2638
      %v2671 = vpack.c.b16 %v2639, %v2639
      %v2672 = vpack.c.b16 %v2640, %v2640
      %v2673 = vpack.c.b16 %v2641, %v2641
      %v2674 = vpack.c.b16 %v2642, %v2642
      %v2675 = vpack.c.b16 %v2643, %v2643
      %v2676 = vpack.c.b16 %v2644, %v2644
      %v2677 = vpack.c.b16 %v2645, %v2645
      %v2678 = vpack.c.b16 %v2646, %v2646
      %v2679 = vpack.c.b16 %v2647, %v2647
      %v2680 = vpack.c.b16 %v2648, %v2648
      %v2681 = vpack.c.b16 %v2649, %v2649
      %v2682 = vpack.c.b16 %v2650, %v2650
      %v2683 = vpack.c.b16 %v2651, %v2651
      %v2684 = vpack.c.b16 %v2652, %v2652
      %v2685 = vpack.c.b16 %v2653, %v2653
      %v2686 = vpack.c.b16 %v2654, %v2654
      %v2687 = vpack.c.b16 %v2655, %v2655
      %v2688 = vpack.c.b16 %v2656, %v2656
      %v2689 = vpack.c.b16 %v2657, %v2657
      %v2690 = vpack.c.b16 %v2658, %v2658
      %v2691 = vpack.c.b16 %v2659, %v2659
      %v2693 = vshrl.u32 %v2660, 16
      %v2695 = vrot.slane %v2693, 7
      %v2696 = vshll.u32 %v2660, 16
      %v2698 = vor.u32 %v2695, %v2696
      %v2699 = vrot.slane %v2695, 4
      %v2701 = vshrl.u32 %v2661, 16
      %v2703 = vrot.slane %v2701, 7
      %v2704 = vshll.u32 %v2661, 16
      %v2706 = vor.u32 %v2703, %v2704
      %v2707 = vsel %vm462, %v2699, %v2706
      %v2708 = vrot.slane %v2703, 4
      %v2710 = vshrl.u32 %v2662, 16
      %v2712 = vrot.slane %v2710, 7
      %v2713 = vshll.u32 %v2662, 16
      %v2715 = vor.u32 %v2712, %v2713
      %v2716 = vrot.slane %v2712, 4
      %v2718 = vshrl.u32 %v2663, 16
      %v2720 = vrot.slane %v2718, 7
      %v2721 = vshll.u32 %v2663, 16
      %v2723 = vor.u32 %v2720, %v2721
      %v2724 = vsel %vm462, %v2716, %v2723
      %v2725 = vrot.slane %v2720, 4
      %v2727 = vshrl.u32 %v2664, 16
      %v2729 = vrot.slane %v2727, 7
      %v2730 = vshll.u32 %v2664, 16
      %v2732 = vor.u32 %v2729, %v2730
      %v2733 = vrot.slane %v2729, 4
      %v2735 = vshrl.u32 %v2665, 16
      %v2737 = vrot.slane %v2735, 7
      %v2738 = vshll.u32 %v2665, 16
      %v2740 = vor.u32 %v2737, %v2738
      %v2741 = vsel %vm462, %v2733, %v2740
      %v2742 = vrot.slane %v2737, 4
      %v2744 = vshrl.u32 %v2666, 16
      %v2746 = vrot.slane %v2744, 7
      %v2747 = vshll.u32 %v2666, 16
      %v2749 = vor.u32 %v2746, %v2747
      %v2750 = vrot.slane %v2746, 4
      %v2752 = vshrl.u32 %v2667, 16
      %v2754 = vrot.slane %v2752, 7
      %v2755 = vshll.u32 %v2667, 16
      %v2757 = vor.u32 %v2754, %v2755
      %v2758 = vsel %vm462, %v2750, %v2757
      %v2759 = vrot.slane %v2754, 4
      %v2761 = vshrl.u32 %v2668, 16
      %v2763 = vrot.slane %v2761, 7
      %v2764 = vshll.u32 %v2668, 16
      %v2766 = vor.u32 %v2763, %v2764
      %v2767 = vrot.slane %v2763, 4
      %v2769 = vshrl.u32 %v2669, 16
      %v2771 = vrot.slane %v2769, 7
      %v2772 = vshll.u32 %v2669, 16
      %v2774 = vor.u32 %v2771, %v2772
      %v2775 = vsel %vm462, %v2767, %v2774
      %v2776 = vrot.slane %v2771, 4
      %v2778 = vshrl.u32 %v2670, 16
      %v2780 = vrot.slane %v2778, 7
      %v2781 = vshll.u32 %v2670, 16
      %v2783 = vor.u32 %v2780, %v2781
      %v2784 = vrot.slane %v2780, 4
      %v2786 = vshrl.u32 %v2671, 16
      %v2788 = vrot.slane %v2786, 7
      %v2789 = vshll.u32 %v2671, 16
      %v2791 = vor.u32 %v2788, %v2789
      %v2792 = vsel %vm462, %v2784, %v2791
      %v2793 = vrot.slane %v2788, 4
      %v2795 = vshrl.u32 %v2672, 16
      %v2797 = vrot.slane %v2795, 7
      %v2798 = vshll.u32 %v2672, 16
      %v2800 = vor.u32 %v2797, %v2798
      %v2801 = vrot.slane %v2797, 4
      %v2803 = vshrl.u32 %v2673, 16
      %v2805 = vrot.slane %v2803, 7
      %v2806 = vshll.u32 %v2673, 16
      %v2808 = vor.u32 %v2805, %v2806
      %v2809 = vsel %vm462, %v2801, %v2808
      %v2810 = vrot.slane %v2805, 4
      %v2812 = vshrl.u32 %v2674, 16
      %v2814 = vrot.slane %v2812, 7
      %v2815 = vshll.u32 %v2674, 16
      %v2817 = vor.u32 %v2814, %v2815
      %v2818 = vrot.slane %v2814, 4
      %v2820 = vshrl.u32 %v2675, 16
      %v2822 = vrot.slane %v2820, 7
      %v2823 = vshll.u32 %v2675, 16
      %v2825 = vor.u32 %v2822, %v2823
      %v2826 = vsel %vm462, %v2818, %v2825
      %v2827 = vrot.slane %v2822, 4
      %v2829 = vshrl.u32 %v2676, 16
      %v2831 = vrot.slane %v2829, 7
      %v2832 = vshll.u32 %v2676, 16
      %v2834 = vor.u32 %v2831, %v2832
      %v2835 = vrot.slane %v2831, 4
      %v2837 = vshrl.u32 %v2677, 16
      %v2839 = vrot.slane %v2837, 7
      %v2840 = vshll.u32 %v2677, 16
      %v2842 = vor.u32 %v2839, %v2840
      %v2843 = vsel %vm462, %v2835, %v2842
      %v2844 = vrot.slane %v2839, 4
      %v2846 = vshrl.u32 %v2678, 16
      %v2848 = vrot.slane %v2846, 7
      %v2849 = vshll.u32 %v2678, 16
      %v2851 = vor.u32 %v2848, %v2849
      %v2852 = vrot.slane %v2848, 4
      %v2854 = vshrl.u32 %v2679, 16
      %v2856 = vrot.slane %v2854, 7
      %v2857 = vshll.u32 %v2679, 16
      %v2859 = vor.u32 %v2856, %v2857
      %v2860 = vsel %vm462, %v2852, %v2859
      %v2861 = vrot.slane %v2856, 4
      %v2863 = vshrl.u32 %v2680, 16
      %v2865 = vrot.slane %v2863, 7
      %v2866 = vshll.u32 %v2680, 16
      %v2868 = vor.u32 %v2865, %v2866
      %v2869 = vrot.slane %v2865, 4
      %v2871 = vshrl.u32 %v2681, 16
      %v2873 = vrot.slane %v2871, 7
      %v2874 = vshll.u32 %v2681, 16
      %v2876 = vor.u32 %v2873, %v2874
      %v2877 = vsel %vm462, %v2869, %v2876
      %v2878 = vrot.slane %v2873, 4
      %v2880 = vshrl.u32 %v2682, 16
      %v2882 = vrot.slane %v2880, 7
      %v2883 = vshll.u32 %v2682, 16
      %v2885 = vor.u32 %v2882, %v2883
      %v2886 = vrot.slane %v2882, 4
      %v2888 = vshrl.u32 %v2683, 16
      %v2890 = vrot.slane %v2888, 7
      %v2891 = vshll.u32 %v2683, 16
      %v2893 = vor.u32 %v2890, %v2891
      %v2894 = vsel %vm462, %v2886, %v2893
      %v2895 = vrot.slane %v2890, 4
      %v2897 = vshrl.u32 %v2684, 16
      %v2899 = vrot.slane %v2897, 7
      %v2900 = vshll.u32 %v2684, 16
      %v2902 = vor.u32 %v2899, %v2900
      %v2903 = vrot.slane %v2899, 4
      %v2905 = vshrl.u32 %v2685, 16
      %v2907 = vrot.slane %v2905, 7
      %v2908 = vshll.u32 %v2685, 16
      %v2910 = vor.u32 %v2907, %v2908
      %v2911 = vsel %vm462, %v2903, %v2910
      %v2912 = vrot.slane %v2907, 4
      %v2914 = vshrl.u32 %v2686, 16
      %v2916 = vrot.slane %v2914, 7
      %v2917 = vshll.u32 %v2686, 16
      %v2919 = vor.u32 %v2916, %v2917
      %v2920 = vrot.slane %v2916, 4
      %v2922 = vshrl.u32 %v2687, 16
      %v2924 = vrot.slane %v2922, 7
      %v2925 = vshll.u32 %v2687, 16
      %v2927 = vor.u32 %v2924, %v2925
      %v2928 = vsel %vm462, %v2920, %v2927
      %v2929 = vrot.slane %v2924, 4
      %v2931 = vshrl.u32 %v2688, 16
      %v2933 = vrot.slane %v2931, 7
      %v2934 = vshll.u32 %v2688, 16
      %v2936 = vor.u32 %v2933, %v2934
      %v2937 = vrot.slane %v2933, 4
      %v2939 = vshrl.u32 %v2689, 16
      %v2941 = vrot.slane %v2939, 7
      %v2942 = vshll.u32 %v2689, 16
      %v2944 = vor.u32 %v2941, %v2942
      %v2945 = vsel %vm462, %v2937, %v2944
      %v2946 = vrot.slane %v2941, 4
      %v2948 = vshrl.u32 %v2690, 16
      %v2950 = vrot.slane %v2948, 7
      %v2951 = vshll.u32 %v2690, 16
      %v2953 = vor.u32 %v2950, %v2951
      %v2954 = vrot.slane %v2950, 4
      %v2956 = vshrl.u32 %v2691, 16
      %v2958 = vrot.slane %v2956, 7
      %v2959 = vshll.u32 %v2691, 16
      %v2961 = vor.u32 %v2958, %v2959
      %v2962 = vsel %vm462, %v2954, %v2961
      %v2963 = vrot.slane %v2958, 4
      %v3012 = vld [vmem:[%s783] sm:$0xf]
      %v3013 = vsel %vm785, %v2698, %v3012
      %3014 = vst [vmem:[%s783] sm:$0xf] %v3013
      %3015 = vst.msk [vmem:[%s783 + $0x4] sm:$0xf] %vm307, %v2707
      %v3016 = vld [vmem:[%s783 + $0x8] sm:$0x1]
      %v3017 = vsel %vm318, %v2708, %v3016
      %3018 = vst [vmem:[%s783 + $0x8] sm:$0x1] %v3017
      %v3019 = vld [vmem:[%s783 + $0xc] sm:$0xf]
      %v3020 = vsel %vm785, %v2715, %v3019
      %3021 = vst [vmem:[%s783 + $0xc] sm:$0xf] %v3020
      %3022 = vst.msk [vmem:[%s783 + $0x10] sm:$0xf] %vm307, %v2724
      %v3023 = vld [vmem:[%s783 + $0x14] sm:$0x1]
      %v3024 = vsel %vm318, %v2725, %v3023
      %3025 = vst [vmem:[%s783 + $0x14] sm:$0x1] %v3024
      %v3026 = vld [vmem:[%s783 + $0x18] sm:$0xf]
      %v3027 = vsel %vm785, %v2732, %v3026
      %3028 = vst [vmem:[%s783 + $0x18] sm:$0xf] %v3027
      %3029 = vst.msk [vmem:[%s783 + $0x1c] sm:$0xf] %vm307, %v2741
      %v3030 = vld [vmem:[%s783 + $0x20] sm:$0x1]
      %v3031 = vsel %vm318, %v2742, %v3030
      %3032 = vst [vmem:[%s783 + $0x20] sm:$0x1] %v3031
      %v3033 = vld [vmem:[%s783 + $0x24] sm:$0xf]
      %v3034 = vsel %vm785, %v2749, %v3033
      %3035 = vst [vmem:[%s783 + $0x24] sm:$0xf] %v3034
      %3036 = vst.msk [vmem:[%s783 + $0x28] sm:$0xf] %vm307, %v2758
      %v3037 = vld [vmem:[%s783 + $0x2c] sm:$0x1]
      %v3038 = vsel %vm318, %v2759, %v3037
      %3039 = vst [vmem:[%s783 + $0x2c] sm:$0x1] %v3038
      %v3040 = vld [vmem:[%s783 + $0x30] sm:$0xf]
      %v3041 = vsel %vm785, %v2766, %v3040
      %3042 = vst [vmem:[%s783 + $0x30] sm:$0xf] %v3041
      %3043 = vst.msk [vmem:[%s783 + $0x34] sm:$0xf] %vm307, %v2775
      %v3044 = vld [vmem:[%s783 + $0x38] sm:$0x1]
      %v3045 = vsel %vm318, %v2776, %v3044
      %3046 = vst [vmem:[%s783 + $0x38] sm:$0x1] %v3045
      %v3047 = vld [vmem:[%s783 + $0x3c] sm:$0xf]
      %v3048 = vsel %vm785, %v2783, %v3047
      %3049 = vst [vmem:[%s783 + $0x3c] sm:$0xf] %v3048
      %3050 = vst.msk [vmem:[%s783 + $0x40] sm:$0xf] %vm307, %v2792
      %v3051 = vld [vmem:[%s783 + $0x44] sm:$0x1]
      %v3052 = vsel %vm318, %v2793, %v3051
      %3053 = vst [vmem:[%s783 + $0x44] sm:$0x1] %v3052
      %v3054 = vld [vmem:[%s783 + $0x48] sm:$0xf]
      %v3055 = vsel %vm785, %v2800, %v3054
      %3056 = vst [vmem:[%s783 + $0x48] sm:$0xf] %v3055
      %3057 = vst.msk [vmem:[%s783 + $0x4c] sm:$0xf] %vm307, %v2809
      %v3058 = vld [vmem:[%s783 + $0x50] sm:$0x1]
      %v3059 = vsel %vm318, %v2810, %v3058
      %3060 = vst [vmem:[%s783 + $0x50] sm:$0x1] %v3059
      %v3061 = vld [vmem:[%s783 + $0x54] sm:$0xf]
      %v3062 = vsel %vm785, %v2817, %v3061
      %3063 = vst [vmem:[%s783 + $0x54] sm:$0xf] %v3062
      %3064 = vst.msk [vmem:[%s783 + $0x58] sm:$0xf] %vm307, %v2826
      %v3065 = vld [vmem:[%s783 + $0x5c] sm:$0x1]
      %v3066 = vsel %vm318, %v2827, %v3065
      %3067 = vst [vmem:[%s783 + $0x5c] sm:$0x1] %v3066
      %v3068 = vld [vmem:[%s783 + $0x60] sm:$0xf]
      %v3069 = vsel %vm785, %v2834, %v3068
      %3070 = vst [vmem:[%s783 + $0x60] sm:$0xf] %v3069
      %3071 = vst.msk [vmem:[%s783 + $0x64] sm:$0xf] %vm307, %v2843
      %v3072 = vld [vmem:[%s783 + $0x68] sm:$0x1]
      %v3073 = vsel %vm318, %v2844, %v3072
      %3074 = vst [vmem:[%s783 + $0x68] sm:$0x1] %v3073
      %v3075 = vld [vmem:[%s783 + $0x6c] sm:$0xf]
      %v3076 = vsel %vm785, %v2851, %v3075
      %3077 = vst [vmem:[%s783 + $0x6c] sm:$0xf] %v3076
      %3078 = vst.msk [vmem:[%s783 + $0x70] sm:$0xf] %vm307, %v2860
      %v3079 = vld [vmem:[%s783 + $0x74] sm:$0x1]
      %v3080 = vsel %vm318, %v2861, %v3079
      %3081 = vst [vmem:[%s783 + $0x74] sm:$0x1] %v3080
      %v3082 = vld [vmem:[%s783 + $0x78] sm:$0xf]
      %v3083 = vsel %vm785, %v2868, %v3082
      %3084 = vst [vmem:[%s783 + $0x78] sm:$0xf] %v3083
      %3085 = vst.msk [vmem:[%s783 + $0x7c] sm:$0xf] %vm307, %v2877
      %v3086 = vld [vmem:[%s783 + $0x80] sm:$0x1]
      %v3087 = vsel %vm318, %v2878, %v3086
      %3088 = vst [vmem:[%s783 + $0x80] sm:$0x1] %v3087
      %v3089 = vld [vmem:[%s783 + $0x84] sm:$0xf]
      %v3090 = vsel %vm785, %v2885, %v3089
      %3091 = vst [vmem:[%s783 + $0x84] sm:$0xf] %v3090
      %3092 = vst.msk [vmem:[%s783 + $0x88] sm:$0xf] %vm307, %v2894
      %v3093 = vld [vmem:[%s783 + $0x8c] sm:$0x1]
      %v3094 = vsel %vm318, %v2895, %v3093
      %3095 = vst [vmem:[%s783 + $0x8c] sm:$0x1] %v3094
      %v3096 = vld [vmem:[%s783 + $0x90] sm:$0xf]
      %v3097 = vsel %vm785, %v2902, %v3096
      %3098 = vst [vmem:[%s783 + $0x90] sm:$0xf] %v3097
      %3099 = vst.msk [vmem:[%s783 + $0x94] sm:$0xf] %vm307, %v2911
      %v3100 = vld [vmem:[%s783 + $0x98] sm:$0x1]
      %v3101 = vsel %vm318, %v2912, %v3100
      %3102 = vst [vmem:[%s783 + $0x98] sm:$0x1] %v3101
      %v3103 = vld [vmem:[%s783 + $0x9c] sm:$0xf]
      %v3104 = vsel %vm785, %v2919, %v3103
      %3105 = vst [vmem:[%s783 + $0x9c] sm:$0xf] %v3104
      %3106 = vst.msk [vmem:[%s783 + $0xa0] sm:$0xf] %vm307, %v2928
      %v3107 = vld [vmem:[%s783 + $0xa4] sm:$0x1]
      %v3108 = vsel %vm318, %v2929, %v3107
      %3109 = vst [vmem:[%s783 + $0xa4] sm:$0x1] %v3108
      %v3110 = vld [vmem:[%s783 + $0xa8] sm:$0xf]
      %v3111 = vsel %vm785, %v2936, %v3110
      %3112 = vst [vmem:[%s783 + $0xa8] sm:$0xf] %v3111
      %3113 = vst.msk [vmem:[%s783 + $0xac] sm:$0xf] %vm307, %v2945
      %v3114 = vld [vmem:[%s783 + $0xb0] sm:$0x1]
      %v3115 = vsel %vm318, %v2946, %v3114
      %3116 = vst [vmem:[%s783 + $0xb0] sm:$0x1] %v3115
      %v3117 = vld [vmem:[%s783 + $0xb4] sm:$0xf]
      %v3118 = vsel %vm785, %v2953, %v3117
      %3119 = vst [vmem:[%s783 + $0xb4] sm:$0xf] %v3118
      %3120 = vst.msk [vmem:[%s783 + $0xb8] sm:$0xf] %vm307, %v2962
      %v3121 = vld [vmem:[%s783 + $0xbc] sm:$0x1]
      %v3122 = vsel %vm318, %v2963, %v3121
      %3123 = vst [vmem:[%s783 + $0xbc] sm:$0x1] %v3122
      %v3124 = vld [vmem:[#allocation2] sm:$0xf]
      %v3125 = vld [vmem:[#allocation2 + $0x4] sm:$0xf]
      %v3126 = vld [vmem:[#allocation2 + $0x8] sm:$0x1]
      %v3127 = vld [vmem:[#allocation2 + $0xc] sm:$0xf]
      %v3128 = vld [vmem:[#allocation2 + $0x10] sm:$0xf]
      %v3129 = vld [vmem:[#allocation2 + $0x14] sm:$0x1]
      %v3130 = vld [vmem:[#allocation2 + $0x18] sm:$0xf]
      %v3131 = vld [vmem:[#allocation2 + $0x1c] sm:$0xf]
      %v3132 = vld [vmem:[#allocation2 + $0x20] sm:$0x1]
      %v3133 = vld [vmem:[#allocation2 + $0x24] sm:$0xf]
      %v3134 = vld [vmem:[#allocation2 + $0x28] sm:$0xf]
      %v3135 = vld [vmem:[#allocation2 + $0x2c] sm:$0x1]
      %v3136 = vld [vmem:[#allocation2 + $0x30] sm:$0xf]
      %v3137 = vld [vmem:[#allocation2 + $0x34] sm:$0xf]
      %v3138 = vld [vmem:[#allocation2 + $0x38] sm:$0x1]
      %v3139 = vld [vmem:[#allocation2 + $0x3c] sm:$0xf]
      %v3140 = vld [vmem:[#allocation2 + $0x40] sm:$0xf]
      %v3141 = vld [vmem:[#allocation2 + $0x44] sm:$0x1]
      %v3142 = vld [vmem:[#allocation2 + $0x48] sm:$0xf]
      %v3143 = vld [vmem:[#allocation2 + $0x4c] sm:$0xf]
      %v3144 = vld [vmem:[#allocation2 + $0x50] sm:$0x1]
      %v3145 = vld [vmem:[#allocation2 + $0x54] sm:$0xf]
      %v3146 = vld [vmem:[#allocation2 + $0x58] sm:$0xf]
      %v3147 = vld [vmem:[#allocation2 + $0x5c] sm:$0x1]
      %v3148 = vld [vmem:[#allocation2 + $0x60] sm:$0xf]
      %v3149 = vld [vmem:[#allocation2 + $0x64] sm:$0xf]
      %v3150 = vld [vmem:[#allocation2 + $0x68] sm:$0x1]
      %v3151 = vld [vmem:[#allocation2 + $0x6c] sm:$0xf]
      %v3152 = vld [vmem:[#allocation2 + $0x70] sm:$0xf]
      %v3153 = vld [vmem:[#allocation2 + $0x74] sm:$0x1]
      %v3154 = vld [vmem:[#allocation2 + $0x78] sm:$0xf]
      %v3155 = vld [vmem:[#allocation2 + $0x7c] sm:$0xf]
      %v3156 = vld [vmem:[#allocation2 + $0x80] sm:$0x1]
      %v3157 = vld [vmem:[#allocation2 + $0x84] sm:$0xf]
      %v3158 = vld [vmem:[#allocation2 + $0x88] sm:$0xf]
      %v3159 = vld [vmem:[#allocation2 + $0x8c] sm:$0x1]
      %v3160 = vld [vmem:[#allocation2 + $0x90] sm:$0xf]
      %v3161 = vld [vmem:[#allocation2 + $0x94] sm:$0xf]
      %v3162 = vld [vmem:[#allocation2 + $0x98] sm:$0x1]
      %v3163 = vld [vmem:[#allocation2 + $0x9c] sm:$0xf]
      %v3164 = vld [vmem:[#allocation2 + $0xa0] sm:$0xf]
      %v3165 = vld [vmem:[#allocation2 + $0xa4] sm:$0x1]
      %v3166 = vld [vmem:[#allocation2 + $0xa8] sm:$0xf]
      %v3167 = vld [vmem:[#allocation2 + $0xac] sm:$0xf]
      %v3168 = vld [vmem:[#allocation2 + $0xb0] sm:$0x1]
      %v3169 = vld [vmem:[#allocation2 + $0xb4] sm:$0xf]
      %v3170 = vld [vmem:[#allocation2 + $0xb8] sm:$0xf]
      %v3171 = vld [vmem:[#allocation2 + $0xbc] sm:$0x1]
      %v3172 = vld [vmem:[#allocation2 + $0xc0] sm:$0xf]
      %v3173 = vld [vmem:[#allocation2 + $0xc4] sm:$0xf]
      %v3174 = vld [vmem:[#allocation2 + $0xc8] sm:$0x1]
      %v3175 = vld [vmem:[#allocation2 + $0xcc] sm:$0xf]
      %v3176 = vld [vmem:[#allocation2 + $0xd0] sm:$0xf]
      %v3177 = vld [vmem:[#allocation2 + $0xd4] sm:$0x1]
      %v3179 = vshrl.u32 %v3124, 16
      %v3181 = vrot.slane %v3179, 4
      %v3182 = vshll.u32 %v3124, 16
      %v3184 = vrot.slane %v3182, 5
      %v3185 = vor.u32 %v3181, %v3184
      %v3186 = vrot.slane %v3185, 4
      %v3188 = vshll.u32 %v3125, 16
      %v3190 = vrot.slane %v3188, 5
      %v3191 = vsel %vm954, %v3186, %v3190
      %v3192 = vshrl.u32 %v3125, 16
      %v3194 = vrot.slane %v3192, 4
      %v3195 = vor.u32 %v3194, %v3190
      %v3196 = vrot.slane %v3195, 4
      %v3198 = vshll.u32 %v3126, 16
      %v3200 = vrot.slane %v3198, 5
      %v3201 = vsel %vm954, %v3196, %v3200
      %v3203 = vshrl.u32 %v3127, 16
      %v3205 = vrot.slane %v3203, 4
      %v3206 = vshll.u32 %v3127, 16
      %v3208 = vrot.slane %v3206, 5
      %v3209 = vor.u32 %v3205, %v3208
      %v3210 = vrot.slane %v3209, 4
      %v3212 = vshll.u32 %v3128, 16
      %v3214 = vrot.slane %v3212, 5
      %v3215 = vsel %vm954, %v3210, %v3214
      %v3216 = vshrl.u32 %v3128, 16
      %v3218 = vrot.slane %v3216, 4
      %v3219 = vor.u32 %v3218, %v3214
      %v3220 = vrot.slane %v3219, 4
      %v3222 = vshll.u32 %v3129, 16
      %v3224 = vrot.slane %v3222, 5
      %v3225 = vsel %vm954, %v3220, %v3224
      %v3227 = vshrl.u32 %v3130, 16
      %v3229 = vrot.slane %v3227, 4
      %v3230 = vshll.u32 %v3130, 16
      %v3232 = vrot.slane %v3230, 5
      %v3233 = vor.u32 %v3229, %v3232
      %v3234 = vrot.slane %v3233, 4
      %v3236 = vshll.u32 %v3131, 16
      %v3238 = vrot.slane %v3236, 5
      %v3239 = vsel %vm954, %v3234, %v3238
      %v3240 = vshrl.u32 %v3131, 16
      %v3242 = vrot.slane %v3240, 4
      %v3243 = vor.u32 %v3242, %v3238
      %v3244 = vrot.slane %v3243, 4
      %v3246 = vshll.u32 %v3132, 16
      %v3248 = vrot.slane %v3246, 5
      %v3249 = vsel %vm954, %v3244, %v3248
      %v3251 = vshrl.u32 %v3133, 16
      %v3253 = vrot.slane %v3251, 4
      %v3254 = vshll.u32 %v3133, 16
      %v3256 = vrot.slane %v3254, 5
      %v3257 = vor.u32 %v3253, %v3256
      %v3258 = vrot.slane %v3257, 4
      %v3260 = vshll.u32 %v3134, 16
      %v3262 = vrot.slane %v3260, 5
      %v3263 = vsel %vm954, %v3258, %v3262
      %v3264 = vshrl.u32 %v3134, 16
      %v3266 = vrot.slane %v3264, 4
      %v3267 = vor.u32 %v3266, %v3262
      %v3268 = vrot.slane %v3267, 4
      %v3270 = vshll.u32 %v3135, 16
      %v3272 = vrot.slane %v3270, 5
      %v3273 = vsel %vm954, %v3268, %v3272
      %v3275 = vshrl.u32 %v3136, 16
      %v3277 = vrot.slane %v3275, 4
      %v3278 = vshll.u32 %v3136, 16
      %v3280 = vrot.slane %v3278, 5
      %v3281 = vor.u32 %v3277, %v3280
      %v3282 = vrot.slane %v3281, 4
      %v3284 = vshll.u32 %v3137, 16
      %v3286 = vrot.slane %v3284, 5
      %v3287 = vsel %vm954, %v3282, %v3286
      %v3288 = vshrl.u32 %v3137, 16
      %v3290 = vrot.slane %v3288, 4
      %v3291 = vor.u32 %v3290, %v3286
      %v3292 = vrot.slane %v3291, 4
      %v3294 = vshll.u32 %v3138, 16
      %v3296 = vrot.slane %v3294, 5
      %v3297 = vsel %vm954, %v3292, %v3296
      %v3299 = vshrl.u32 %v3139, 16
      %v3301 = vrot.slane %v3299, 4
      %v3302 = vshll.u32 %v3139, 16
      %v3304 = vrot.slane %v3302, 5
      %v3305 = vor.u32 %v3301, %v3304
      %v3306 = vrot.slane %v3305, 4
      %v3308 = vshll.u32 %v3140, 16
      %v3310 = vrot.slane %v3308, 5
      %v3311 = vsel %vm954, %v3306, %v3310
      %v3312 = vshrl.u32 %v3140, 16
      %v3314 = vrot.slane %v3312, 4
      %v3315 = vor.u32 %v3314, %v3310
      %v3316 = vrot.slane %v3315, 4
      %v3318 = vshll.u32 %v3141, 16
      %v3320 = vrot.slane %v3318, 5
      %v3321 = vsel %vm954, %v3316, %v3320
      %v3323 = vshrl.u32 %v3142, 16
      %v3325 = vrot.slane %v3323, 4
      %v3326 = vshll.u32 %v3142, 16
      %v3328 = vrot.slane %v3326, 5
      %v3329 = vor.u32 %v3325, %v3328
      %v3330 = vrot.slane %v3329, 4
      %v3332 = vshll.u32 %v3143, 16
      %v3334 = vrot.slane %v3332, 5
      %v3335 = vsel %vm954, %v3330, %v3334
      %v3336 = vshrl.u32 %v3143, 16
      %v3338 = vrot.slane %v3336, 4
      %v3339 = vor.u32 %v3338, %v3334
      %v3340 = vrot.slane %v3339, 4
      %v3342 = vshll.u32 %v3144, 16
      %v3344 = vrot.slane %v3342, 5
      %v3345 = vsel %vm954, %v3340, %v3344
      %v3347 = vshrl.u32 %v3145, 16
      %v3349 = vrot.slane %v3347, 4
      %v3350 = vshll.u32 %v3145, 16
      %v3352 = vrot.slane %v3350, 5
      %v3353 = vor.u32 %v3349, %v3352
      %v3354 = vrot.slane %v3353, 4
      %v3356 = vshll.u32 %v3146, 16
      %v3358 = vrot.slane %v3356, 5
      %v3359 = vsel %vm954, %v3354, %v3358
      %v3360 = vshrl.u32 %v3146, 16
      %v3362 = vrot.slane %v3360, 4
      %v3363 = vor.u32 %v3362, %v3358
      %v3364 = vrot.slane %v3363, 4
      %v3366 = vshll.u32 %v3147, 16
      %v3368 = vrot.slane %v3366, 5
      %v3369 = vsel %vm954, %v3364, %v3368
      %v3371 = vshrl.u32 %v3148, 16
      %v3373 = vrot.slane %v3371, 4
      %v3374 = vshll.u32 %v3148, 16
      %v3376 = vrot.slane %v3374, 5
      %v3377 = vor.u32 %v3373, %v3376
      %v3378 = vrot.slane %v3377, 4
      %v3380 = vshll.u32 %v3149, 16
      %v3382 = vrot.slane %v3380, 5
      %v3383 = vsel %vm954, %v3378, %v3382
      %v3384 = vshrl.u32 %v3149, 16
      %v3386 = vrot.slane %v3384, 4
      %v3387 = vor.u32 %v3386, %v3382
      %v3388 = vrot.slane %v3387, 4
      %v3390 = vshll.u32 %v3150, 16
      %v3392 = vrot.slane %v3390, 5
      %v3393 = vsel %vm954, %v3388, %v3392
      %v3395 = vshrl.u32 %v3151, 16
      %v3397 = vrot.slane %v3395, 4
      %v3398 = vshll.u32 %v3151, 16
      %v3400 = vrot.slane %v3398, 5
      %v3401 = vor.u32 %v3397, %v3400
      %v3402 = vrot.slane %v3401, 4
      %v3404 = vshll.u32 %v3152, 16
      %v3406 = vrot.slane %v3404, 5
      %v3407 = vsel %vm954, %v3402, %v3406
      %v3408 = vshrl.u32 %v3152, 16
      %v3410 = vrot.slane %v3408, 4
      %v3411 = vor.u32 %v3410, %v3406
      %v3412 = vrot.slane %v3411, 4
      %v3414 = vshll.u32 %v3153, 16
      %v3416 = vrot.slane %v3414, 5
      %v3417 = vsel %vm954, %v3412, %v3416
      %v3419 = vshrl.u32 %v3154, 16
      %v3421 = vrot.slane %v3419, 4
      %v3422 = vshll.u32 %v3154, 16
      %v3424 = vrot.slane %v3422, 5
      %v3425 = vor.u32 %v3421, %v3424
      %v3426 = vrot.slane %v3425, 4
      %v3428 = vshll.u32 %v3155, 16
      %v3430 = vrot.slane %v3428, 5
      %v3431 = vsel %vm954, %v3426, %v3430
      %v3432 = vshrl.u32 %v3155, 16
      %v3434 = vrot.slane %v3432, 4
      %v3435 = vor.u32 %v3434, %v3430
      %v3436 = vrot.slane %v3435, 4
      %v3438 = vshll.u32 %v3156, 16
      %v3440 = vrot.slane %v3438, 5
      %v3441 = vsel %vm954, %v3436, %v3440
      %v3443 = vshrl.u32 %v3157, 16
      %v3445 = vrot.slane %v3443, 4
      %v3446 = vshll.u32 %v3157, 16
      %v3448 = vrot.slane %v3446, 5
      %v3449 = vor.u32 %v3445, %v3448
      %v3450 = vrot.slane %v3449, 4
      %v3452 = vshll.u32 %v3158, 16
      %v3454 = vrot.slane %v3452, 5
      %v3455 = vsel %vm954, %v3450, %v3454
      %v3456 = vshrl.u32 %v3158, 16
      %v3458 = vrot.slane %v3456, 4
      %v3459 = vor.u32 %v3458, %v3454
      %v3460 = vrot.slane %v3459, 4
      %v3462 = vshll.u32 %v3159, 16
      %v3464 = vrot.slane %v3462, 5
      %v3465 = vsel %vm954, %v3460, %v3464
      %v3467 = vshrl.u32 %v3160, 16
      %v3469 = vrot.slane %v3467, 4
      %v3470 = vshll.u32 %v3160, 16
      %v3472 = vrot.slane %v3470, 5
      %v3473 = vor.u32 %v3469, %v3472
      %v3474 = vrot.slane %v3473, 4
      %v3476 = vshll.u32 %v3161, 16
      %v3478 = vrot.slane %v3476, 5
      %v3479 = vsel %vm954, %v3474, %v3478
      %v3480 = vshrl.u32 %v3161, 16
      %v3482 = vrot.slane %v3480, 4
      %v3483 = vor.u32 %v3482, %v3478
      %v3484 = vrot.slane %v3483, 4
      %v3486 = vshll.u32 %v3162, 16
      %v3488 = vrot.slane %v3486, 5
      %v3489 = vsel %vm954, %v3484, %v3488
      %v3491 = vshrl.u32 %v3163, 16
      %v3493 = vrot.slane %v3491, 4
      %v3494 = vshll.u32 %v3163, 16
      %v3496 = vrot.slane %v3494, 5
      %v3497 = vor.u32 %v3493, %v3496
      %v3498 = vrot.slane %v3497, 4
      %v3500 = vshll.u32 %v3164, 16
      %v3502 = vrot.slane %v3500, 5
      %v3503 = vsel %vm954, %v3498, %v3502
      %v3504 = vshrl.u32 %v3164, 16
      %v3506 = vrot.slane %v3504, 4
      %v3507 = vor.u32 %v3506, %v3502
      %v3508 = vrot.slane %v3507, 4
      %v3510 = vshll.u32 %v3165, 16
      %v3512 = vrot.slane %v3510, 5
      %v3513 = vsel %vm954, %v3508, %v3512
      %v3515 = vshrl.u32 %v3166, 16
      %v3517 = vrot.slane %v3515, 4
      %v3518 = vshll.u32 %v3166, 16
      %v3520 = vrot.slane %v3518, 5
      %v3521 = vor.u32 %v3517, %v3520
      %v3522 = vrot.slane %v3521, 4
      %v3524 = vshll.u32 %v3167, 16
      %v3526 = vrot.slane %v3524, 5
      %v3527 = vsel %vm954, %v3522, %v3526
      %v3528 = vshrl.u32 %v3167, 16
      %v3530 = vrot.slane %v3528, 4
      %v3531 = vor.u32 %v3530, %v3526
      %v3532 = vrot.slane %v3531, 4
      %v3534 = vshll.u32 %v3168, 16
      %v3536 = vrot.slane %v3534, 5
      %v3537 = vsel %vm954, %v3532, %v3536
      %v3539 = vshrl.u32 %v3169, 16
      %v3541 = vrot.slane %v3539, 4
      %v3542 = vshll.u32 %v3169, 16
      %v3544 = vrot.slane %v3542, 5
      %v3545 = vor.u32 %v3541, %v3544
      %v3546 = vrot.slane %v3545, 4
      %v3548 = vshll.u32 %v3170, 16
      %v3550 = vrot.slane %v3548, 5
      %v3551 = vsel %vm954, %v3546, %v3550
      %v3552 = vshrl.u32 %v3170, 16
      %v3554 = vrot.slane %v3552, 4
      %v3555 = vor.u32 %v3554, %v3550
      %v3556 = vrot.slane %v3555, 4
      %v3558 = vshll.u32 %v3171, 16
      %v3560 = vrot.slane %v3558, 5
      %v3561 = vsel %vm954, %v3556, %v3560
      %v3610 = vrot.slane %v3124, 5
      %v3611 = vrot.slane %v3610, 4
      %v3612 = vrot.slane %v3125, 5
      %v3613 = vsel %vm1389, %v3611, %v3612
      %v3614 = vrot.slane %v3612, 4
      %v3615 = vrot.slane %v3126, 5
      %v3616 = vsel %vm1389, %v3614, %v3615
      %v3617 = vrot.slane %v3127, 5
      %v3618 = vrot.slane %v3617, 4
      %v3619 = vrot.slane %v3128, 5
      %v3620 = vsel %vm1389, %v3618, %v3619
      %v3621 = vrot.slane %v3619, 4
      %v3622 = vrot.slane %v3129, 5
      %v3623 = vsel %vm1389, %v3621, %v3622
      %v3624 = vrot.slane %v3130, 5
      %v3625 = vrot.slane %v3624, 4
      %v3626 = vrot.slane %v3131, 5
      %v3627 = vsel %vm1389, %v3625, %v3626
      %v3628 = vrot.slane %v3626, 4
      %v3629 = vrot.slane %v3132, 5
      %v3630 = vsel %vm1389, %v3628, %v3629
      %v3631 = vrot.slane %v3133, 5
      %v3632 = vrot.slane %v3631, 4
      %v3633 = vrot.slane %v3134, 5
      %v3634 = vsel %vm1389, %v3632, %v3633
      %v3635 = vrot.slane %v3633, 4
      %v3636 = vrot.slane %v3135, 5
      %v3637 = vsel %vm1389, %v3635, %v3636
      %v3638 = vrot.slane %v3136, 5
      %v3639 = vrot.slane %v3638, 4
      %v3640 = vrot.slane %v3137, 5
      %v3641 = vsel %vm1389, %v3639, %v3640
      %v3642 = vrot.slane %v3640, 4
      %v3643 = vrot.slane %v3138, 5
      %v3644 = vsel %vm1389, %v3642, %v3643
      %v3645 = vrot.slane %v3139, 5
      %v3646 = vrot.slane %v3645, 4
      %v3647 = vrot.slane %v3140, 5
      %v3648 = vsel %vm1389, %v3646, %v3647
      %v3649 = vrot.slane %v3647, 4
      %v3650 = vrot.slane %v3141, 5
      %v3651 = vsel %vm1389, %v3649, %v3650
      %v3652 = vrot.slane %v3142, 5
      %v3653 = vrot.slane %v3652, 4
      %v3654 = vrot.slane %v3143, 5
      %v3655 = vsel %vm1389, %v3653, %v3654
      %v3656 = vrot.slane %v3654, 4
      %v3657 = vrot.slane %v3144, 5
      %v3658 = vsel %vm1389, %v3656, %v3657
      %v3659 = vrot.slane %v3145, 5
      %v3660 = vrot.slane %v3659, 4
      %v3661 = vrot.slane %v3146, 5
      %v3662 = vsel %vm1389, %v3660, %v3661
      %v3663 = vrot.slane %v3661, 4
      %v3664 = vrot.slane %v3147, 5
      %v3665 = vsel %vm1389, %v3663, %v3664
      %v3666 = vrot.slane %v3148, 5
      %v3667 = vrot.slane %v3666, 4
      %v3668 = vrot.slane %v3149, 5
      %v3669 = vsel %vm1389, %v3667, %v3668
      %v3670 = vrot.slane %v3668, 4
      %v3671 = vrot.slane %v3150, 5
      %v3672 = vsel %vm1389, %v3670, %v3671
      %v3673 = vrot.slane %v3151, 5
      %v3674 = vrot.slane %v3673, 4
      %v3675 = vrot.slane %v3152, 5
      %v3676 = vsel %vm1389, %v3674, %v3675
      %v3677 = vrot.slane %v3675, 4
      %v3678 = vrot.slane %v3153, 5
      %v3679 = vsel %vm1389, %v3677, %v3678
      %v3680 = vrot.slane %v3154, 5
      %v3681 = vrot.slane %v3680, 4
      %v3682 = vrot.slane %v3155, 5
      %v3683 = vsel %vm1389, %v3681, %v3682
      %v3684 = vrot.slane %v3682, 4
      %v3685 = vrot.slane %v3156, 5
      %v3686 = vsel %vm1389, %v3684, %v3685
      %v3687 = vrot.slane %v3157, 5
      %v3688 = vrot.slane %v3687, 4
      %v3689 = vrot.slane %v3158, 5
      %v3690 = vsel %vm1389, %v3688, %v3689
      %v3691 = vrot.slane %v3689, 4
      %v3692 = vrot.slane %v3159, 5
      %v3693 = vsel %vm1389, %v3691, %v3692
      %v3694 = vrot.slane %v3160, 5
      %v3695 = vrot.slane %v3694, 4
      %v3696 = vrot.slane %v3161, 5
      %v3697 = vsel %vm1389, %v3695, %v3696
      %v3698 = vrot.slane %v3696, 4
      %v3699 = vrot.slane %v3162, 5
      %v3700 = vsel %vm1389, %v3698, %v3699
      %v3701 = vrot.slane %v3163, 5
      %v3702 = vrot.slane %v3701, 4
      %v3703 = vrot.slane %v3164, 5
      %v3704 = vsel %vm1389, %v3702, %v3703
      %v3705 = vrot.slane %v3703, 4
      %v3706 = vrot.slane %v3165, 5
      %v3707 = vsel %vm1389, %v3705, %v3706
      %v3708 = vrot.slane %v3166, 5
      %v3709 = vrot.slane %v3708, 4
      %v3710 = vrot.slane %v3167, 5
      %v3711 = vsel %vm1389, %v3709, %v3710
      %v3712 = vrot.slane %v3710, 4
      %v3713 = vrot.slane %v3168, 5
      %v3714 = vsel %vm1389, %v3712, %v3713
      %v3715 = vrot.slane %v3169, 5
      %v3716 = vrot.slane %v3715, 4
      %v3717 = vrot.slane %v3170, 5
      %v3718 = vsel %vm1389, %v3716, %v3717
      %v3719 = vrot.slane %v3717, 4
      %v3720 = vrot.slane %v3171, 5
      %v3721 = vsel %vm1389, %v3719, %v3720
      %v3723 = vshrl.u32 %v3172, 16
      %v3725 = vrot.slane %v3723, 4
      %v3726 = vshll.u32 %v3172, 16
      %v3728 = vrot.slane %v3726, 5
      %v3729 = vor.u32 %v3725, %v3728
      %v3730 = vrot.slane %v3729, 4
      %v3732 = vshll.u32 %v3173, 16
      %v3734 = vrot.slane %v3732, 5
      %v3735 = vsel %vm954, %v3730, %v3734
      %v3736 = vshrl.u32 %v3173, 16
      %v3738 = vrot.slane %v3736, 4
      %v3739 = vor.u32 %v3738, %v3734
      %v3740 = vrot.slane %v3739, 4
      %v3742 = vshll.u32 %v3174, 16
      %v3744 = vrot.slane %v3742, 5
      %v3745 = vsel %vm954, %v3740, %v3744
      %v3749 = vrot.slane %v3172, 5
      %v3750 = vrot.slane %v3749, 4
      %v3751 = vrot.slane %v3173, 5
      %v3752 = vsel %vm1389, %v3750, %v3751
      %v3753 = vrot.slane %v3751, 4
      %v3754 = vrot.slane %v3174, 5
      %v3755 = vsel %vm1389, %v3753, %v3754
      %v3757 = vshrl.u32 %v3175, 16
      %v3759 = vrot.slane %v3757, 4
      %v3760 = vshll.u32 %v3175, 16
      %v3762 = vrot.slane %v3760, 5
      %v3763 = vor.u32 %v3759, %v3762
      %v3764 = vrot.slane %v3763, 4
      %v3766 = vshll.u32 %v3176, 16
      %v3768 = vrot.slane %v3766, 5
      %v3769 = vsel %vm954, %v3764, %v3768
      %v3770 = vshrl.u32 %v3176, 16
      %v3772 = vrot.slane %v3770, 4
      %v3773 = vor.u32 %v3772, %v3768
      %v3774 = vrot.slane %v3773, 4
      %v3776 = vshll.u32 %v3177, 16
      %v3778 = vrot.slane %v3776, 5
      %v3779 = vsel %vm954, %v3774, %v3778
      %v3783 = vrot.slane %v3175, 5
      %v3784 = vrot.slane %v3783, 4
      %v3785 = vrot.slane %v3176, 5
      %v3786 = vsel %vm1389, %v3784, %v3785
      %v3787 = vrot.slane %v3785, 4
      %v3788 = vrot.slane %v3177, 5
      %v3789 = vsel %vm1389, %v3787, %v3788
      %v3790 = vunpack.c.l.b16 %v3124
      %v3791 = vunpack.c.l.b16 %v3125
      %v3792 = vunpack.c.l.b16 %v3127
      %v3793 = vunpack.c.l.b16 %v3128
      %v3794 = vunpack.c.l.b16 %v3130
      %v3795 = vunpack.c.l.b16 %v3131
      %v3796 = vunpack.c.l.b16 %v3133
      %v3797 = vunpack.c.l.b16 %v3134
      %v3798 = vunpack.c.l.b16 %v3136
      %v3799 = vunpack.c.l.b16 %v3137
      %v3800 = vunpack.c.l.b16 %v3139
      %v3801 = vunpack.c.l.b16 %v3140
      %v3802 = vunpack.c.l.b16 %v3142
      %v3803 = vunpack.c.l.b16 %v3143
      %v3804 = vunpack.c.l.b16 %v3145
      %v3805 = vunpack.c.l.b16 %v3146
      %v3806 = vunpack.c.l.b16 %v3148
      %v3807 = vunpack.c.l.b16 %v3149
      %v3808 = vunpack.c.l.b16 %v3151
      %v3809 = vunpack.c.l.b16 %v3152
      %v3810 = vunpack.c.l.b16 %v3154
      %v3811 = vunpack.c.l.b16 %v3155
      %v3812 = vunpack.c.l.b16 %v3157
      %v3813 = vunpack.c.l.b16 %v3158
      %v3814 = vunpack.c.l.b16 %v3160
      %v3815 = vunpack.c.l.b16 %v3161
      %v3816 = vunpack.c.l.b16 %v3163
      %v3817 = vunpack.c.l.b16 %v3164
      %v3818 = vunpack.c.l.b16 %v3166
      %v3819 = vunpack.c.l.b16 %v3167
      %v3820 = vunpack.c.l.b16 %v3169
      %v3821 = vunpack.c.l.b16 %v3170
      %v3822 = vpack.c.b16 %v3791, %v3790
      %v3823 = vpack.c.b16 %v3793, %v3792
      %v3824 = vpack.c.b16 %v3795, %v3794
      %v3825 = vpack.c.b16 %v3797, %v3796
      %v3826 = vpack.c.b16 %v3799, %v3798
      %v3827 = vpack.c.b16 %v3801, %v3800
      %v3828 = vpack.c.b16 %v3803, %v3802
      %v3829 = vpack.c.b16 %v3805, %v3804
      %v3830 = vpack.c.b16 %v3807, %v3806
      %v3831 = vpack.c.b16 %v3809, %v3808
      %v3832 = vpack.c.b16 %v3811, %v3810
      %v3833 = vpack.c.b16 %v3813, %v3812
      %v3834 = vpack.c.b16 %v3815, %v3814
      %v3835 = vpack.c.b16 %v3817, %v3816
      %v3836 = vpack.c.b16 %v3819, %v3818
      %v3837 = vpack.c.b16 %v3821, %v3820
      %v3838 = vunpack.c.l.b16 %v3191
      %v3839 = vunpack.c.l.b16 %v3201
      %v3840 = vunpack.c.l.b16 %v3215
      %v3841 = vunpack.c.l.b16 %v3225
      %v3842 = vunpack.c.l.b16 %v3239
      %v3843 = vunpack.c.l.b16 %v3249
      %v3844 = vunpack.c.l.b16 %v3263
      %v3845 = vunpack.c.l.b16 %v3273
      %v3846 = vunpack.c.l.b16 %v3287
      %v3847 = vunpack.c.l.b16 %v3297
      %v3848 = vunpack.c.l.b16 %v3311
      %v3849 = vunpack.c.l.b16 %v3321
      %v3850 = vunpack.c.l.b16 %v3335
      %v3851 = vunpack.c.l.b16 %v3345
      %v3852 = vunpack.c.l.b16 %v3359
      %v3853 = vunpack.c.l.b16 %v3369
      %v3854 = vunpack.c.l.b16 %v3383
      %v3855 = vunpack.c.l.b16 %v3393
      %v3856 = vunpack.c.l.b16 %v3407
      %v3857 = vunpack.c.l.b16 %v3417
      %v3858 = vunpack.c.l.b16 %v3431
      %v3859 = vunpack.c.l.b16 %v3441
      %v3860 = vunpack.c.l.b16 %v3455
      %v3861 = vunpack.c.l.b16 %v3465
      %v3862 = vunpack.c.l.b16 %v3479
      %v3863 = vunpack.c.l.b16 %v3489
      %v3864 = vunpack.c.l.b16 %v3503
      %v3865 = vunpack.c.l.b16 %v3513
      %v3866 = vunpack.c.l.b16 %v3527
      %v3867 = vunpack.c.l.b16 %v3537
      %v3868 = vunpack.c.l.b16 %v3551
      %v3869 = vunpack.c.l.b16 %v3561
      %v3870 = vpack.c.b16 %v3839, %v3838
      %v3871 = vpack.c.b16 %v3841, %v3840
      %v3872 = vpack.c.b16 %v3843, %v3842
      %v3873 = vpack.c.b16 %v3845, %v3844
      %v3874 = vpack.c.b16 %v3847, %v3846
      %v3875 = vpack.c.b16 %v3849, %v3848
      %v3876 = vpack.c.b16 %v3851, %v3850
      %v3877 = vpack.c.b16 %v3853, %v3852
      %v3878 = vpack.c.b16 %v3855, %v3854
      %v3879 = vpack.c.b16 %v3857, %v3856
      %v3880 = vpack.c.b16 %v3859, %v3858
      %v3881 = vpack.c.b16 %v3861, %v3860
      %v3882 = vpack.c.b16 %v3863, %v3862
      %v3883 = vpack.c.b16 %v3865, %v3864
      %v3884 = vpack.c.b16 %v3867, %v3866
      %v3885 = vpack.c.b16 %v3869, %v3868
      %3886 = vrot.lane.b32.xlu0 %v3870, 4
      %v3887 = vpop.permute.xlu0 %3886
      %3888 = vrot.lane.b32.xlu0 %v3871, 4
      %v3889 = vpop.permute.xlu0 %3888
      %3890 = vrot.lane.b32.xlu0 %v3872, 4
      %v3891 = vpop.permute.xlu0 %3890
      %3892 = vrot.lane.b32.xlu0 %v3873, 4
      %v3893 = vpop.permute.xlu0 %3892
      %3894 = vrot.lane.b32.xlu0 %v3874, 4
      %v3895 = vpop.permute.xlu0 %3894
      %3896 = vrot.lane.b32.xlu0 %v3875, 4
      %v3897 = vpop.permute.xlu0 %3896
      %3898 = vrot.lane.b32.xlu0 %v3876, 4
      %v3899 = vpop.permute.xlu0 %3898
      %3900 = vrot.lane.b32.xlu0 %v3877, 4
      %v3901 = vpop.permute.xlu0 %3900
      %3902 = vrot.lane.b32.xlu0 %v3878, 4
      %v3903 = vpop.permute.xlu0 %3902
      %3904 = vrot.lane.b32.xlu0 %v3879, 4
      %v3905 = vpop.permute.xlu0 %3904
      %3906 = vrot.lane.b32.xlu0 %v3880, 4
      %v3907 = vpop.permute.xlu0 %3906
      %3908 = vrot.lane.b32.xlu0 %v3881, 4
      %v3909 = vpop.permute.xlu0 %3908
      %3910 = vrot.lane.b32.xlu0 %v3882, 4
      %v3911 = vpop.permute.xlu0 %3910
      %3912 = vrot.lane.b32.xlu0 %v3883, 4
      %v3913 = vpop.permute.xlu0 %3912
      %3914 = vrot.lane.b32.xlu0 %v3884, 4
      %v3915 = vpop.permute.xlu0 %3914
      %3916 = vrot.lane.b32.xlu0 %v3885, 4
      %v3917 = vpop.permute.xlu0 %3916
      %v3918 = vunpack.c.l.b16 %v3613
      %v3919 = vunpack.c.l.b16 %v3616
      %v3920 = vunpack.c.l.b16 %v3620
      %v3921 = vunpack.c.l.b16 %v3623
      %v3922 = vunpack.c.l.b16 %v3627
      %v3923 = vunpack.c.l.b16 %v3630
      %v3924 = vunpack.c.l.b16 %v3634
      %v3925 = vunpack.c.l.b16 %v3637
      %v3926 = vunpack.c.l.b16 %v3641
      %v3927 = vunpack.c.l.b16 %v3644
      %v3928 = vunpack.c.l.b16 %v3648
      %v3929 = vunpack.c.l.b16 %v3651
      %v3930 = vunpack.c.l.b16 %v3655
      %v3931 = vunpack.c.l.b16 %v3658
      %v3932 = vunpack.c.l.b16 %v3662
      %v3933 = vunpack.c.l.b16 %v3665
      %v3934 = vunpack.c.l.b16 %v3669
      %v3935 = vunpack.c.l.b16 %v3672
      %v3936 = vunpack.c.l.b16 %v3676
      %v3937 = vunpack.c.l.b16 %v3679
      %v3938 = vunpack.c.l.b16 %v3683
      %v3939 = vunpack.c.l.b16 %v3686
      %v3940 = vunpack.c.l.b16 %v3690
      %v3941 = vunpack.c.l.b16 %v3693
      %v3942 = vunpack.c.l.b16 %v3697
      %v3943 = vunpack.c.l.b16 %v3700
      %v3944 = vunpack.c.l.b16 %v3704
      %v3945 = vunpack.c.l.b16 %v3707
      %v3946 = vunpack.c.l.b16 %v3711
      %v3947 = vunpack.c.l.b16 %v3714
      %v3948 = vunpack.c.l.b16 %v3718
      %v3949 = vunpack.c.l.b16 %v3721
      %v3950 = vpack.c.b16 %v3919, %v3918
      %v3951 = vpack.c.b16 %v3921, %v3920
      %v3952 = vpack.c.b16 %v3923, %v3922
      %v3953 = vpack.c.b16 %v3925, %v3924
      %v3954 = vpack.c.b16 %v3927, %v3926
      %v3955 = vpack.c.b16 %v3929, %v3928
      %v3956 = vpack.c.b16 %v3931, %v3930
      %v3957 = vpack.c.b16 %v3933, %v3932
      %v3958 = vpack.c.b16 %v3935, %v3934
      %v3959 = vpack.c.b16 %v3937, %v3936
      %v3960 = vpack.c.b16 %v3939, %v3938
      %v3961 = vpack.c.b16 %v3941, %v3940
      %v3962 = vpack.c.b16 %v3943, %v3942
      %v3963 = vpack.c.b16 %v3945, %v3944
      %v3964 = vpack.c.b16 %v3947, %v3946
      %v3965 = vpack.c.b16 %v3949, %v3948
      %3966 = vrot.lane.b32.xlu0 %v3950, 8
      %v3967 = vpop.permute.xlu0 %3966
      %3968 = vrot.lane.b32.xlu0 %v3951, 8
      %v3969 = vpop.permute.xlu0 %3968
      %3970 = vrot.lane.b32.xlu0 %v3952, 8
      %v3971 = vpop.permute.xlu0 %3970
      %3972 = vrot.lane.b32.xlu0 %v3953, 8
      %v3973 = vpop.permute.xlu0 %3972
      %3974 = vrot.lane.b32.xlu0 %v3954, 8
      %v3975 = vpop.permute.xlu0 %3974
      %3976 = vrot.lane.b32.xlu0 %v3955, 8
      %v3977 = vpop.permute.xlu0 %3976
      %3978 = vrot.lane.b32.xlu0 %v3956, 8
      %v3979 = vpop.permute.xlu0 %3978
      %3980 = vrot.lane.b32.xlu0 %v3957, 8
      %v3981 = vpop.permute.xlu0 %3980
      %3982 = vrot.lane.b32.xlu0 %v3958, 8
      %v3983 = vpop.permute.xlu0 %3982
      %3984 = vrot.lane.b32.xlu0 %v3959, 8
      %v3985 = vpop.permute.xlu0 %3984
      %3986 = vrot.lane.b32.xlu0 %v3960, 8
      %v3987 = vpop.permute.xlu0 %3986
      %3988 = vrot.lane.b32.xlu0 %v3961, 8
      %v3989 = vpop.permute.xlu0 %3988
      %3990 = vrot.lane.b32.xlu0 %v3962, 8
      %v3991 = vpop.permute.xlu0 %3990
      %3992 = vrot.lane.b32.xlu0 %v3963, 8
      %v3993 = vpop.permute.xlu0 %3992
      %3994 = vrot.lane.b32.xlu0 %v3964, 8
      %v3995 = vpop.permute.xlu0 %3994
      %3996 = vrot.lane.b32.xlu0 %v3965, 8
      %v3997 = vpop.permute.xlu0 %3996
      %v3998 = vunpack.c.l.b16 %v3172
      %v3999 = vunpack.c.l.b16 %v3173
      %v4000 = vpack.c.b16 %v3999, %v3998
      %4001 = vrot.lane.b32.xlu0 %v3823, 12
      %v4002 = vpop.permute.xlu0 %4001
      %4003 = vrot.lane.b32.xlu0 %v3824, 12
      %v4004 = vpop.permute.xlu0 %4003
      %4005 = vrot.lane.b32.xlu0 %v3825, 12
      %v4006 = vpop.permute.xlu0 %4005
      %4007 = vrot.lane.b32.xlu0 %v3826, 12
      %v4008 = vpop.permute.xlu0 %4007
      %4009 = vrot.lane.b32.xlu0 %v3827, 12
      %v4010 = vpop.permute.xlu0 %4009
      %4011 = vrot.lane.b32.xlu0 %v3828, 12
      %v4012 = vpop.permute.xlu0 %4011
      %4013 = vrot.lane.b32.xlu0 %v3829, 12
      %v4014 = vpop.permute.xlu0 %4013
      %4015 = vrot.lane.b32.xlu0 %v3830, 12
      %v4016 = vpop.permute.xlu0 %4015
      %4017 = vrot.lane.b32.xlu0 %v3831, 12
      %v4018 = vpop.permute.xlu0 %4017
      %4019 = vrot.lane.b32.xlu0 %v3832, 12
      %v4020 = vpop.permute.xlu0 %4019
      %4021 = vrot.lane.b32.xlu0 %v3833, 12
      %v4022 = vpop.permute.xlu0 %4021
      %4023 = vrot.lane.b32.xlu0 %v3834, 12
      %v4024 = vpop.permute.xlu0 %4023
      %4025 = vrot.lane.b32.xlu0 %v3835, 12
      %v4026 = vpop.permute.xlu0 %4025
      %4027 = vrot.lane.b32.xlu0 %v3836, 12
      %v4028 = vpop.permute.xlu0 %4027
      %4029 = vrot.lane.b32.xlu0 %v3837, 12
      %v4030 = vpop.permute.xlu0 %4029
      %4031 = vrot.lane.b32.xlu0 %v4000, 12
      %v4032 = vpop.permute.xlu0 %4031
      %v4033 = vunpack.c.l.b16 %v3735
      %v4034 = vunpack.c.l.b16 %v3745
      %v4035 = vpack.c.b16 %v4034, %v4033
      %4036 = vrot.lane.b32.xlu0 %v3871, 16
      %v4037 = vpop.permute.xlu0 %4036
      %4038 = vrot.lane.b32.xlu0 %v3872, 16
      %v4039 = vpop.permute.xlu0 %4038
      %4040 = vrot.lane.b32.xlu0 %v3873, 16
      %v4041 = vpop.permute.xlu0 %4040
      %4042 = vrot.lane.b32.xlu0 %v3874, 16
      %v4043 = vpop.permute.xlu0 %4042
      %4044 = vrot.lane.b32.xlu0 %v3875, 16
      %v4045 = vpop.permute.xlu0 %4044
      %4046 = vrot.lane.b32.xlu0 %v3876, 16
      %v4047 = vpop.permute.xlu0 %4046
      %4048 = vrot.lane.b32.xlu0 %v3877, 16
      %v4049 = vpop.permute.xlu0 %4048
      %4050 = vrot.lane.b32.xlu0 %v3878, 16
      %v4051 = vpop.permute.xlu0 %4050
      %4052 = vrot.lane.b32.xlu0 %v3879, 16
      %v4053 = vpop.permute.xlu0 %4052
      %4054 = vrot.lane.b32.xlu0 %v3880, 16
      %v4055 = vpop.permute.xlu0 %4054
      %4056 = vrot.lane.b32.xlu0 %v3881, 16
      %v4057 = vpop.permute.xlu0 %4056
      %4058 = vrot.lane.b32.xlu0 %v3882, 16
      %v4059 = vpop.permute.xlu0 %4058
      %4060 = vrot.lane.b32.xlu0 %v3883, 16
      %v4061 = vpop.permute.xlu0 %4060
      %4062 = vrot.lane.b32.xlu0 %v3884, 16
      %v4063 = vpop.permute.xlu0 %4062
      %4064 = vrot.lane.b32.xlu0 %v3885, 16
      %v4065 = vpop.permute.xlu0 %4064
      %4066 = vrot.lane.b32.xlu0 %v4035, 16
      %v4067 = vpop.permute.xlu0 %4066
      %v4068 = vunpack.c.l.b16 %v3752
      %v4069 = vunpack.c.l.b16 %v3755
      %v4070 = vpack.c.b16 %v4069, %v4068
      %4071 = vrot.lane.b32.xlu0 %v3951, 20
      %v4072 = vpop.permute.xlu0 %4071
      %4073 = vrot.lane.b32.xlu0 %v3952, 20
      %v4074 = vpop.permute.xlu0 %4073
      %4075 = vrot.lane.b32.xlu0 %v3953, 20
      %v4076 = vpop.permute.xlu0 %4075
      %4077 = vrot.lane.b32.xlu0 %v3954, 20
      %v4078 = vpop.permute.xlu0 %4077
      %4079 = vrot.lane.b32.xlu0 %v3955, 20
      %v4080 = vpop.permute.xlu0 %4079
      %4081 = vrot.lane.b32.xlu0 %v3956, 20
      %v4082 = vpop.permute.xlu0 %4081
      %4083 = vrot.lane.b32.xlu0 %v3957, 20
      %v4084 = vpop.permute.xlu0 %4083
      %4085 = vrot.lane.b32.xlu0 %v3958, 20
      %v4086 = vpop.permute.xlu0 %4085
      %4087 = vrot.lane.b32.xlu0 %v3959, 20
      %v4088 = vpop.permute.xlu0 %4087
      %4089 = vrot.lane.b32.xlu0 %v3960, 20
      %v4090 = vpop.permute.xlu0 %4089
      %4091 = vrot.lane.b32.xlu0 %v3961, 20
      %v4092 = vpop.permute.xlu0 %4091
      %4093 = vrot.lane.b32.xlu0 %v3962, 20
      %v4094 = vpop.permute.xlu0 %4093
      %4095 = vrot.lane.b32.xlu0 %v3963, 20
      %v4096 = vpop.permute.xlu0 %4095
      %4097 = vrot.lane.b32.xlu0 %v3964, 20
      %v4098 = vpop.permute.xlu0 %4097
      %4099 = vrot.lane.b32.xlu0 %v3965, 20
      %v4100 = vpop.permute.xlu0 %4099
      %4101 = vrot.lane.b32.xlu0 %v4070, 20
      %v4102 = vpop.permute.xlu0 %4101
      %v4103 = vunpack.c.l.b16 %v3175
      %v4104 = vunpack.c.l.b16 %v3176
      %v4105 = vpack.c.b16 %v4104, %v4103
      %4106 = vrot.lane.b32.xlu0 %v3824, 24
      %v4107 = vpop.permute.xlu0 %4106
      %4108 = vrot.lane.b32.xlu0 %v3825, 24
      %v4109 = vpop.permute.xlu0 %4108
      %4110 = vrot.lane.b32.xlu0 %v3826, 24
      %v4111 = vpop.permute.xlu0 %4110
      %4112 = vrot.lane.b32.xlu0 %v3827, 24
      %v4113 = vpop.permute.xlu0 %4112
      %4114 = vrot.lane.b32.xlu0 %v3828, 24
      %v4115 = vpop.permute.xlu0 %4114
      %4116 = vrot.lane.b32.xlu0 %v3829, 24
      %v4117 = vpop.permute.xlu0 %4116
      %4118 = vrot.lane.b32.xlu0 %v3830, 24
      %v4119 = vpop.permute.xlu0 %4118
      %4120 = vrot.lane.b32.xlu0 %v3831, 24
      %v4121 = vpop.permute.xlu0 %4120
      %4122 = vrot.lane.b32.xlu0 %v3832, 24
      %v4123 = vpop.permute.xlu0 %4122
      %4124 = vrot.lane.b32.xlu0 %v3833, 24
      %v4125 = vpop.permute.xlu0 %4124
      %4126 = vrot.lane.b32.xlu0 %v3834, 24
      %v4127 = vpop.permute.xlu0 %4126
      %4128 = vrot.lane.b32.xlu0 %v3835, 24
      %v4129 = vpop.permute.xlu0 %4128
      %4130 = vrot.lane.b32.xlu0 %v3836, 24
      %v4131 = vpop.permute.xlu0 %4130
      %4132 = vrot.lane.b32.xlu0 %v3837, 24
      %v4133 = vpop.permute.xlu0 %4132
      %4134 = vrot.lane.b32.xlu0 %v4000, 24
      %v4135 = vpop.permute.xlu0 %4134
      %4136 = vrot.lane.b32.xlu0 %v4105, 24
      %v4137 = vpop.permute.xlu0 %4136
      %v4138 = vunpack.c.l.b16 %v3769
      %v4139 = vunpack.c.l.b16 %v3779
      %v4140 = vpack.c.b16 %v4139, %v4138
      %4141 = vrot.lane.b32.xlu0 %v3872, 28
      %v4142 = vpop.permute.xlu0 %4141
      %4143 = vrot.lane.b32.xlu0 %v3873, 28
      %v4144 = vpop.permute.xlu0 %4143
      %4145 = vrot.lane.b32.xlu0 %v3874, 28
      %v4146 = vpop.permute.xlu0 %4145
      %4147 = vrot.lane.b32.xlu0 %v3875, 28
      %v4148 = vpop.permute.xlu0 %4147
      %4149 = vrot.lane.b32.xlu0 %v3876, 28
      %v4150 = vpop.permute.xlu0 %4149
      %4151 = vrot.lane.b32.xlu0 %v3877, 28
      %v4152 = vpop.permute.xlu0 %4151
      %4153 = vrot.lane.b32.xlu0 %v3878, 28
      %v4154 = vpop.permute.xlu0 %4153
      %4155 = vrot.lane.b32.xlu0 %v3879, 28
      %v4156 = vpop.permute.xlu0 %4155
      %4157 = vrot.lane.b32.xlu0 %v3880, 28
      %v4158 = vpop.permute.xlu0 %4157
      %4159 = vrot.lane.b32.xlu0 %v3881, 28
      %v4160 = vpop.permute.xlu0 %4159
      %4161 = vrot.lane.b32.xlu0 %v3882, 28
      %v4162 = vpop.permute.xlu0 %4161
      %4163 = vrot.lane.b32.xlu0 %v3883, 28
      %v4164 = vpop.permute.xlu0 %4163
      %4165 = vrot.lane.b32.xlu0 %v3884, 28
      %v4166 = vpop.permute.xlu0 %4165
      %4167 = vrot.lane.b32.xlu0 %v3885, 28
      %v4168 = vpop.permute.xlu0 %4167
      %4169 = vrot.lane.b32.xlu0 %v4035, 28
      %v4170 = vpop.permute.xlu0 %4169
      %4171 = vrot.lane.b32.xlu0 %v4140, 28
      %v4172 = vpop.permute.xlu0 %4171
      %v4173 = vunpack.c.l.b16 %v3786
      %v4174 = vunpack.c.l.b16 %v3789
      %v4175 = vpack.c.b16 %v4174, %v4173
      %4176 = vrot.lane.b32.xlu0 %v3952, 32
      %v4177 = vpop.permute.xlu0 %4176
      %4178 = vrot.lane.b32.xlu0 %v3953, 32
      %v4179 = vpop.permute.xlu0 %4178
      %4180 = vrot.lane.b32.xlu0 %v3954, 32
      %v4181 = vpop.permute.xlu0 %4180
      %4182 = vrot.lane.b32.xlu0 %v3955, 32
      %v4183 = vpop.permute.xlu0 %4182
      %4184 = vrot.lane.b32.xlu0 %v3956, 32
      %v4185 = vpop.permute.xlu0 %4184
      %4186 = vrot.lane.b32.xlu0 %v3957, 32
      %v4187 = vpop.permute.xlu0 %4186
      %4188 = vrot.lane.b32.xlu0 %v3958, 32
      %v4189 = vpop.permute.xlu0 %4188
      %4190 = vrot.lane.b32.xlu0 %v3959, 32
      %v4191 = vpop.permute.xlu0 %4190
      %4192 = vrot.lane.b32.xlu0 %v3960, 32
      %v4193 = vpop.permute.xlu0 %4192
      %4194 = vrot.lane.b32.xlu0 %v3961, 32
      %v4195 = vpop.permute.xlu0 %4194
      %4196 = vrot.lane.b32.xlu0 %v3962, 32
      %v4197 = vpop.permute.xlu0 %4196
      %4198 = vrot.lane.b32.xlu0 %v3963, 32
      %v4199 = vpop.permute.xlu0 %4198
      %4200 = vrot.lane.b32.xlu0 %v3964, 32
      %v4201 = vpop.permute.xlu0 %4200
      %4202 = vrot.lane.b32.xlu0 %v3965, 32
      %v4203 = vpop.permute.xlu0 %4202
      %4204 = vrot.lane.b32.xlu0 %v4070, 32
      %v4205 = vpop.permute.xlu0 %4204
      %4206 = vrot.lane.b32.xlu0 %v4175, 32
      %v4207 = vpop.permute.xlu0 %4206
      %v4210 = vsel %vm1988, %v3822, %v3887
      %v4213 = vsel %vm1988, %v3823, %v3889
      %v4216 = vsel %vm1988, %v3824, %v3891
      %v4219 = vsel %vm1988, %v3825, %v3893
      %v4222 = vsel %vm1988, %v3826, %v3895
      %v4225 = vsel %vm1988, %v3827, %v3897
      %v4228 = vsel %vm1988, %v3828, %v3899
      %v4231 = vsel %vm1988, %v3829, %v3901
      %v4234 = vsel %vm1988, %v3830, %v3903
      %v4237 = vsel %vm1988, %v3831, %v3905
      %v4240 = vsel %vm1988, %v3832, %v3907
      %v4243 = vsel %vm1988, %v3833, %v3909
      %v4246 = vsel %vm1988, %v3834, %v3911
      %v4249 = vsel %vm1988, %v3835, %v3913
      %v4252 = vsel %vm1988, %v3836, %v3915
      %v4255 = vsel %vm1988, %v3837, %v3917
      %v4257 = vsel %vm2037, %v4210, %v3967
      %v4259 = vsel %vm2037, %v4213, %v3969
      %v4261 = vsel %vm2037, %v4216, %v3971
      %v4263 = vsel %vm2037, %v4219, %v3973
      %v4265 = vsel %vm2037, %v4222, %v3975
      %v4267 = vsel %vm2037, %v4225, %v3977
      %v4269 = vsel %vm2037, %v4228, %v3979
      %v4271 = vsel %vm2037, %v4231, %v3981
      %v4273 = vsel %vm2037, %v4234, %v3983
      %v4275 = vsel %vm2037, %v4237, %v3985
      %v4277 = vsel %vm2037, %v4240, %v3987
      %v4279 = vsel %vm2037, %v4243, %v3989
      %v4281 = vsel %vm2037, %v4246, %v3991
      %v4283 = vsel %vm2037, %v4249, %v3993
      %v4285 = vsel %vm2037, %v4252, %v3995
      %v4287 = vsel %vm2037, %v4255, %v3997
      %v4289 = vsel %vm2070, %v4257, %v4002
      %v4291 = vsel %vm2070, %v4259, %v4004
      %v4293 = vsel %vm2070, %v4261, %v4006
      %v4295 = vsel %vm2070, %v4263, %v4008
      %v4297 = vsel %vm2070, %v4265, %v4010
      %v4299 = vsel %vm2070, %v4267, %v4012
      %v4301 = vsel %vm2070, %v4269, %v4014
      %v4303 = vsel %vm2070, %v4271, %v4016
      %v4305 = vsel %vm2070, %v4273, %v4018
      %v4307 = vsel %vm2070, %v4275, %v4020
      %v4309 = vsel %vm2070, %v4277, %v4022
      %v4311 = vsel %vm2070, %v4279, %v4024
      %v4313 = vsel %vm2070, %v4281, %v4026
      %v4315 = vsel %vm2070, %v4283, %v4028
      %v4317 = vsel %vm2070, %v4285, %v4030
      %v4319 = vsel %vm2070, %v4287, %v4032
      %v4321 = vsel %vm2103, %v4289, %v4037
      %v4323 = vsel %vm2103, %v4291, %v4039
      %v4325 = vsel %vm2103, %v4293, %v4041
      %v4327 = vsel %vm2103, %v4295, %v4043
      %v4329 = vsel %vm2103, %v4297, %v4045
      %v4331 = vsel %vm2103, %v4299, %v4047
      %v4333 = vsel %vm2103, %v4301, %v4049
      %v4335 = vsel %vm2103, %v4303, %v4051
      %v4337 = vsel %vm2103, %v4305, %v4053
      %v4339 = vsel %vm2103, %v4307, %v4055
      %v4341 = vsel %vm2103, %v4309, %v4057
      %v4343 = vsel %vm2103, %v4311, %v4059
      %v4345 = vsel %vm2103, %v4313, %v4061
      %v4347 = vsel %vm2103, %v4315, %v4063
      %v4349 = vsel %vm2103, %v4317, %v4065
      %v4351 = vsel %vm2103, %v4319, %v4067
      %v4353 = vsel %vm2136, %v4321, %v4072
      %v4355 = vsel %vm2136, %v4323, %v4074
      %v4357 = vsel %vm2136, %v4325, %v4076
      %v4359 = vsel %vm2136, %v4327, %v4078
      %v4361 = vsel %vm2136, %v4329, %v4080
      %v4363 = vsel %vm2136, %v4331, %v4082
      %v4365 = vsel %vm2136, %v4333, %v4084
      %v4367 = vsel %vm2136, %v4335, %v4086
      %v4369 = vsel %vm2136, %v4337, %v4088
      %v4371 = vsel %vm2136, %v4339, %v4090
      %v4373 = vsel %vm2136, %v4341, %v4092
      %v4375 = vsel %vm2136, %v4343, %v4094
      %v4377 = vsel %vm2136, %v4345, %v4096
      %v4379 = vsel %vm2136, %v4347, %v4098
      %v4381 = vsel %vm2136, %v4349, %v4100
      %v4383 = vsel %vm2136, %v4351, %v4102
      %v4385 = vsel %vm2169, %v4353, %v4107
      %v4387 = vsel %vm2169, %v4355, %v4109
      %v4389 = vsel %vm2169, %v4357, %v4111
      %v4391 = vsel %vm2169, %v4359, %v4113
      %v4393 = vsel %vm2169, %v4361, %v4115
      %v4395 = vsel %vm2169, %v4363, %v4117
      %v4397 = vsel %vm2169, %v4365, %v4119
      %v4399 = vsel %vm2169, %v4367, %v4121
      %v4401 = vsel %vm2169, %v4369, %v4123
      %v4403 = vsel %vm2169, %v4371, %v4125
      %v4405 = vsel %vm2169, %v4373, %v4127
      %v4407 = vsel %vm2169, %v4375, %v4129
      %v4409 = vsel %vm2169, %v4377, %v4131
      %v4411 = vsel %vm2169, %v4379, %v4133
      %v4413 = vsel %vm2169, %v4381, %v4135
      %v4415 = vsel %vm2169, %v4383, %v4137
      %v4417 = vsel %vm2202, %v4385, %v4142
      %v4419 = vsel %vm2202, %v4387, %v4144
      %v4421 = vsel %vm2202, %v4389, %v4146
      %v4423 = vsel %vm2202, %v4391, %v4148
      %v4425 = vsel %vm2202, %v4393, %v4150
      %v4427 = vsel %vm2202, %v4395, %v4152
      %v4429 = vsel %vm2202, %v4397, %v4154
      %v4431 = vsel %vm2202, %v4399, %v4156
      %v4433 = vsel %vm2202, %v4401, %v4158
      %v4435 = vsel %vm2202, %v4403, %v4160
      %v4437 = vsel %vm2202, %v4405, %v4162
      %v4439 = vsel %vm2202, %v4407, %v4164
      %v4441 = vsel %vm2202, %v4409, %v4166
      %v4443 = vsel %vm2202, %v4411, %v4168
      %v4445 = vsel %vm2202, %v4413, %v4170
      %v4447 = vsel %vm2202, %v4415, %v4172
      %v4449 = vsel %vm2235, %v4417, %v4177
      %v4451 = vsel %vm2235, %v4419, %v4179
      %v4453 = vsel %vm2235, %v4421, %v4181
      %v4455 = vsel %vm2235, %v4423, %v4183
      %v4457 = vsel %vm2235, %v4425, %v4185
      %v4459 = vsel %vm2235, %v4427, %v4187
      %v4461 = vsel %vm2235, %v4429, %v4189
      %v4463 = vsel %vm2235, %v4431, %v4191
      %v4465 = vsel %vm2235, %v4433, %v4193
      %v4467 = vsel %vm2235, %v4435, %v4195
      %v4469 = vsel %vm2235, %v4437, %v4197
      %v4471 = vsel %vm2235, %v4439, %v4199
      %v4473 = vsel %vm2235, %v4441, %v4201
      %v4475 = vsel %vm2235, %v4443, %v4203
      %v4477 = vsel %vm2235, %v4445, %v4205
      %v4479 = vsel %vm2235, %v4447, %v4207
      %v4480 = vld [vmem:[%s4] sm:$0xf]
      %v4481 = vld [vmem:[%s4 + $0x4] sm:$0xf]
      %v4482 = vld [vmem:[%s4 + $0x8] sm:$0xf]
      %v4483 = vld [vmem:[%s4 + $0xc] sm:$0xf]
      %v4484 = vld [vmem:[%s4 + $0x10] sm:$0x3]
      %v4490 = vunpack.c.l.b16 %v4480
      %v4491 = vunpack.c.l.b16 %v4481
      %v4492 = vunpack.c.l.b16 %v4482
      %v4493 = vunpack.c.l.b16 %v4483
      %v4494 = vunpack.c.l.b16 %v4484
      %v4495 = vpack.c.b16 %v4491, %v4490
      %v4496 = vpack.c.b16 %v4493, %v4492
      %v4497 = vpack.c.b16 %v4494, %v4494
      %v4500 = vsel %vm2288, %v4449, 0
      %v4502 = vsel %vm2288, %v4451, 0
      %v4504 = vsel %vm2288, %v4453, 0
      %v4506 = vsel %vm2288, %v4455, 0
      %v4508 = vsel %vm2288, %v4457, 0
      %v4510 = vsel %vm2288, %v4459, 0
      %v4512 = vsel %vm2288, %v4461, 0
      %v4514 = vsel %vm2288, %v4463, 0
      %v4516 = vsel %vm2288, %v4465, 0
      %v4518 = vsel %vm2288, %v4467, 0
      %v4520 = vsel %vm2288, %v4469, 0
      %v4522 = vsel %vm2288, %v4471, 0
      %v4524 = vsel %vm2288, %v4473, 0
      %v4526 = vsel %vm2288, %v4475, 0
      %v4528 = vsel %vm2288, %v4477, 0
      %v4530 = vsel %vm2288, %v4479, 0
      %v4533 = vsel %vm2321, %v4497, 0
      %4535 = vmatprep.subr.bf16.mxu0 0
      %4536 = vmatpush1.bf16.msra.mxu0 %v4495
      %4537 = vmatprep.subr.bf16.mxu0 0
      %4538 = vmatpush1.bf16.msra.mxu0 %v4496
      %4539 = vmatprep.subr.bf16.mxu0 0
      %4540 = vmatpush1.bf16.msra.mxu0 %v4533
      %4541 = vmatprep.subr.bf16.mxu0 0
      %4542 = vmatpush1.bf16.msra.mxu0 0
      %4543 = vmatprep.subr.bf16.mxu0 0
      %4544 = vmatpush1.bf16.msra.mxu0 0
      %4545 = vmatprep.subr.bf16.mxu0 0
      %4546 = vmatpush1.bf16.msra.mxu0 0
      %4547 = vmatprep.subr.bf16.mxu0 0
      %4548 = vmatpush1.bf16.msra.mxu0 0
      %4549 = vmatprep.subr.bf16.mxu0 0
      %4550 = vmatpush1.bf16.msra.mxu0 0
      %4551 = vmatprep.subr.bf16.mxu0 0
      %4552 = vmatpush1.bf16.msra.mxu0 0
      %4553 = vmatprep.subr.bf16.mxu0 0
      %4554 = vmatpush1.bf16.msra.mxu0 0
      %4555 = vmatprep.subr.bf16.mxu0 0
      %4556 = vmatpush1.bf16.msra.mxu0 0
      %4557 = vmatprep.subr.bf16.mxu0 0
      %4558 = vmatpush1.bf16.msra.mxu0 0
      %4559 = vmatprep.subr.bf16.mxu0 0
      %4560 = vmatpush1.bf16.msra.mxu0 0
      %4561 = vmatprep.subr.bf16.mxu0 0
      %4562 = vmatpush1.bf16.msra.mxu0 0
      %4563 = vmatprep.subr.bf16.mxu0 0
      %4564 = vmatpush1.bf16.msra.mxu0 0
      %4565 = vmatprep.subr.bf16.mxu0 0
      %4566 = vmatpush1.bf16.msra.mxu0 0
      %4567 = vmatprep.mubr.bf16.mxu0 0
      %4568 = vmatmul.mubr.bf16.gmra.mrb[0].mxu0 %v4500
      %v4569 = vpop.f32.mrb[0].mxu0
      %v4570 = vadd.f32 0.0, %v4569
      %v4571 = vpop.f32.mrb[0].mxu0
      %v4572 = vpop.f32.mrb[0].mxu0
      %v4573 = vadd.f32 0.0, %v4572
      %v4574 = vpop.f32.mrb[0].mxu0
      %4575 = vmatprep.mubr.bf16.mxu0 0
      %4576 = vmatmul.mubr.bf16.gmra.mrb[0].mxu0 %v4502
      %v4577 = vpop.f32.mrb[0].mxu0
      %v4578 = vadd.f32 0.0, %v4577
      %v4579 = vpop.f32.mrb[0].mxu0
      %v4580 = vpop.f32.mrb[0].mxu0
      %v4581 = vadd.f32 0.0, %v4580
      %v4582 = vpop.f32.mrb[0].mxu0
      %4583 = vmatprep.mubr.bf16.mxu0 0
      %4584 = vmatmul.mubr.bf16.gmra.mrb[0].mxu0 %v4504
      %v4585 = vpop.f32.mrb[0].mxu0
      %v4586 = vadd.f32 0.0, %v4585
      %v4587 = vpop.f32.mrb[0].mxu0
      %v4588 = vpop.f32.mrb[0].mxu0
      %v4589 = vadd.f32 0.0, %v4588
      %v4590 = vpop.f32.mrb[0].mxu0
      %4591 = vmatprep.mubr.bf16.mxu0 0
      %4592 = vmatmul.mubr.bf16.gmra.mrb[0].mxu0 %v4506
      %v4593 = vpop.f32.mrb[0].mxu0
      %v4594 = vadd.f32 0.0, %v4593
      %v4595 = vpop.f32.mrb[0].mxu0
      %v4596 = vpop.f32.mrb[0].mxu0
      %v4597 = vadd.f32 0.0, %v4596
      %v4598 = vpop.f32.mrb[0].mxu0
      %4599 = vmatprep.mubr.bf16.mxu0 0
      %4600 = vmatmul.mubr.bf16.gmra.mrb[0].mxu0 %v4508
      %v4601 = vpop.f32.mrb[0].mxu0
      %v4602 = vadd.f32 0.0, %v4601
      %v4603 = vpop.f32.mrb[0].mxu0
      %v4604 = vpop.f32.mrb[0].mxu0
      %v4605 = vadd.f32 0.0, %v4604
      %v4606 = vpop.f32.mrb[0].mxu0
      %4607 = vmatprep.mubr.bf16.mxu0 0
      %4608 = vmatmul.mubr.bf16.gmra.mrb[0].mxu0 %v4510
      %v4609 = vpop.f32.mrb[0].mxu0
      %v4610 = vadd.f32 0.0, %v4609
      %v4611 = vpop.f32.mrb[0].mxu0
      %v4612 = vpop.f32.mrb[0].mxu0
      %v4613 = vadd.f32 0.0, %v4612
      %v4614 = vpop.f32.mrb[0].mxu0
      %4615 = vmatprep.mubr.bf16.mxu0 0
      %4616 = vmatmul.mubr.bf16.gmra.mrb[0].mxu0 %v4512
      %v4617 = vpop.f32.mrb[0].mxu0
      %v4618 = vadd.f32 0.0, %v4617
      %v4619 = vpop.f32.mrb[0].mxu0
      %v4620 = vpop.f32.mrb[0].mxu0
      %v4621 = vadd.f32 0.0, %v4620
      %v4622 = vpop.f32.mrb[0].mxu0
      %4623 = vmatprep.mubr.bf16.mxu0 0
      %4624 = vmatmul.mubr.bf16.gmra.mrb[0].mxu0 %v4514
      %v4625 = vpop.f32.mrb[0].mxu0
      %v4626 = vadd.f32 0.0, %v4625
      %v4627 = vpop.f32.mrb[0].mxu0
      %v4628 = vpop.f32.mrb[0].mxu0
      %v4629 = vadd.f32 0.0, %v4628
      %v4630 = vpop.f32.mrb[0].mxu0
      %4631 = vmatprep.mubr.bf16.mxu0 0
      %4632 = vmatmul.mubr.bf16.gmra.mrb[0].mxu0 %v4516
      %v4633 = vpop.f32.mrb[0].mxu0
      %v4634 = vadd.f32 0.0, %v4633
      %v4635 = vpop.f32.mrb[0].mxu0
      %v4636 = vpop.f32.mrb[0].mxu0
      %v4637 = vadd.f32 0.0, %v4636
      %v4638 = vpop.f32.mrb[0].mxu0
      %4639 = vmatprep.mubr.bf16.mxu0 0
      %4640 = vmatmul.mubr.bf16.gmra.mrb[0].mxu0 %v4518
      %v4641 = vpop.f32.mrb[0].mxu0
      %v4642 = vadd.f32 0.0, %v4641
      %v4643 = vpop.f32.mrb[0].mxu0
      %v4644 = vpop.f32.mrb[0].mxu0
      %v4645 = vadd.f32 0.0, %v4644
      %v4646 = vpop.f32.mrb[0].mxu0
      %4647 = vmatprep.mubr.bf16.mxu0 0
      %4648 = vmatmul.mubr.bf16.gmra.mrb[0].mxu0 %v4520
      %v4649 = vpop.f32.mrb[0].mxu0
      %v4650 = vadd.f32 0.0, %v4649
      %v4651 = vpop.f32.mrb[0].mxu0
      %v4652 = vpop.f32.mrb[0].mxu0
      %v4653 = vadd.f32 0.0, %v4652
      %v4654 = vpop.f32.mrb[0].mxu0
      %4655 = vmatprep.mubr.bf16.mxu0 0
      %4656 = vmatmul.mubr.bf16.gmra.mrb[0].mxu0 %v4522
      %v4657 = vpop.f32.mrb[0].mxu0
      %v4658 = vadd.f32 0.0, %v4657
      %v4659 = vpop.f32.mrb[0].mxu0
      %v4660 = vpop.f32.mrb[0].mxu0
      %v4661 = vadd.f32 0.0, %v4660
      %v4662 = vpop.f32.mrb[0].mxu0
      %4663 = vmatprep.mubr.bf16.mxu0 0
      %4664 = vmatmul.mubr.bf16.gmra.mrb[0].mxu0 %v4524
      %v4665 = vpop.f32.mrb[0].mxu0
      %v4666 = vadd.f32 0.0, %v4665
      %v4667 = vpop.f32.mrb[0].mxu0
      %v4668 = vpop.f32.mrb[0].mxu0
      %v4669 = vadd.f32 0.0, %v4668
      %v4670 = vpop.f32.mrb[0].mxu0
      %4671 = vmatprep.mubr.bf16.mxu0 0
      %4672 = vmatmul.mubr.bf16.gmra.mrb[0].mxu0 %v4526
      %v4673 = vpop.f32.mrb[0].mxu0
      %v4674 = vadd.f32 0.0, %v4673
      %v4675 = vpop.f32.mrb[0].mxu0
      %v4676 = vpop.f32.mrb[0].mxu0
      %v4677 = vadd.f32 0.0, %v4676
      %v4678 = vpop.f32.mrb[0].mxu0
      %4679 = vmatprep.mubr.bf16.mxu0 0
      %4680 = vmatmul.mubr.bf16.gmra.mrb[0].mxu0 %v4528
      %v4681 = vpop.f32.mrb[0].mxu0
      %v4682 = vadd.f32 0.0, %v4681
      %v4683 = vpop.f32.mrb[0].mxu0
      %v4684 = vpop.f32.mrb[0].mxu0
      %v4685 = vadd.f32 0.0, %v4684
      %v4686 = vpop.f32.mrb[0].mxu0
      %4687 = vmatprep.mubr.bf16.mxu0 0
      %4688 = vmatmul.mubr.bf16.gmra.mrb[0].mxu0 %v4530
      %v4689 = vpop.f32.mrb[0].mxu0
      %v4690 = vadd.f32 0.0, %v4689
      %v4691 = vpop.f32.mrb[0].mxu0
      %v4692 = vpop.f32.mrb[0].mxu0
      %v4693 = vadd.f32 0.0, %v4692
      %v4694 = vpop.f32.mrb[0].mxu0
      %4695 = vdwg.mxu0
      %v4696 = vld [vmem:[%s5] sm:$0x1]
      %v4698 = vlaneseq
      %v4699 = vshrl.u32 %v4698, 7
      %v4700 = vsub.s32 0, %v4699
      %v4701 = vrot.slane %v4696, %v4700
      %v4703 = vmul.f32 %v4570, %v4701
      %v4704 = vmul.f32 %v4573, %v4701
      %v4705 = vmul.f32 %v4578, %v4701
      %v4706 = vmul.f32 %v4581, %v4701
      %v4707 = vmul.f32 %v4586, %v4701
      %v4708 = vmul.f32 %v4589, %v4701
      %v4709 = vmul.f32 %v4594, %v4701
      %v4710 = vmul.f32 %v4597, %v4701
      %v4711 = vmul.f32 %v4602, %v4701
      %v4712 = vmul.f32 %v4605, %v4701
      %v4713 = vmul.f32 %v4610, %v4701
      %v4714 = vmul.f32 %v4613, %v4701
      %v4715 = vmul.f32 %v4618, %v4701
      %v4716 = vmul.f32 %v4621, %v4701
      %v4717 = vmul.f32 %v4626, %v4701
      %v4718 = vmul.f32 %v4629, %v4701
      %v4719 = vmul.f32 %v4634, %v4701
      %v4720 = vmul.f32 %v4637, %v4701
      %v4721 = vmul.f32 %v4642, %v4701
      %v4722 = vmul.f32 %v4645, %v4701
      %v4723 = vmul.f32 %v4650, %v4701
      %v4724 = vmul.f32 %v4653, %v4701
      %v4725 = vmul.f32 %v4658, %v4701
      %v4726 = vmul.f32 %v4661, %v4701
      %v4727 = vmul.f32 %v4666, %v4701
      %v4728 = vmul.f32 %v4669, %v4701
      %v4729 = vmul.f32 %v4674, %v4701
      %v4730 = vmul.f32 %v4677, %v4701
      %v4731 = vmul.f32 %v4682, %v4701
      %v4732 = vmul.f32 %v4685, %v4701
      %v4733 = vmul.f32 %v4690, %v4701
      %v4734 = vmul.f32 %v4693, %v4701
      %v4735 = vld [vmem:[%s6] sm:$0x1]
      %v4737 = vlaneseq
      %v4738 = vshrl.u32 %v4737, 7
      %v4739 = vsub.s32 0, %v4738
      %v4740 = vrot.slane %v4735, %v4739
      %v4742 = vadd.f32 %v4703, %v4740
      %v4743 = vadd.f32 %v4704, %v4740
      %v4744 = vadd.f32 %v4705, %v4740
      %v4745 = vadd.f32 %v4706, %v4740
      %v4746 = vadd.f32 %v4707, %v4740
      %v4747 = vadd.f32 %v4708, %v4740
      %v4748 = vadd.f32 %v4709, %v4740
      %v4749 = vadd.f32 %v4710, %v4740
      %v4750 = vadd.f32 %v4711, %v4740
      %v4751 = vadd.f32 %v4712, %v4740
      %v4752 = vadd.f32 %v4713, %v4740
      %v4753 = vadd.f32 %v4714, %v4740
      %v4754 = vadd.f32 %v4715, %v4740
      %v4755 = vadd.f32 %v4716, %v4740
      %v4756 = vadd.f32 %v4717, %v4740
      %v4757 = vadd.f32 %v4718, %v4740
      %v4758 = vadd.f32 %v4719, %v4740
      %v4759 = vadd.f32 %v4720, %v4740
      %v4760 = vadd.f32 %v4721, %v4740
      %v4761 = vadd.f32 %v4722, %v4740
      %v4762 = vadd.f32 %v4723, %v4740
      %v4763 = vadd.f32 %v4724, %v4740
      %v4764 = vadd.f32 %v4725, %v4740
      %v4765 = vadd.f32 %v4726, %v4740
      %v4766 = vadd.f32 %v4727, %v4740
      %v4767 = vadd.f32 %v4728, %v4740
      %v4768 = vadd.f32 %v4729, %v4740
      %v4769 = vadd.f32 %v4730, %v4740
      %v4770 = vadd.f32 %v4731, %v4740
      %v4771 = vadd.f32 %v4732, %v4740
      %v4772 = vadd.f32 %v4733, %v4740
      %v4773 = vadd.f32 %v4734, %v4740
      %v4774 = vsel %vm1988, %v4742, 0.0
      %v4775 = vsel %vm1988, %v4743, 0.0
      %v4776 = vadd.f32 %v4774, %v4775
      %v4777 = vsel %vm1988, %v4744, 0.0
      %v4778 = vadd.f32 %v4776, %v4777
      %v4779 = vsel %vm1988, %v4745, 0.0
      %v4780 = vadd.f32 %v4778, %v4779
      %v4781 = vsel %vm1988, %v4746, 0.0
      %v4782 = vadd.f32 %v4780, %v4781
      %v4783 = vsel %vm1988, %v4747, 0.0
      %v4784 = vadd.f32 %v4782, %v4783
      %v4785 = vsel %vm1988, %v4748, 0.0
      %v4786 = vadd.f32 %v4784, %v4785
      %v4787 = vsel %vm1988, %v4749, 0.0
      %v4788 = vadd.f32 %v4786, %v4787
      %v4789 = vsel %vm1988, %v4750, 0.0
      %v4790 = vadd.f32 %v4788, %v4789
      %v4791 = vsel %vm1988, %v4751, 0.0
      %v4792 = vadd.f32 %v4790, %v4791
      %v4793 = vsel %vm1988, %v4752, 0.0
      %v4794 = vadd.f32 %v4792, %v4793
      %v4795 = vsel %vm1988, %v4753, 0.0
      %v4796 = vadd.f32 %v4794, %v4795
      %v4797 = vsel %vm1988, %v4754, 0.0
      %v4798 = vadd.f32 %v4796, %v4797
      %v4799 = vsel %vm1988, %v4755, 0.0
      %v4800 = vadd.f32 %v4798, %v4799
      %v4801 = vsel %vm1988, %v4756, 0.0
      %v4802 = vadd.f32 %v4800, %v4801
      %v4803 = vsel %vm1988, %v4757, 0.0
      %v4804 = vadd.f32 %v4802, %v4803
      %v4805 = vsel %vm1988, %v4758, 0.0
      %v4806 = vadd.f32 %v4804, %v4805
      %v4807 = vsel %vm1988, %v4759, 0.0
      %v4808 = vadd.f32 %v4806, %v4807
      %v4809 = vsel %vm1988, %v4760, 0.0
      %v4810 = vadd.f32 %v4808, %v4809
      %v4811 = vsel %vm1988, %v4761, 0.0
      %v4812 = vadd.f32 %v4810, %v4811
      %v4813 = vsel %vm1988, %v4762, 0.0
      %v4814 = vadd.f32 %v4812, %v4813
      %v4815 = vsel %vm1988, %v4763, 0.0
      %v4816 = vadd.f32 %v4814, %v4815
      %v4817 = vsel %vm1988, %v4764, 0.0
      %v4818 = vadd.f32 %v4816, %v4817
      %v4819 = vsel %vm1988, %v4765, 0.0
      %v4820 = vadd.f32 %v4818, %v4819
      %v4821 = vsel %vm1988, %v4766, 0.0
      %v4822 = vadd.f32 %v4820, %v4821
      %v4823 = vsel %vm1988, %v4767, 0.0
      %v4824 = vadd.f32 %v4822, %v4823
      %v4825 = vsel %vm1988, %v4768, 0.0
      %v4826 = vadd.f32 %v4824, %v4825
      %v4827 = vsel %vm1988, %v4769, 0.0
      %v4828 = vadd.f32 %v4826, %v4827
      %v4829 = vsel %vm1988, %v4770, 0.0
      %v4830 = vadd.f32 %v4828, %v4829
      %v4831 = vsel %vm1988, %v4771, 0.0
      %v4832 = vadd.f32 %v4830, %v4831
      %v4833 = vsel %vm1988, %v4772, 0.0
      %v4834 = vadd.f32 %v4832, %v4833
      %v4835 = vsel %vm1988, %v4773, 0.0
      %v4836 = vadd.f32 %v4834, %v4835
      %v4837 = vrot.slane %v4836, 4
      %v4838 = vadd.f32 %v4836, %v4837
      %v4839 = vrot.slane %v4838, 2
      %v4840 = vadd.f32 %v4838, %v4839
      %v4841 = vrot.slane %v4840, 1
      %v4842 = vadd.f32 %v4840, %v4841
      %v4843 = vmul.f32 %v4842, 0.00390625
      %v4844 = vld [vmem:[%s7] sm:$0xf]
      %v4846 = vsel %vm1988, %v4843, 0
      %vm4848 = vcmask 1043456
      %v4850 = vsel %vm4848, %v4844, 0
      %4852 = vmatprep.subr.mxu0 0.0
      %4853 = vmatpush1.msra.mxu0 %v4850
      %4854 = vmatprep.subr.mxu0 0.0
      %4855 = vmatpush1.msra.mxu0 0.0
      %4856 = vmatprep.subr.mxu0 0.0
      %4857 = vmatpush1.msra.mxu0 0.0
      %4858 = vmatprep.subr.mxu0 0.0
      %4859 = vmatpush1.msra.mxu0 0.0
      %4860 = vmatprep.subr.mxu0 0.0
      %4861 = vmatpush1.msra.mxu0 0.0
      %4862 = vmatprep.subr.mxu0 0.0
      %4863 = vmatpush1.msra.mxu0 0.0
      %4864 = vmatprep.subr.mxu0 0.0
      %4865 = vmatpush1.msra.mxu0 0.0
      %4866 = vmatprep.subr.mxu0 0.0
      %4867 = vmatpush1.msra.mxu0 0.0
      %4868 = vmatprep.subr.mxu0 0.0
      %4869 = vmatpush1.msra.mxu0 0.0
      %4870 = vmatprep.subr.mxu0 0.0
      %4871 = vmatpush1.msra.mxu0 0.0
      %4872 = vmatprep.subr.mxu0 0.0
      %4873 = vmatpush1.msra.mxu0 0.0
      %4874 = vmatprep.subr.mxu0 0.0
      %4875 = vmatpush1.msra.mxu0 0.0
      %4876 = vmatprep.subr.mxu0 0.0
      %4877 = vmatpush1.msra.mxu0 0.0
      %4878 = vmatprep.subr.mxu0 0.0
      %4879 = vmatpush1.msra.mxu0 0.0
      %4880 = vmatprep.subr.mxu0 0.0
      %4881 = vmatpush1.msra.mxu0 0.0
      %4882 = vmatprep.subr.mxu0 0.0
      %4883 = vmatpush1.msra.mxu0 0.0
      %4884 = vmatprep.subr.mxu0 0.0
      %4885 = vmatpush1.msra.mxu0 0.0
      %4886 = vmatprep.subr.mxu0 0.0
      %4887 = vmatpush1.msra.mxu0 0.0
      %4888 = vmatprep.subr.mxu0 0.0
      %4889 = vmatpush1.msra.mxu0 0.0
      %4890 = vmatprep.subr.mxu0 0.0
      %4891 = vmatpush1.msra.mxu0 0.0
      %4892 = vmatprep.subr.mxu0 0.0
      %4893 = vmatpush1.msra.mxu0 0.0
      %4894 = vmatprep.subr.mxu0 0.0
      %4895 = vmatpush1.msra.mxu0 0.0
      %4896 = vmatprep.subr.mxu0 0.0
      %4897 = vmatpush1.msra.mxu0 0.0
      %4898 = vmatprep.subr.mxu0 0.0
      %4899 = vmatpush1.msra.mxu0 0.0
      %4900 = vmatprep.subr.mxu0 0.0
      %4901 = vmatpush1.msra.mxu0 0.0
      %4902 = vmatprep.subr.mxu0 0.0
      %4903 = vmatpush1.msra.mxu0 0.0
      %4904 = vmatprep.subr.mxu0 0.0
      %4905 = vmatpush1.msra.mxu0 0.0
      %4906 = vmatprep.subr.mxu0 0.0
      %4907 = vmatpush1.msra.mxu0 0.0
      %4908 = vmatprep.subr.mxu0 0.0
      %4909 = vmatpush1.msra.mxu0 0.0
      %4910 = vmatprep.subr.mxu0 0.0
      %4911 = vmatpush1.msra.mxu0 0.0
      %4912 = vmatprep.subr.mxu0 0.0
      %4913 = vmatpush1.msra.mxu0 0.0
      %4914 = vmatprep.subr.mxu0 0.0
      %4915 = vmatpush1.msra.mxu0 0.0
      %4916 = vmatprep.mubr.f32.mxu0 0.0
      %4917 = vmatmul.mubr.f32.gmra.mrb[0].mxu0 %v4846
      %v4918 = vpop.f32.mrb[0].mxu0
      %v4919 = vadd.f32 0.0, %v4918
      %v4920 = vpop.f32.mrb[0].mxu0
      %4921 = vdwg.mxu0
      %v4922 = vsub.f32 0.0, %v4919
      %v4923 = vmul.f32 %v4922, 1.442695
      %v4924 = vpow.pop %v4923
      %v4925 = vadd.f32 %v4924, 1.0
      %v4926 = vrcp.pop %v4925
      %v4927 = vmul.f32 1.0, %v4926
      %v4928 = vunpack.c.l.bf16 %v429
      %v4929 = vunpack.c.l.bf16 %v430
      %v4930 = vunpack.c.l.bf16 %v431
      %v4931 = vunpack.c.l.bf16 %v432
      %v4932 = vunpack.c.l.bf16 %v433
      %v4933 = vunpack.c.l.bf16 %v434
      %v4934 = vunpack.c.l.bf16 %v435
      %v4935 = vunpack.c.l.bf16 %v436
      %v4936 = vunpack.c.l.bf16 %v437
      %v4937 = vunpack.c.l.bf16 %v438
      %v4938 = vunpack.c.l.bf16 %v439
      %v4939 = vunpack.c.l.bf16 %v440
      %v4940 = vunpack.c.l.bf16 %v441
      %v4941 = vunpack.c.l.bf16 %v442
      %v4942 = vunpack.c.l.bf16 %v443
      %v4943 = vunpack.c.l.bf16 %v444
      %v4944 = vunpack.c.l.bf16 %v445
      %v4945 = vunpack.c.l.bf16 %v446
      %v4946 = vunpack.c.l.bf16 %v447
      %v4947 = vunpack.c.l.bf16 %v448
      %v4948 = vunpack.c.l.bf16 %v449
      %v4949 = vunpack.c.l.bf16 %v450
      %v4950 = vunpack.c.l.bf16 %v451
      %v4951 = vunpack.c.l.bf16 %v452
      %v4952 = vunpack.c.l.bf16 %v453
      %v4953 = vunpack.c.l.bf16 %v454
      %v4954 = vunpack.c.l.bf16 %v455
      %v4955 = vunpack.c.l.bf16 %v456
      %v4956 = vunpack.c.l.bf16 %v457
      %v4957 = vunpack.c.l.bf16 %v458
      %v4958 = vunpack.c.l.bf16 %v459
      %v4959 = vunpack.c.l.bf16 %v460
      %v4960 = vlaneseq
      %v4961 = vshrl.u32 %v4960, 7
      %v4962 = vsub.s32 0, %v4961
      %v4963 = vrot.slane %v4927, %v4962
      %v4964 = vmul.f32 %v4742, %v4963
      %v4965 = vmul.f32 %v4743, %v4963
      %v4966 = vmul.f32 %v4744, %v4963
      %v4967 = vmul.f32 %v4745, %v4963
      %v4968 = vmul.f32 %v4746, %v4963
      %v4969 = vmul.f32 %v4747, %v4963
      %v4970 = vmul.f32 %v4748, %v4963
      %v4971 = vmul.f32 %v4749, %v4963
      %v4972 = vmul.f32 %v4750, %v4963
      %v4973 = vmul.f32 %v4751, %v4963
      %v4974 = vmul.f32 %v4752, %v4963
      %v4975 = vmul.f32 %v4753, %v4963
      %v4976 = vmul.f32 %v4754, %v4963
      %v4977 = vmul.f32 %v4755, %v4963
      %v4978 = vmul.f32 %v4756, %v4963
      %v4979 = vmul.f32 %v4757, %v4963
      %v4980 = vmul.f32 %v4758, %v4963
      %v4981 = vmul.f32 %v4759, %v4963
      %v4982 = vmul.f32 %v4760, %v4963
      %v4983 = vmul.f32 %v4761, %v4963
      %v4984 = vmul.f32 %v4762, %v4963
      %v4985 = vmul.f32 %v4763, %v4963
      %v4986 = vmul.f32 %v4764, %v4963
      %v4987 = vmul.f32 %v4765, %v4963
      %v4988 = vmul.f32 %v4766, %v4963
      %v4989 = vmul.f32 %v4767, %v4963
      %v4990 = vmul.f32 %v4768, %v4963
      %v4991 = vmul.f32 %v4769, %v4963
      %v4992 = vmul.f32 %v4770, %v4963
      %v4993 = vmul.f32 %v4771, %v4963
      %v4994 = vmul.f32 %v4772, %v4963
      %v4995 = vmul.f32 %v4773, %v4963
      %v4996 = vadd.f32 %v4964, %v4928
      %v4997 = vadd.f32 %v4965, %v4929
      %v4998 = vadd.f32 %v4966, %v4930
      %v4999 = vadd.f32 %v4967, %v4931
      %v5000 = vadd.f32 %v4968, %v4932
      %v5001 = vadd.f32 %v4969, %v4933
      %v5002 = vadd.f32 %v4970, %v4934
      %v5003 = vadd.f32 %v4971, %v4935
      %v5004 = vadd.f32 %v4972, %v4936
      %v5005 = vadd.f32 %v4973, %v4937
      %v5006 = vadd.f32 %v4974, %v4938
      %v5007 = vadd.f32 %v4975, %v4939
      %v5008 = vadd.f32 %v4976, %v4940
      %v5009 = vadd.f32 %v4977, %v4941
      %v5010 = vadd.f32 %v4978, %v4942
      %v5011 = vadd.f32 %v4979, %v4943
      %v5012 = vadd.f32 %v4980, %v4944
      %v5013 = vadd.f32 %v4981, %v4945
      %v5014 = vadd.f32 %v4982, %v4946
      %v5015 = vadd.f32 %v4983, %v4947
      %v5016 = vadd.f32 %v4984, %v4948
      %v5017 = vadd.f32 %v4985, %v4949
      %v5018 = vadd.f32 %v4986, %v4950
      %v5019 = vadd.f32 %v4987, %v4951
      %v5020 = vadd.f32 %v4988, %v4952
      %v5021 = vadd.f32 %v4989, %v4953
      %v5022 = vadd.f32 %v4990, %v4954
      %v5023 = vadd.f32 %v4991, %v4955
      %v5024 = vadd.f32 %v4992, %v4956
      %v5025 = vadd.f32 %v4993, %v4957
      %v5026 = vadd.f32 %v4994, %v4958
      %v5027 = vadd.f32 %v4995, %v4959
      %v5028 = vmax.f32 %v4996, 0.0
      %v5029 = vmax.f32 %v4997, 0.0
      %v5030 = vmax.f32 %v4998, 0.0
      %v5031 = vmax.f32 %v4999, 0.0
      %v5032 = vmax.f32 %v5000, 0.0
      %v5033 = vmax.f32 %v5001, 0.0
      %v5034 = vmax.f32 %v5002, 0.0
      %v5035 = vmax.f32 %v5003, 0.0
      %v5036 = vmax.f32 %v5004, 0.0
      %v5037 = vmax.f32 %v5005, 0.0
      %v5038 = vmax.f32 %v5006, 0.0
      %v5039 = vmax.f32 %v5007, 0.0
      %v5040 = vmax.f32 %v5008, 0.0
      %v5041 = vmax.f32 %v5009, 0.0
      %v5042 = vmax.f32 %v5010, 0.0
      %v5043 = vmax.f32 %v5011, 0.0
      %v5044 = vmax.f32 %v5012, 0.0
      %v5045 = vmax.f32 %v5013, 0.0
      %v5046 = vmax.f32 %v5014, 0.0
      %v5047 = vmax.f32 %v5015, 0.0
      %v5048 = vmax.f32 %v5016, 0.0
      %v5049 = vmax.f32 %v5017, 0.0
      %v5050 = vmax.f32 %v5018, 0.0
      %v5051 = vmax.f32 %v5019, 0.0
      %v5052 = vmax.f32 %v5020, 0.0
      %v5053 = vmax.f32 %v5021, 0.0
      %v5054 = vmax.f32 %v5022, 0.0
      %v5055 = vmax.f32 %v5023, 0.0
      %v5056 = vmax.f32 %v5024, 0.0
      %v5057 = vmax.f32 %v5025, 0.0
      %v5058 = vmax.f32 %v5026, 0.0
      %v5059 = vmax.f32 %v5027, 0.0
      %5060 = vst.msk [vmem:[%s305] sm:$0xff] %vm1988, %v5028
      %5061 = vst.msk [vmem:[%s305 + $0x8] sm:$0xff] %vm1988, %v5029
      %5062 = vst.msk [vmem:[%s305 + $0x10] sm:$0xff] %vm1988, %v5030
      %5063 = vst.msk [vmem:[%s305 + $0x18] sm:$0xff] %vm1988, %v5031
      %5064 = vst.msk [vmem:[%s305 + $0x20] sm:$0xff] %vm1988, %v5032
      %5065 = vst.msk [vmem:[%s305 + $0x28] sm:$0xff] %vm1988, %v5033
      %5066 = vst.msk [vmem:[%s305 + $0x30] sm:$0xff] %vm1988, %v5034
      %5067 = vst.msk [vmem:[%s305 + $0x38] sm:$0xff] %vm1988, %v5035
      %5068 = vst.msk [vmem:[%s305 + $0x40] sm:$0xff] %vm1988, %v5036
      %5069 = vst.msk [vmem:[%s305 + $0x48] sm:$0xff] %vm1988, %v5037
      %5070 = vst.msk [vmem:[%s305 + $0x50] sm:$0xff] %vm1988, %v5038
      %5071 = vst.msk [vmem:[%s305 + $0x58] sm:$0xff] %vm1988, %v5039
      %5072 = vst.msk [vmem:[%s305 + $0x60] sm:$0xff] %vm1988, %v5040
      %5073 = vst.msk [vmem:[%s305 + $0x68] sm:$0xff] %vm1988, %v5041
      %5074 = vst.msk [vmem:[%s305 + $0x70] sm:$0xff] %vm1988, %v5042
      %5075 = vst.msk [vmem:[%s305 + $0x78] sm:$0xff] %vm1988, %v5043
      %5076 = vst.msk [vmem:[%s305 + $0x80] sm:$0xff] %vm1988, %v5044
      %5077 = vst.msk [vmem:[%s305 + $0x88] sm:$0xff] %vm1988, %v5045
      %5078 = vst.msk [vmem:[%s305 + $0x90] sm:$0xff] %vm1988, %v5046
      %5079 = vst.msk [vmem:[%s305 + $0x98] sm:$0xff] %vm1988, %v5047
      %5080 = vst.msk [vmem:[%s305 + $0xa0] sm:$0xff] %vm1988, %v5048
      %5081 = vst.msk [vmem:[%s305 + $0xa8] sm:$0xff] %vm1988, %v5049
      %5082 = vst.msk [vmem:[%s305 + $0xb0] sm:$0xff] %vm1988, %v5050
      %5083 = vst.msk [vmem:[%s305 + $0xb8] sm:$0xff] %vm1988, %v5051
      %5084 = vst.msk [vmem:[%s305 + $0xc0] sm:$0xff] %vm1988, %v5052
      %5085 = vst.msk [vmem:[%s305 + $0xc8] sm:$0xff] %vm1988, %v5053
      %5086 = vst.msk [vmem:[%s305 + $0xd0] sm:$0xff] %vm1988, %v5054
      %5087 = vst.msk [vmem:[%s305 + $0xd8] sm:$0xff] %vm1988, %v5055
      %5088 = vst.msk [vmem:[%s305 + $0xe0] sm:$0xff] %vm1988, %v5056
      %5089 = vst.msk [vmem:[%s305 + $0xe8] sm:$0xff] %vm1988, %v5057
      %5090 = vst.msk [vmem:[%s305 + $0xf0] sm:$0xff] %vm1988, %v5058
      %5091 = vst.msk [vmem:[%s305 + $0xf8] sm:$0xff] %vm1988, %v5059
      %p5092 = scmp.lt.s32.totalorder %s19, 1
      %s5093 = scalar_select %p5092, %s19, 1
      %s5094 = smul.addr %s5093, 32
      %s5095 = smul.addr %s5094, 8
      %s5096 = scalar_lea.vmem %s8, %s5095
      // Predicated region
      $region53: #{tpu_custom_call.1} parent=51 // pred_check
        %p5097 = pneg %p210
      $region54: #{tpu_custom_call.1} parent=51 // pred_check_branch
        %5099 = sbr.rel (%p5097) target = $region56
      $region55: #{tpu_custom_call.1} parent=51 // pred_region
        _
      $region56: #{tpu_custom_call.1} parent=51 // pred_fallthru
        _
    $region52: #{tpu_custom_call.1} parent=5 // pred_fallthru
      _
    %p5100 = scmp.le.s32.totalorder 2, %s14
    // Predicated region
    $region57: #{tpu_custom_call.1} parent=5 // pred_check
      %p5101 = pneg %p5100
    $region58: #{tpu_custom_call.1} parent=5 // pred_check_branch
      %5103 = sbr.rel (%p5101) target = $region60
    $region59: #{tpu_custom_call.1} parent=5 // pred_region
      %s5104 = ssub.s32 %s14, 2
      // Predicated region
      $region61: #{tpu_custom_call.1} parent=59 // pred_check
        %p5105 = pneg %p216
      $region62: #{tpu_custom_call.1} parent=59 // pred_check_branch
        %5107 = sbr.rel (%p5105) target = $region64
      $region63: #{tpu_custom_call.1} parent=59 // pred_region
        %p5108 = scmp.lt.s32.totalorder %s20, 1
        %s5109 = scalar_select %p5108, %s20, 1
        %s5110 = smul.addr %s5109, 32
        %s5111 = smul.addr %s5110, 8
        %s5112 = scalar_lea.vmem %s8, %s5111
      $region64: #{tpu_custom_call.1} parent=59 // pred_fallthru
        _
    $region60: #{tpu_custom_call.1} parent=5 // pred_fallthru
      _
  $region6: #{tpu_custom_call.1} parent=0 // loop_footer
    %s18 = sadd.s32 1, %s14
  $region7: #{tpu_custom_call.1} parent=0 // loop_footer_branch
    %13 = sbr.rel target = $region3
  $region8: #{tpu_custom_call.1} parent=0 // loop_exit
    _

</llo_original>
